<compile_context>
chip_gen: v5e
topology: v5e:2x2
jax: 0.10.0
libtpu: 0.0.40
codegen_flags: <defaults>
</compile_context>

<pallas_src>
import functools
import math

import jax
import jax.numpy as jnp
from jax import lax
from jax.experimental import pallas as pl
from jax.experimental.pallas import tpu as pltpu


# ----------------------------------------------------------------------------
# Kernel: one grid step = one batch element, everything resident in VMEM.
# ----------------------------------------------------------------------------
def attention_kernel(x_ref, wq_ref, wk_ref, wv_ref, wproj_ref, bproj_ref,
                     o_ref, *, scale):
    x = x_ref[0]                                 # (N, C) float32
    N, C = x.shape
    H = wq_ref.shape[0]                          # num_heads (static)

    x16 = x.astype(jnp.bfloat16)                 # matmul operand dtype

    acc = jnp.zeros((N, C), jnp.float32)
    for h in range(H):                           # static unroll over heads
        # Per-head projections: (N, C) @ (C, d), bf16 operands, f32 accumulate.
        q = jnp.dot(x16, wq_ref[h], preferred_element_type=jnp.float32)
        k = jnp.dot(x16, wk_ref[h], preferred_element_type=jnp.float32)
        v = jnp.dot(x16, wv_ref[h], preferred_element_type=jnp.float32)

        # scores[n, m] = sum_d q[n, d] * k[m, d]  -> (N, N), lane-dense.
        s = lax.dot_general(q.astype(jnp.bfloat16), k.astype(jnp.bfloat16),
                            (((1,), (1,)), ((), ())),
                            preferred_element_type=jnp.float32) * scale

        # Row-wise softmax (stable); reciprocal on the EUP slot.
        s = s - jnp.max(s, axis=-1, keepdims=True)
        e = jnp.exp(s)
        p = e * pl.reciprocal(jnp.sum(e, axis=-1, keepdims=True), approx=True)

        # (attn @ v): (N, N) @ (N, d)
        oh = jnp.dot(p.astype(jnp.bfloat16), v.astype(jnp.bfloat16),
                     preferred_element_type=jnp.float32)

        # Output projection accumulated per head -> no concat / lane relayout.
        acc = acc + jnp.dot(oh.astype(jnp.bfloat16), wproj_ref[h],
                            preferred_element_type=jnp.float32)

    o_ref[0] = (acc + bproj_ref[...]).astype(o_ref.dtype)


# ----------------------------------------------------------------------------
# Wrapper
# ----------------------------------------------------------------------------
def attention_forward(x, wqkv_t, wproj_t, bproj, num_heads):
    B, N, C = x.shape
    d = C // num_heads
    scale = d ** -0.5

    # qkv weight (in, out) with output columns laid out as [3, H, d]
    # (matches PyTorch's reshape(B, N, 3, H, d)).  Rearrange into per-head
    # (H, C, d) slabs and pre-cast matmul operands to bf16.
    w3 = wqkv_t.reshape(C, 3, num_heads, d)
    wq = jnp.transpose(w3[:, 0], (1, 0, 2)).astype(jnp.bfloat16)   # (H, C, d)
    wk = jnp.transpose(w3[:, 1], (1, 0, 2)).astype(jnp.bfloat16)
    wv = jnp.transpose(w3[:, 2], (1, 0, 2)).astype(jnp.bfloat16)
    wp = wproj_t.reshape(num_heads, d, C).astype(jnp.bfloat16)     # (H, d, C)
    bp = bproj.reshape(1, C).astype(jnp.float32)

    def fullspec(shape):
        nd = len(shape)
        # Grid-invariant operands; could additionally use pipeline_mode=
        # pl.Buffered(1) to drop the second buffer (negligible at this size).
        return pl.BlockSpec(shape, lambda b, _n=nd: (0,) * _n)

    kernel = functools.partial(attention_kernel, scale=scale)
    return pl.pallas_call(
        kernel,
        out_shape=jax.ShapeDtypeStruct((B, N, C), jnp.float32),
        grid=(B,),
        in_specs=[
            pl.BlockSpec((1, N, C), lambda b: (b, 0, 0)),           # x
            fullspec(wq.shape), fullspec(wk.shape), fullspec(wv.shape),
            fullspec(wp.shape), fullspec(bp.shape),
        ],
        out_specs=pl.BlockSpec((1, N, C), lambda b: (b, 0, 0)),
        compiler_params=pltpu.CompilerParams(
            dimension_semantics=("parallel",)),                     # megacore on v7x
    )(x, wq, wk, wv, wp, bp)


# ----------------------------------------------------------------------------
# Pure-JAX reference (float32) for validation
# ----------------------------------------------------------------------------
def reference_attention(x, wqkv_t, wproj_t, bproj, num_heads):
    B, N, C = x.shape
    d = C // num_heads
    scale = d ** -0.5
    qkv = x @ wqkv_t                                           # (B, N, 3C)
    qkv = qkv.reshape(B, N, 3, num_heads, d).transpose(2, 0, 3, 1, 4)
    q, k, v = qkv[0], qkv[1], qkv[2]                           # (B, H, N, d)
    attn = jnp.einsum('bhnd,bhmd->bhnm', q, k) * scale
    attn = jax.nn.softmax(attn, axis=-1)
    out = jnp.einsum('bhnm,bhmd->bhnd', attn, v)               # (B, H, N, d)
    out = out.transpose(0, 2, 1, 3).reshape(B, N, C)
    return out @ wproj_t + bproj


# ----------------------------------------------------------------------------
if __name__ == "__main__":
    B, N, C = 2, 128, 128
    NUM_HEADS = 4

    key = jax.random.PRNGKey(0)
    k_x, k_qkv, k_p, k_bp = jax.random.split(key, 4)

    def uinit(k, shape, fan_in):
        bound = 1.0 / math.sqrt(fan_in)
        return jax.random.uniform(k, shape, jnp.float32, -bound, bound)

    # nn.Linear parameters, weights pre-transposed to (in, out).
    wqkv_t = uinit(k_qkv, (C, 3 * C), C)       # qkv_bias=False (module default)
    wproj_t = uinit(k_p, (C, C), C)
    bproj = uinit(k_bp, (C,), C)

    x = jax.random.normal(k_x, (B, N, C), jnp.float32)

    out = jax.block_until_ready(
        attention_forward(x, wqkv_t, wproj_t, bproj, NUM_HEADS))

    with jax.default_matmul_precision("float32"):
        ref = jax.block_until_ready(
            reference_attention(x, wqkv_t, wproj_t, bproj, NUM_HEADS))

    err = float(jnp.max(jnp.abs(out - ref)))
    # bf16 matmul operands + approx reciprocal vs. f32 reference.
    assert err < 2e-2, f"kernel/reference mismatch, max abs err = {err}"
    print("KERNEL_OK")
</pallas_src>

<mosaic_0001>
module attributes {stable_mosaic.version = 11 : i64} {
  func.func @attention_kernel(%arg0: i32, %arg1: memref<1x128x128xf32, #tpu.memory_space<vmem>>, %arg2: memref<4x128x32xbf16, #tpu.memory_space<vmem>>, %arg3: memref<4x128x32xbf16, #tpu.memory_space<vmem>>, %arg4: memref<4x128x32xbf16, #tpu.memory_space<vmem>>, %arg5: memref<4x32x128xbf16, #tpu.memory_space<vmem>>, %arg6: memref<1x128xf32, #tpu.memory_space<vmem>>, %arg7: memref<1x128x128xf32, #tpu.memory_space<vmem>>) attributes {dimension_semantics = [#tpu.dimension_semantics<parallel>], iteration_bounds = array<i64: 2>, scalar_prefetch = 0 : i64, scratch_operands = 0 : i64, tpu.core_type = #tpu.core_type<tc>, window_params = [{transform_indices = @transform_0, window_bounds = array<i64: 1, 128, 128>}, {pipeline_mode = #tpu.pipeline_mode<synchronous>, transform_indices = @transform_1, window_bounds = array<i64: 4, 128, 32>}, {pipeline_mode = #tpu.pipeline_mode<synchronous>, transform_indices = @transform_2, window_bounds = array<i64: 4, 128, 32>}, {pipeline_mode = #tpu.pipeline_mode<synchronous>, transform_indices = @transform_3, window_bounds = array<i64: 4, 128, 32>}, {pipeline_mode = #tpu.pipeline_mode<synchronous>, transform_indices = @transform_4, window_bounds = array<i64: 4, 32, 128>}, {pipeline_mode = #tpu.pipeline_mode<synchronous>, transform_indices = @transform_5, window_bounds = array<i64: 1, 128>}, {transform_indices = @transform_6, window_bounds = array<i64: 1, 128, 128>}]} {
    %c0 = arith.constant 0 : index
    %c0_0 = arith.constant 0 : index
    %c0_1 = arith.constant 0 : index
    %0 = vector.load %arg1[%c0, %c0_0, %c0_1] : memref<1x128x128xf32, #tpu.memory_space<vmem>>, vector<1x128x128xf32>
    %1 = vector.shape_cast %0 : vector<1x128x128xf32> to vector<128x128xf32>
    %2 = arith.truncf %1 : vector<128x128xf32> to vector<128x128xbf16>
    %cst = arith.constant 0.000000e+00 : f32
    %3 = vector.broadcast %cst : f32 to vector<128x128xf32>
    %c0_2 = arith.constant 0 : index
    %c0_3 = arith.constant 0 : index
    %c0_4 = arith.constant 0 : index
    %4 = vector.load %arg2[%c0_2, %c0_3, %c0_4] : memref<4x128x32xbf16, #tpu.memory_space<vmem>>, vector<1x128x32xbf16>
    %5 = vector.shape_cast %4 : vector<1x128x32xbf16> to vector<128x32xbf16>
    %cst_5 = arith.constant dense<0.000000e+00> : vector<128x32xf32>
    %6 = tpu.matmul %2, %5, %cst_5 {dimension_numbers = #tpu.dot_dimension_numbers<[1], [0], [0], [1], [0, 0, 1, 1], [], []>} : vector<128x128xbf16>, vector<128x32xbf16>, vector<128x32xf32> -> vector<128x32xf32>
    %c0_6 = arith.constant 0 : index
    %c0_7 = arith.constant 0 : index
    %c0_8 = arith.constant 0 : index
    %7 = vector.load %arg3[%c0_6, %c0_7, %c0_8] : memref<4x128x32xbf16, #tpu.memory_space<vmem>>, vector<1x128x32xbf16>
    %8 = vector.shape_cast %7 : vector<1x128x32xbf16> to vector<128x32xbf16>
    %cst_9 = arith.constant dense<0.000000e+00> : vector<128x32xf32>
    %9 = tpu.matmul %2, %8, %cst_9 {dimension_numbers = #tpu.dot_dimension_numbers<[1], [0], [0], [1], [0, 0, 1, 1], [], []>} : vector<128x128xbf16>, vector<128x32xbf16>, vector<128x32xf32> -> vector<128x32xf32>
    %c0_10 = arith.constant 0 : index
    %c0_11 = arith.constant 0 : index
    %c0_12 = arith.constant 0 : index
    %10 = vector.load %arg4[%c0_10, %c0_11, %c0_12] : memref<4x128x32xbf16, #tpu.memory_space<vmem>>, vector<1x128x32xbf16>
    %11 = vector.shape_cast %10 : vector<1x128x32xbf16> to vector<128x32xbf16>
    %cst_13 = arith.constant dense<0.000000e+00> : vector<128x32xf32>
    %12 = tpu.matmul %2, %11, %cst_13 {dimension_numbers = #tpu.dot_dimension_numbers<[1], [0], [0], [1], [0, 0, 1, 1], [], []>} : vector<128x128xbf16>, vector<128x32xbf16>, vector<128x32xf32> -> vector<128x32xf32>
    %13 = arith.truncf %6 : vector<128x32xf32> to vector<128x32xbf16>
    %14 = arith.truncf %9 : vector<128x32xf32> to vector<128x32xbf16>
    %cst_14 = arith.constant dense<0.000000e+00> : vector<128x128xf32>
    %15 = tpu.matmul %13, %14, %cst_14 {dimension_numbers = #tpu.dot_dimension_numbers<[1], [1], [0], [0], [0, 0, 1, 0], [], []>} : vector<128x32xbf16>, vector<128x32xbf16>, vector<128x128xf32> -> vector<128x128xf32>
    %cst_15 = arith.constant 0.176776692 : f32
    %16 = vector.broadcast %cst_15 : f32 to vector<128x128xf32>
    %17 = arith.mulf %15, %16 : vector<128x128xf32>
    %cst_16 = arith.constant dense<0xFF800000> : vector<128xf32>
    %18 = vector.multi_reduction <maximumf>, %17, %cst_16 [1] : vector<128x128xf32> to vector<128xf32>
    %19 = vector.shape_cast %18 : vector<128xf32> to vector<128x1xf32>
    %20 = vector.broadcast %19 : vector<128x1xf32> to vector<128x128xf32>
    %21 = arith.subf %17, %20 : vector<128x128xf32>
    %22 = math.exp %21 : vector<128x128xf32>
    %cst_17 = arith.constant dense<0.000000e+00> : vector<128xf32>
    %23 = vector.multi_reduction <add>, %22, %cst_17 [1] : vector<128x128xf32> to vector<128xf32>
    %24 = vector.shape_cast %23 : vector<128xf32> to vector<128x1xf32>
    %25 = tpu.reciprocal %24 {approx = true} : vector<128x1xf32> -> vector<128x1xf32>
    %26 = vector.broadcast %25 : vector<128x1xf32> to vector<128x128xf32>
    %27 = arith.mulf %22, %26 : vector<128x128xf32>
    %28 = arith.truncf %27 : vector<128x128xf32> to vector<128x128xbf16>
    %29 = arith.truncf %12 : vector<128x32xf32> to vector<128x32xbf16>
    %cst_18 = arith.constant dense<0.000000e+00> : vector<128x32xf32>
    %30 = tpu.matmul %28, %29, %cst_18 {dimension_numbers = #tpu.dot_dimension_numbers<[1], [0], [0], [1], [0, 0, 1, 1], [], []>} : vector<128x128xbf16>, vector<128x32xbf16>, vector<128x32xf32> -> vector<128x32xf32>
    %31 = arith.truncf %30 : vector<128x32xf32> to vector<128x32xbf16>
    %c0_19 = arith.constant 0 : index
    %c0_20 = arith.constant 0 : index
    %c0_21 = arith.constant 0 : index
    %32 = vector.load %arg5[%c0_19, %c0_20, %c0_21] : memref<4x32x128xbf16, #tpu.memory_space<vmem>>, vector<1x32x128xbf16>
    %33 = vector.shape_cast %32 : vector<1x32x128xbf16> to vector<32x128xbf16>
    %cst_22 = arith.constant dense<0.000000e+00> : vector<128x128xf32>
    %34 = tpu.matmul %31, %33, %cst_22 {dimension_numbers = #tpu.dot_dimension_numbers<[1], [0], [0], [1], [0, 0, 1, 1], [], []>} : vector<128x32xbf16>, vector<32x128xbf16>, vector<128x128xf32> -> vector<128x128xf32>
    %35 = arith.addf %3, %34 : vector<128x128xf32>
    %c1 = arith.constant 1 : index
    %c0_23 = arith.constant 0 : index
    %c0_24 = arith.constant 0 : index
    %36 = vector.load %arg2[%c1, %c0_23, %c0_24] : memref<4x128x32xbf16, #tpu.memory_space<vmem>>, vector<1x128x32xbf16>
    %37 = vector.shape_cast %36 : vector<1x128x32xbf16> to vector<128x32xbf16>
    %cst_25 = arith.constant dense<0.000000e+00> : vector<128x32xf32>
    %38 = tpu.matmul %2, %37, %cst_25 {dimension_numbers = #tpu.dot_dimension_numbers<[1], [0], [0], [1], [0, 0, 1, 1], [], []>} : vector<128x128xbf16>, vector<128x32xbf16>, vector<128x32xf32> -> vector<128x32xf32>
    %c1_26 = arith.constant 1 : index
    %c0_27 = arith.constant 0 : index
    %c0_28 = arith.constant 0 : index
    %39 = vector.load %arg3[%c1_26, %c0_27, %c0_28] : memref<4x128x32xbf16, #tpu.memory_space<vmem>>, vector<1x128x32xbf16>
    %40 = vector.shape_cast %39 : vector<1x128x32xbf16> to vector<128x32xbf16>
    %cst_29 = arith.constant dense<0.000000e+00> : vector<128x32xf32>
    %41 = tpu.matmul %2, %40, %cst_29 {dimension_numbers = #tpu.dot_dimension_numbers<[1], [0], [0], [1], [0, 0, 1, 1], [], []>} : vector<128x128xbf16>, vector<128x32xbf16>, vector<128x32xf32> -> vector<128x32xf32>
    %c1_30 = arith.constant 1 : index
    %c0_31 = arith.constant 0 : index
    %c0_32 = arith.constant 0 : index
    %42 = vector.load %arg4[%c1_30, %c0_31, %c0_32] : memref<4x128x32xbf16, #tpu.memory_space<vmem>>, vector<1x128x32xbf16>
    %43 = vector.shape_cast %42 : vector<1x128x32xbf16> to vector<128x32xbf16>
    %cst_33 = arith.constant dense<0.000000e+00> : vector<128x32xf32>
    %44 = tpu.matmul %2, %43, %cst_33 {dimension_numbers = #tpu.dot_dimension_numbers<[1], [0], [0], [1], [0, 0, 1, 1], [], []>} : vector<128x128xbf16>, vector<128x32xbf16>, vector<128x32xf32> -> vector<128x32xf32>
    %45 = arith.truncf %38 : vector<128x32xf32> to vector<128x32xbf16>
    %46 = arith.truncf %41 : vector<128x32xf32> to vector<128x32xbf16>
    %cst_34 = arith.constant dense<0.000000e+00> : vector<128x128xf32>
    %47 = tpu.matmul %45, %46, %cst_34 {dimension_numbers = #tpu.dot_dimension_numbers<[1], [1], [0], [0], [0, 0, 1, 0], [], []>} : vector<128x32xbf16>, vector<128x32xbf16>, vector<128x128xf32> -> vector<128x128xf32>
    %cst_35 = arith.constant 0.176776692 : f32
    %48 = vector.broadcast %cst_35 : f32 to vector<128x128xf32>
    %49 = arith.mulf %47, %48 : vector<128x128xf32>
    %cst_36 = arith.constant dense<0xFF800000> : vector<128xf32>
    %50 = vector.multi_reduction <maximumf>, %49, %cst_36 [1] : vector<128x128xf32> to vector<128xf32>
    %51 = vector.shape_cast %50 : vector<128xf32> to vector<128x1xf32>
    %52 = vector.broadcast %51 : vector<128x1xf32> to vector<128x128xf32>
    %53 = arith.subf %49, %52 : vector<128x128xf32>
    %54 = math.exp %53 : vector<128x128xf32>
    %cst_37 = arith.constant dense<0.000000e+00> : vector<128xf32>
    %55 = vector.multi_reduction <add>, %54, %cst_37 [1] : vector<128x128xf32> to vector<128xf32>
    %56 = vector.shape_cast %55 : vector<128xf32> to vector<128x1xf32>
    %57 = tpu.reciprocal %56 {approx = true} : vector<128x1xf32> -> vector<128x1xf32>
    %58 = vector.broadcast %57 : vector<128x1xf32> to vector<128x128xf32>
    %59 = arith.mulf %54, %58 : vector<128x128xf32>
    %60 = arith.truncf %59 : vector<128x128xf32> to vector<128x128xbf16>
    %61 = arith.truncf %44 : vector<128x32xf32> to vector<128x32xbf16>
    %cst_38 = arith.constant dense<0.000000e+00> : vector<128x32xf32>
    %62 = tpu.matmul %60, %61, %cst_38 {dimension_numbers = #tpu.dot_dimension_numbers<[1], [0], [0], [1], [0, 0, 1, 1], [], []>} : vector<128x128xbf16>, vector<128x32xbf16>, vector<128x32xf32> -> vector<128x32xf32>
    %63 = arith.truncf %62 : vector<128x32xf32> to vector<128x32xbf16>
    %c1_39 = arith.constant 1 : index
    %c0_40 = arith.constant 0 : index
    %c0_41 = arith.constant 0 : index
    %64 = vector.load %arg5[%c1_39, %c0_40, %c0_41] : memref<4x32x128xbf16, #tpu.memory_space<vmem>>, vector<1x32x128xbf16>
    %65 = vector.shape_cast %64 : vector<1x32x128xbf16> to vector<32x128xbf16>
    %cst_42 = arith.constant dense<0.000000e+00> : vector<128x128xf32>
    %66 = tpu.matmul %63, %65, %cst_42 {dimension_numbers = #tpu.dot_dimension_numbers<[1], [0], [0], [1], [0, 0, 1, 1], [], []>} : vector<128x32xbf16>, vector<32x128xbf16>, vector<128x128xf32> -> vector<128x128xf32>
    %67 = arith.addf %35, %66 : vector<128x128xf32>
    %c2 = arith.constant 2 : index
    %c0_43 = arith.constant 0 : index
    %c0_44 = arith.constant 0 : index
    %68 = vector.load %arg2[%c2, %c0_43, %c0_44] : memref<4x128x32xbf16, #tpu.memory_space<vmem>>, vector<1x128x32xbf16>
    %69 = vector.shape_cast %68 : vector<1x128x32xbf16> to vector<128x32xbf16>
    %cst_45 = arith.constant dense<0.000000e+00> : vector<128x32xf32>
    %70 = tpu.matmul %2, %69, %cst_45 {dimension_numbers = #tpu.dot_dimension_numbers<[1], [0], [0], [1], [0, 0, 1, 1], [], []>} : vector<128x128xbf16>, vector<128x32xbf16>, vector<128x32xf32> -> vector<128x32xf32>
    %c2_46 = arith.constant 2 : index
    %c0_47 = arith.constant 0 : index
    %c0_48 = arith.constant 0 : index
    %71 = vector.load %arg3[%c2_46, %c0_47, %c0_48] : memref<4x128x32xbf16, #tpu.memory_space<vmem>>, vector<1x128x32xbf16>
    %72 = vector.shape_cast %71 : vector<1x128x32xbf16> to vector<128x32xbf16>
    %cst_49 = arith.constant dense<0.000000e+00> : vector<128x32xf32>
    %73 = tpu.matmul %2, %72, %cst_49 {dimension_numbers = #tpu.dot_dimension_numbers<[1], [0], [0], [1], [0, 0, 1, 1], [], []>} : vector<128x128xbf16>, vector<128x32xbf16>, vector<128x32xf32> -> vector<128x32xf32>
    %c2_50 = arith.constant 2 : index
    %c0_51 = arith.constant 0 : index
    %c0_52 = arith.constant 0 : index
    %74 = vector.load %arg4[%c2_50, %c0_51, %c0_52] : memref<4x128x32xbf16, #tpu.memory_space<vmem>>, vector<1x128x32xbf16>
    %75 = vector.shape_cast %74 : vector<1x128x32xbf16> to vector<128x32xbf16>
    %cst_53 = arith.constant dense<0.000000e+00> : vector<128x32xf32>
    %76 = tpu.matmul %2, %75, %cst_53 {dimension_numbers = #tpu.dot_dimension_numbers<[1], [0], [0], [1], [0, 0, 1, 1], [], []>} : vector<128x128xbf16>, vector<128x32xbf16>, vector<128x32xf32> -> vector<128x32xf32>
    %77 = arith.truncf %70 : vector<128x32xf32> to vector<128x32xbf16>
    %78 = arith.truncf %73 : vector<128x32xf32> to vector<128x32xbf16>
    %cst_54 = arith.constant dense<0.000000e+00> : vector<128x128xf32>
    %79 = tpu.matmul %77, %78, %cst_54 {dimension_numbers = #tpu.dot_dimension_numbers<[1], [1], [0], [0], [0, 0, 1, 0], [], []>} : vector<128x32xbf16>, vector<128x32xbf16>, vector<128x128xf32> -> vector<128x128xf32>
    %cst_55 = arith.constant 0.176776692 : f32
    %80 = vector.broadcast %cst_55 : f32 to vector<128x128xf32>
    %81 = arith.mulf %79, %80 : vector<128x128xf32>
    %cst_56 = arith.constant dense<0xFF800000> : vector<128xf32>
    %82 = vector.multi_reduction <maximumf>, %81, %cst_56 [1] : vector<128x128xf32> to vector<128xf32>
    %83 = vector.shape_cast %82 : vector<128xf32> to vector<128x1xf32>
    %84 = vector.broadcast %83 : vector<128x1xf32> to vector<128x128xf32>
    %85 = arith.subf %81, %84 : vector<128x128xf32>
    %86 = math.exp %85 : vector<128x128xf32>
    %cst_57 = arith.constant dense<0.000000e+00> : vector<128xf32>
    %87 = vector.multi_reduction <add>, %86, %cst_57 [1] : vector<128x128xf32> to vector<128xf32>
    %88 = vector.shape_cast %87 : vector<128xf32> to vector<128x1xf32>
    %89 = tpu.reciprocal %88 {approx = true} : vector<128x1xf32> -> vector<128x1xf32>
    %90 = vector.broadcast %89 : vector<128x1xf32> to vector<128x128xf32>
    %91 = arith.mulf %86, %90 : vector<128x128xf32>
    %92 = arith.truncf %91 : vector<128x128xf32> to vector<128x128xbf16>
    %93 = arith.truncf %76 : vector<128x32xf32> to vector<128x32xbf16>
    %cst_58 = arith.constant dense<0.000000e+00> : vector<128x32xf32>
    %94 = tpu.matmul %92, %93, %cst_58 {dimension_numbers = #tpu.dot_dimension_numbers<[1], [0], [0], [1], [0, 0, 1, 1], [], []>} : vector<128x128xbf16>, vector<128x32xbf16>, vector<128x32xf32> -> vector<128x32xf32>
    %95 = arith.truncf %94 : vector<128x32xf32> to vector<128x32xbf16>
    %c2_59 = arith.constant 2 : index
    %c0_60 = arith.constant 0 : index
    %c0_61 = arith.constant 0 : index
    %96 = vector.load %arg5[%c2_59, %c0_60, %c0_61] : memref<4x32x128xbf16, #tpu.memory_space<vmem>>, vector<1x32x128xbf16>
    %97 = vector.shape_cast %96 : vector<1x32x128xbf16> to vector<32x128xbf16>
    %cst_62 = arith.constant dense<0.000000e+00> : vector<128x128xf32>
    %98 = tpu.matmul %95, %97, %cst_62 {dimension_numbers = #tpu.dot_dimension_numbers<[1], [0], [0], [1], [0, 0, 1, 1], [], []>} : vector<128x32xbf16>, vector<32x128xbf16>, vector<128x128xf32> -> vector<128x128xf32>
    %99 = arith.addf %67, %98 : vector<128x128xf32>
    %c3 = arith.constant 3 : index
    %c0_63 = arith.constant 0 : index
    %c0_64 = arith.constant 0 : index
    %100 = vector.load %arg2[%c3, %c0_63, %c0_64] : memref<4x128x32xbf16, #tpu.memory_space<vmem>>, vector<1x128x32xbf16>
    %101 = vector.shape_cast %100 : vector<1x128x32xbf16> to vector<128x32xbf16>
    %cst_65 = arith.constant dense<0.000000e+00> : vector<128x32xf32>
    %102 = tpu.matmul %2, %101, %cst_65 {dimension_numbers = #tpu.dot_dimension_numbers<[1], [0], [0], [1], [0, 0, 1, 1], [], []>} : vector<128x128xbf16>, vector<128x32xbf16>, vector<128x32xf32> -> vector<128x32xf32>
    %c3_66 = arith.constant 3 : index
    %c0_67 = arith.constant 0 : index
    %c0_68 = arith.constant 0 : index
    %103 = vector.load %arg3[%c3_66, %c0_67, %c0_68] : memref<4x128x32xbf16, #tpu.memory_space<vmem>>, vector<1x128x32xbf16>
    %104 = vector.shape_cast %103 : vector<1x128x32xbf16> to vector<128x32xbf16>
    %cst_69 = arith.constant dense<0.000000e+00> : vector<128x32xf32>
    %105 = tpu.matmul %2, %104, %cst_69 {dimension_numbers = #tpu.dot_dimension_numbers<[1], [0], [0], [1], [0, 0, 1, 1], [], []>} : vector<128x128xbf16>, vector<128x32xbf16>, vector<128x32xf32> -> vector<128x32xf32>
    %c3_70 = arith.constant 3 : index
    %c0_71 = arith.constant 0 : index
    %c0_72 = arith.constant 0 : index
    %106 = vector.load %arg4[%c3_70, %c0_71, %c0_72] : memref<4x128x32xbf16, #tpu.memory_space<vmem>>, vector<1x128x32xbf16>
    %107 = vector.shape_cast %106 : vector<1x128x32xbf16> to vector<128x32xbf16>
    %cst_73 = arith.constant dense<0.000000e+00> : vector<128x32xf32>
    %108 = tpu.matmul %2, %107, %cst_73 {dimension_numbers = #tpu.dot_dimension_numbers<[1], [0], [0], [1], [0, 0, 1, 1], [], []>} : vector<128x128xbf16>, vector<128x32xbf16>, vector<128x32xf32> -> vector<128x32xf32>
    %109 = arith.truncf %102 : vector<128x32xf32> to vector<128x32xbf16>
    %110 = arith.truncf %105 : vector<128x32xf32> to vector<128x32xbf16>
    %cst_74 = arith.constant dense<0.000000e+00> : vector<128x128xf32>
    %111 = tpu.matmul %109, %110, %cst_74 {dimension_numbers = #tpu.dot_dimension_numbers<[1], [1], [0], [0], [0, 0, 1, 0], [], []>} : vector<128x32xbf16>, vector<128x32xbf16>, vector<128x128xf32> -> vector<128x128xf32>
    %cst_75 = arith.constant 0.176776692 : f32
    %112 = vector.broadcast %cst_75 : f32 to vector<128x128xf32>
    %113 = arith.mulf %111, %112 : vector<128x128xf32>
    %cst_76 = arith.constant dense<0xFF800000> : vector<128xf32>
    %114 = vector.multi_reduction <maximumf>, %113, %cst_76 [1] : vector<128x128xf32> to vector<128xf32>
    %115 = vector.shape_cast %114 : vector<128xf32> to vector<128x1xf32>
    %116 = vector.broadcast %115 : vector<128x1xf32> to vector<128x128xf32>
    %117 = arith.subf %113, %116 : vector<128x128xf32>
    %118 = math.exp %117 : vector<128x128xf32>
    %cst_77 = arith.constant dense<0.000000e+00> : vector<128xf32>
    %119 = vector.multi_reduction <add>, %118, %cst_77 [1] : vector<128x128xf32> to vector<128xf32>
    %120 = vector.shape_cast %119 : vector<128xf32> to vector<128x1xf32>
    %121 = tpu.reciprocal %120 {approx = true} : vector<128x1xf32> -> vector<128x1xf32>
    %122 = vector.broadcast %121 : vector<128x1xf32> to vector<128x128xf32>
    %123 = arith.mulf %118, %122 : vector<128x128xf32>
    %124 = arith.truncf %123 : vector<128x128xf32> to vector<128x128xbf16>
    %125 = arith.truncf %108 : vector<128x32xf32> to vector<128x32xbf16>
    %cst_78 = arith.constant dense<0.000000e+00> : vector<128x32xf32>
    %126 = tpu.matmul %124, %125, %cst_78 {dimension_numbers = #tpu.dot_dimension_numbers<[1], [0], [0], [1], [0, 0, 1, 1], [], []>} : vector<128x128xbf16>, vector<128x32xbf16>, vector<128x32xf32> -> vector<128x32xf32>
    %127 = arith.truncf %126 : vector<128x32xf32> to vector<128x32xbf16>
    %c3_79 = arith.constant 3 : index
    %c0_80 = arith.constant 0 : index
    %c0_81 = arith.constant 0 : index
    %128 = vector.load %arg5[%c3_79, %c0_80, %c0_81] : memref<4x32x128xbf16, #tpu.memory_space<vmem>>, vector<1x32x128xbf16>
    %129 = vector.shape_cast %128 : vector<1x32x128xbf16> to vector<32x128xbf16>
    %cst_82 = arith.constant dense<0.000000e+00> : vector<128x128xf32>
    %130 = tpu.matmul %127, %129, %cst_82 {dimension_numbers = #tpu.dot_dimension_numbers<[1], [0], [0], [1], [0, 0, 1, 1], [], []>} : vector<128x32xbf16>, vector<32x128xbf16>, vector<128x128xf32> -> vector<128x128xf32>
    %131 = arith.addf %99, %130 : vector<128x128xf32>
    %c0_83 = arith.constant 0 : index
    %c0_84 = arith.constant 0 : index
    %132 = vector.load %arg6[%c0_83, %c0_84] : memref<1x128xf32, #tpu.memory_space<vmem>>, vector<1x128xf32>
    %133 = vector.broadcast %132 : vector<1x128xf32> to vector<128x128xf32>
    %134 = arith.addf %131, %133 : vector<128x128xf32>
    %c0_85 = arith.constant 0 : index
    %c0_86 = arith.constant 0 : index
    %c0_87 = arith.constant 0 : index
    %135 = vector.load %arg7[%c0_85, %c0_86, %c0_87] : memref<1x128x128xf32, #tpu.memory_space<vmem>>, vector<1x128x128xf32>
    %136 = vector.shape_cast %135 : vector<1x128x128xf32> to vector<128x128xf32>
    %137 = vector.shape_cast %134 : vector<128x128xf32> to vector<1x128x128xf32>
    tpu.vector_store %arg7[%c0_85, %c0_86, %c0_87], %137 {strides = array<i32>} : memref<1x128x128xf32, #tpu.memory_space<vmem>>, vector<1x128x128xf32>,
    return
  }
  func.func @transform_0(%arg0: i32) -> (i32, i32, i32) {
    %c0_i32 = arith.constant 0 : i32
    %c0_i32_0 = arith.constant 0 : i32
    %c0_i32_1 = arith.constant 0 : i32
    return %arg0, %c0_i32, %c0_i32_0 : i32, i32, i32
  }
  func.func @transform_1(%arg0: i32) -> (i32, i32, i32) {
    %c0_i32 = arith.constant 0 : i32
    %c0_i32_0 = arith.constant 0 : i32
    %c0_i32_1 = arith.constant 0 : i32
    %c0_i32_2 = arith.constant 0 : i32
    return %c0_i32, %c0_i32_0, %c0_i32_1 : i32, i32, i32
  }
  func.func @transform_2(%arg0: i32) -> (i32, i32, i32) {
    %c0_i32 = arith.constant 0 : i32
    %c0_i32_0 = arith.constant 0 : i32
    %c0_i32_1 = arith.constant 0 : i32
    %c0_i32_2 = arith.constant 0 : i32
    return %c0_i32, %c0_i32_0, %c0_i32_1 : i32, i32, i32
  }
  func.func @transform_3(%arg0: i32) -> (i32, i32, i32) {
    %c0_i32 = arith.constant 0 : i32
    %c0_i32_0 = arith.constant 0 : i32
    %c0_i32_1 = arith.constant 0 : i32
    %c0_i32_2 = arith.constant 0 : i32
    return %c0_i32, %c0_i32_0, %c0_i32_1 : i32, i32, i32
  }
  func.func @transform_4(%arg0: i32) -> (i32, i32, i32) {
    %c0_i32 = arith.constant 0 : i32
    %c0_i32_0 = arith.constant 0 : i32
    %c0_i32_1 = arith.constant 0 : i32
    %c0_i32_2 = arith.constant 0 : i32
    return %c0_i32, %c0_i32_0, %c0_i32_1 : i32, i32, i32
  }
  func.func @transform_5(%arg0: i32) -> (i32, i32) {
    %c0_i32 = arith.constant 0 : i32
    %c0_i32_0 = arith.constant 0 : i32
    %c0_i32_1 = arith.constant 0 : i32
    return %c0_i32, %c0_i32_0 : i32, i32
  }
  func.func @transform_6(%arg0: i32) -> (i32, i32, i32) {
    %c0_i32 = arith.constant 0 : i32
    %c0_i32_0 = arith.constant 0 : i32
    %c0_i32_1 = arith.constant 0 : i32
    return %arg0, %c0_i32, %c0_i32_0 : i32, i32, i32
  }
}

</mosaic_0001>

<llo_original>
// kernel: tpu_custom_call.1
$region0: #{tpu_custom_call.1}
  #allocation0 [shape = 'u32[]', space=smem, size = 0x4, offset = 0x4, fixed_abs, tag = 'smem constant byte address 0x4 - core index']
  #allocation1 [shape = 'u32[72,128]{1,0:T(1,128)}', space=vmem, size = 0x9000, scoped, tag = 'internal scratch']
  %s0 = inlined_call_operand.vmem [shape: f32[2,128,128], index: 0, kind: input, shape index: {}]
  %s1 = inlined_call_operand.vmem [shape: bf16[4,128,32], index: 1, kind: input, shape index: {}]
  %s2 = inlined_call_operand.vmem [shape: bf16[4,128,32], index: 2, kind: input, shape index: {}]
  %s3 = inlined_call_operand.vmem [shape: bf16[4,128,32], index: 3, kind: input, shape index: {}]
  %s4 = inlined_call_operand.vmem [shape: bf16[4,32,128], index: 4, kind: input, shape index: {}]
  %s5 = inlined_call_operand.vmem [shape: f32[1,128], index: 5, kind: input, shape index: {}]
  %s6 = inlined_call_operand.hbm [shape: f32[2,128,128], index: 6, kind: output, shape index: {}]
  %s7 = sld [smem:[#allocation0]]
  $region57: #{tpu_custom_call.1} parent=0
    _
  %s9 = ssub.s32 1, %s7
  %s10 = scalar_select 0, %s9, %s7
  $region1: #{tpu_custom_call.1} parent=0
    #allocation2 [shape = 'u8[131072]{0}', space=vmem, size = 0x20000, scoped, tag = 'output window, operand 0']
    #allocation3 [shape = 's32[2]{0}', space=sflag, size = 0x8, scoped, tag = 'scoped memory for tpu_custom_call.1']
    %11 = vsyncpa [#allocation3], 0
    %s12 = scalar_lea.sflag [#allocation3], 1
    %13 = vsyncpa %s12, 0
    loop: start=0, step=1, limit=4
    $region2: #{tpu_custom_call.1} parent=1 // loop_pre_header
      _
    $region3: #{tpu_custom_call.1} parent=1 // loop_header
      %s15 = sphi 0, %s19
      %p16 = scmp.ge.s32.totalorder %s15, 4
      %s25 = sphi 0, %s27
      %s28 = sphi 0, %s25
      %s29 = sphi 0, %s28
      %s45 = sphi 0, %s29
      %s49 = sphi 0, %s49
      %s51 = sphi 0, %s49
      %s52 = sphi 0, %s51
      %s66 = sphi 0, %s52
      %s70 = sphi 0, %s70
      %s72 = sphi 0, %s70
      %s73 = sphi 0, %s72
      %s87 = sphi 0, %s73
      %s91 = sphi 0, %s91
      %s93 = sphi 0, %s91
      %s94 = sphi 0, %s93
      %s108 = sphi 0, %s94
      %s112 = sphi 0, %s112
      %s114 = sphi 0, %s112
      %s115 = sphi 0, %s114
      %s129 = sphi 0, %s115
      %s133 = sphi 0, %s133
      %s135 = sphi 0, %s133
      %s136 = sphi 0, %s135
      %s150 = sphi 0, %s136
      %s156 = sphi 0, %s158
      %s159 = sphi 0, %s156
      %s160 = sphi 0, %s159
      %s176 = sphi 0, %s160
    $region4: #{tpu_custom_call.1} parent=1 // loop_header_branch
      %18 = sbr.rel (%p16) target = $region8
    $region5: #{tpu_custom_call.1} parent=1 // loop_body
      %s20 = ssub.s32 %s15, 1
      %s21 = ssub.s32 %s15, 2
      %s22 = sadd.s32 %s15, 1
      %s23 = ssub.s32 %s15, %s22
      %p24 = scmp.eq.s32.totalorder %s23, 0
      %s26 = sadd.s32 %s25, 1
      %s27 = scalar_select %p24, %s25, %s26
      %p30 = pneg %p24
      %p31 = scmp.eq.s32.totalorder %s15, 1
      %p32 = por %p30, %p31
      %p33 = scmp.ne.s32.totalorder %s25, %s28
      %p34 = scmp.eq.s32.totalorder %s15, 0
      %p35 = por %p33, %p34
      %p36 = scmp.ne.s32.totalorder %s25, %s28
      %p37 = scmp.eq.s32.totalorder %s20, 1
      %p38 = por %p36, %p37
      %p39 = scmp.ne.s32.totalorder %s28, %s29
      %p40 = scmp.eq.s32.totalorder %s20, 0
      %p41 = por %p39, %p40
      %p42 = scmp.ne.s32.totalorder %s28, %s29
      %p43 = scmp.eq.s32.totalorder %s21, 1
      %p44 = por %p42, %p43
      %p46 = scmp.ne.s32.totalorder %s29, %s45
      %p47 = scmp.eq.s32.totalorder %s21, 0
      %p48 = por %p46, %p47
      %s50 = sadd.s32 %s49, 1
      %p53 = scmp.eq.s32.totalorder %s15, 1
      %p54 = scmp.ne.s32.totalorder %s49, %s51
      %p55 = scmp.eq.s32.totalorder %s15, 0
      %p56 = por %p54, %p55
      %p57 = scmp.ne.s32.totalorder %s49, %s51
      %p58 = scmp.eq.s32.totalorder %s20, 1
      %p59 = por %p57, %p58
      %p60 = scmp.ne.s32.totalorder %s51, %s52
      %p61 = scmp.eq.s32.totalorder %s20, 0
      %p62 = por %p60, %p61
      %p63 = scmp.ne.s32.totalorder %s51, %s52
      %p64 = scmp.eq.s32.totalorder %s21, 1
      %p65 = por %p63, %p64
      %p67 = scmp.ne.s32.totalorder %s52, %s66
      %p68 = scmp.eq.s32.totalorder %s21, 0
      %p69 = por %p67, %p68
      %s71 = sadd.s32 %s70, 1
      %p74 = scmp.eq.s32.totalorder %s15, 1
      %p75 = scmp.ne.s32.totalorder %s70, %s72
      %p76 = scmp.eq.s32.totalorder %s15, 0
      %p77 = por %p75, %p76
      %p78 = scmp.ne.s32.totalorder %s70, %s72
      %p79 = scmp.eq.s32.totalorder %s20, 1
      %p80 = por %p78, %p79
      %p81 = scmp.ne.s32.totalorder %s72, %s73
      %p82 = scmp.eq.s32.totalorder %s20, 0
      %p83 = por %p81, %p82
      %p84 = scmp.ne.s32.totalorder %s72, %s73
      %p85 = scmp.eq.s32.totalorder %s21, 1
      %p86 = por %p84, %p85
      %p88 = scmp.ne.s32.totalorder %s73, %s87
      %p89 = scmp.eq.s32.totalorder %s21, 0
      %p90 = por %p88, %p89
      %s92 = sadd.s32 %s91, 1
      %p95 = scmp.eq.s32.totalorder %s15, 1
      %p96 = scmp.ne.s32.totalorder %s91, %s93
      %p97 = scmp.eq.s32.totalorder %s15, 0
      %p98 = por %p96, %p97
      %p99 = scmp.ne.s32.totalorder %s91, %s93
      %p100 = scmp.eq.s32.totalorder %s20, 1
      %p101 = por %p99, %p100
      %p102 = scmp.ne.s32.totalorder %s93, %s94
      %p103 = scmp.eq.s32.totalorder %s20, 0
      %p104 = por %p102, %p103
      %p105 = scmp.ne.s32.totalorder %s93, %s94
      %p106 = scmp.eq.s32.totalorder %s21, 1
      %p107 = por %p105, %p106
      %p109 = scmp.ne.s32.totalorder %s94, %s108
      %p110 = scmp.eq.s32.totalorder %s21, 0
      %p111 = por %p109, %p110
      %s113 = sadd.s32 %s112, 1
      %p116 = scmp.eq.s32.totalorder %s15, 1
      %p117 = scmp.ne.s32.totalorder %s112, %s114
      %p118 = scmp.eq.s32.totalorder %s15, 0
      %p119 = por %p117, %p118
      %p120 = scmp.ne.s32.totalorder %s112, %s114
      %p121 = scmp.eq.s32.totalorder %s20, 1
      %p122 = por %p120, %p121
      %p123 = scmp.ne.s32.totalorder %s114, %s115
      %p124 = scmp.eq.s32.totalorder %s20, 0
      %p125 = por %p123, %p124
      %p126 = scmp.ne.s32.totalorder %s114, %s115
      %p127 = scmp.eq.s32.totalorder %s21, 1
      %p128 = por %p126, %p127
      %p130 = scmp.ne.s32.totalorder %s115, %s129
      %p131 = scmp.eq.s32.totalorder %s21, 0
      %p132 = por %p130, %p131
      %s134 = sadd.s32 %s133, 1
      %p137 = scmp.eq.s32.totalorder %s15, 1
      %p138 = scmp.ne.s32.totalorder %s133, %s135
      %p139 = scmp.eq.s32.totalorder %s15, 0
      %p140 = por %p138, %p139
      %p141 = scmp.ne.s32.totalorder %s133, %s135
      %p142 = scmp.eq.s32.totalorder %s20, 1
      %p143 = por %p141, %p142
      %p144 = scmp.ne.s32.totalorder %s135, %s136
      %p145 = scmp.eq.s32.totalorder %s20, 0
      %p146 = por %p144, %p145
      %p147 = scmp.ne.s32.totalorder %s135, %s136
      %p148 = scmp.eq.s32.totalorder %s21, 1
      %p149 = por %p147, %p148
      %p151 = scmp.ne.s32.totalorder %s136, %s150
      %p152 = scmp.eq.s32.totalorder %s21, 0
      %p153 = por %p151, %p152
      %s154 = ssub.s32 %s15, %s22
      %p155 = scmp.eq.s32.totalorder %s154, 0
      %s157 = sadd.s32 %s156, 1
      %s158 = scalar_select %p155, %s156, %s157
      %p161 = pneg %p155
      %p162 = scmp.eq.s32.totalorder %s15, 1
      %p163 = por %p161, %p162
      %p164 = scmp.ne.s32.totalorder %s156, %s159
      %p165 = scmp.eq.s32.totalorder %s15, 0
      %p166 = por %p164, %p165
      %p167 = scmp.ne.s32.totalorder %s156, %s159
      %p168 = scmp.eq.s32.totalorder %s20, 1
      %p169 = por %p167, %p168
      %p170 = scmp.ne.s32.totalorder %s159, %s160
      %p171 = scmp.eq.s32.totalorder %s20, 0
      %p172 = por %p170, %p171
      %p173 = scmp.ne.s32.totalorder %s159, %s160
      %p174 = scmp.eq.s32.totalorder %s21, 1
      %p175 = por %p173, %p174
      %p177 = scmp.ne.s32.totalorder %s160, %s176
      %p178 = scmp.eq.s32.totalorder %s21, 0
      %p179 = por %p177, %p178
      %p180 = scmp.le.s32.totalorder 1, %s15
      %p181 = scmp.lt.s32.totalorder %s15, 3
      %p182 = pnand %p180, %p181
      %p183 = pneg %p182
      // Predicated region
      $region9: #{tpu_custom_call.1} parent=5 // pred_check
        _
      $region10: #{tpu_custom_call.1} parent=5 // pred_check_branch
        %185 = sbr.rel (%p182) target = $region12
      $region11: #{tpu_custom_call.1} parent=5 // pred_region
        %s186 = ssub.s32 %s15, 1
        // Predicated region
        $region13: #{tpu_custom_call.1} parent=11 // pred_check
          %p187 = pneg %p62
        $region14: #{tpu_custom_call.1} parent=11 // pred_check_branch
          %189 = sbr.rel (%p187) target = $region16
        $region15: #{tpu_custom_call.1} parent=11 // pred_region
          _
        $region16: #{tpu_custom_call.1} parent=11 // pred_fallthru
          _
        // Predicated region
        $region17: #{tpu_custom_call.1} parent=11 // pred_check
          %p190 = pneg %p83
        $region18: #{tpu_custom_call.1} parent=11 // pred_check_branch
          %192 = sbr.rel (%p190) target = $region20
        $region19: #{tpu_custom_call.1} parent=11 // pred_region
          _
        $region20: #{tpu_custom_call.1} parent=11 // pred_fallthru
          _
        // Predicated region
        $region21: #{tpu_custom_call.1} parent=11 // pred_check
          %p193 = pneg %p104
        $region22: #{tpu_custom_call.1} parent=11 // pred_check_branch
          %195 = sbr.rel (%p193) target = $region24
        $region23: #{tpu_custom_call.1} parent=11 // pred_region
          _
        $region24: #{tpu_custom_call.1} parent=11 // pred_fallthru
          _
        // Predicated region
        $region25: #{tpu_custom_call.1} parent=11 // pred_check
          %p196 = pneg %p125
        $region26: #{tpu_custom_call.1} parent=11 // pred_check_branch
          %198 = sbr.rel (%p196) target = $region28
        $region27: #{tpu_custom_call.1} parent=11 // pred_region
          _
        $region28: #{tpu_custom_call.1} parent=11 // pred_fallthru
          _
        // Predicated region
        $region29: #{tpu_custom_call.1} parent=11 // pred_check
          %p199 = pneg %p146
        $region30: #{tpu_custom_call.1} parent=11 // pred_check_branch
          %201 = sbr.rel (%p199) target = $region32
        $region31: #{tpu_custom_call.1} parent=11 // pred_region
          _
        $region32: #{tpu_custom_call.1} parent=11 // pred_fallthru
          _
      $region12: #{tpu_custom_call.1} parent=5 // pred_fallthru
        _
      %p202 = scmp.lt.s32.totalorder %s15, 2
      // Predicated region
      $region33: #{tpu_custom_call.1} parent=5 // pred_check
        %p203 = pneg %p202
      $region34: #{tpu_custom_call.1} parent=5 // pred_check_branch
        %205 = sbr.rel (%p203) target = $region36
      $region35: #{tpu_custom_call.1} parent=5 // pred_region
        // Predicated region
        $region37: #{tpu_custom_call.1} parent=35 // pred_check
          %p206 = pneg %p35
        $region38: #{tpu_custom_call.1} parent=35 // pred_check_branch
          %208 = sbr.rel (%p206) target = $region40
        $region39: #{tpu_custom_call.1} parent=35 // pred_region
          %p209 = scmp.lt.s32.totalorder %s15, 1
          %s210 = scalar_select %p209, %s15, 1
          %s211 = smul.addr %s210, 16
          %s212 = smul.addr %s211, 8
          %s213 = scalar_lea.vmem %s0, %s212
        $region40: #{tpu_custom_call.1} parent=35 // pred_fallthru
          _
      $region36: #{tpu_custom_call.1} parent=5 // pred_fallthru
        _
      %p214 = scmp.le.s32.totalorder 1, %s15
      %p215 = scmp.lt.s32.totalorder %s15, 3
      %p216 = pnand %p214, %p215
      %p217 = pneg %p216
      // Predicated region
      $region41: #{tpu_custom_call.1} parent=5 // pred_check
        _
      $region42: #{tpu_custom_call.1} parent=5 // pred_check_branch
        %219 = sbr.rel (%p216) target = $region44
      $region43: #{tpu_custom_call.1} parent=5 // pred_region
        %s220 = ssub.s32 %s15, 1
        %p221 = scmp.lt.s32.totalorder %s20, 1
        %s222 = scalar_select %p221, %s20, 1
        %s223 = smul.addr %s222, 16
        %s224 = smul.addr %s223, 8
        %s225 = scalar_lea.vmem %s0, %s224
        %p226 = pneg %p41
        %p227 = pneg %p38
        %p228 = pneg %p62
        %p229 = pneg %p59
        %p230 = pneg %p83
        %p231 = pneg %p80
        %p232 = pneg %p104
        %p233 = pneg %p101
        %p234 = pneg %p125
        %p235 = pneg %p122
        %p236 = pneg %p146
        %p237 = pneg %p143
        %p238 = pneg %p172
        %p239 = pneg %p169
        %s240 = sand.u32 %s159, 1
        %s241 = scalar_lea.sflag [#allocation3], %s240
        %s242 = sand.u32 %s159, 1
        %s243 = smul.addr %s242, 128
        %s244 = scalar_lea.vmem [#allocation2], %s243
        %p245 = scmp.lt.s32.totalorder %s20, 1
        %s246 = scalar_select %p245, %s20, 1
        %s247 = smul.addr %s246, 16
        %s248 = smul.addr %s247, 8
        %s249 = scalar_lea.vmem %s0, %s248
        %v251 = vld [vmem:[%s249] sm:$0xff]
        %v252 = vld [vmem:[%s249 + $0x8] sm:$0xff]
        %v253 = vld [vmem:[%s249 + $0x10] sm:$0xff]
        %v254 = vld [vmem:[%s249 + $0x18] sm:$0xff]
        %v255 = vld [vmem:[%s249 + $0x20] sm:$0xff]
        %v256 = vld [vmem:[%s249 + $0x28] sm:$0xff]
        %v257 = vld [vmem:[%s249 + $0x30] sm:$0xff]
        %v258 = vld [vmem:[%s249 + $0x38] sm:$0xff]
        %v259 = vld [vmem:[%s249 + $0x40] sm:$0xff]
        %v260 = vld [vmem:[%s249 + $0x48] sm:$0xff]
        %v261 = vld [vmem:[%s249 + $0x50] sm:$0xff]
        %v262 = vld [vmem:[%s249 + $0x58] sm:$0xff]
        %v263 = vld [vmem:[%s249 + $0x60] sm:$0xff]
        %v264 = vld [vmem:[%s249 + $0x68] sm:$0xff]
        %v265 = vld [vmem:[%s249 + $0x70] sm:$0xff]
        %v266 = vld [vmem:[%s249 + $0x78] sm:$0xff]
        %v267 = vpack.c.bf16 %v252, %v251
        %v268 = vpack.c.bf16 %v254, %v253
        %v269 = vpack.c.bf16 %v256, %v255
        %v270 = vpack.c.bf16 %v258, %v257
        %v271 = vpack.c.bf16 %v260, %v259
        %v272 = vpack.c.bf16 %v262, %v261
        %v273 = vpack.c.bf16 %v264, %v263
        %v274 = vpack.c.bf16 %v266, %v265
        %v275 = vld [vmem:[%s1] sm:$0xf]
        %v276 = vld [vmem:[%s1 + $0x4] sm:$0xf]
        %v277 = vld [vmem:[%s1 + $0x8] sm:$0xf]
        %v278 = vld [vmem:[%s1 + $0xc] sm:$0xf]
        %v279 = vld [vmem:[%s1 + $0x10] sm:$0xf]
        %v280 = vld [vmem:[%s1 + $0x14] sm:$0xf]
        %v281 = vld [vmem:[%s1 + $0x18] sm:$0xf]
        %v282 = vld [vmem:[%s1 + $0x1c] sm:$0xf]
        %v283 = vld [vmem:[%s1 + $0x20] sm:$0xf]
        %v284 = vld [vmem:[%s1 + $0x24] sm:$0xf]
        %v285 = vld [vmem:[%s1 + $0x28] sm:$0xf]
        %v286 = vld [vmem:[%s1 + $0x2c] sm:$0xf]
        %v287 = vld [vmem:[%s1 + $0x30] sm:$0xf]
        %v288 = vld [vmem:[%s1 + $0x34] sm:$0xf]
        %v289 = vld [vmem:[%s1 + $0x38] sm:$0xf]
        %v290 = vld [vmem:[%s1 + $0x3c] sm:$0xf]
        %v307 = vunpack.c.l.b16 %v275
        %v308 = vunpack.c.l.b16 %v276
        %v309 = vunpack.c.l.b16 %v277
        %v310 = vunpack.c.l.b16 %v278
        %v311 = vunpack.c.l.b16 %v279
        %v312 = vunpack.c.l.b16 %v280
        %v313 = vunpack.c.l.b16 %v281
        %v314 = vunpack.c.l.b16 %v282
        %v315 = vunpack.c.l.b16 %v283
        %v316 = vunpack.c.l.b16 %v284
        %v317 = vunpack.c.l.b16 %v285
        %v318 = vunpack.c.l.b16 %v286
        %v319 = vunpack.c.l.b16 %v287
        %v320 = vunpack.c.l.b16 %v288
        %v321 = vunpack.c.l.b16 %v289
        %v322 = vunpack.c.l.b16 %v290
        %v323 = vpack.c.b16 %v308, %v307
        %v324 = vpack.c.b16 %v310, %v309
        %v325 = vpack.c.b16 %v312, %v311
        %v326 = vpack.c.b16 %v314, %v313
        %v327 = vpack.c.b16 %v316, %v315
        %v328 = vpack.c.b16 %v318, %v317
        %v329 = vpack.c.b16 %v320, %v319
        %v330 = vpack.c.b16 %v322, %v321
        %339 = vmatpush.bf16.msra.mxu0 %v330
        %340 = vmatpush.bf16.msra.mxu0 %v329
        %341 = vmatpush.bf16.msra.mxu0 %v328
        %342 = vmatpush.bf16.msra.mxu0 %v327
        %343 = vmatpush.bf16.msra.mxu0 %v326
        %344 = vmatpush.bf16.msra.mxu0 %v325
        %345 = vmatpush.bf16.msra.mxu0 %v324
        %346 = vmatpush.bf16.msra.mxu0 %v323
        %347 = vmatmul.bf16.gmra.mxu0 %v267
        %v348 = vpop.f32.mrf.mxu0
        %v349 = vadd.f32 0.0, %v348
        %v350 = vpop.f32.mrf.mxu0
        %v351 = vadd.f32 0.0, %v350
        %352 = vmatmul.bf16.gmra.mxu0 %v268
        %v353 = vpop.f32.mrf.mxu0
        %v354 = vadd.f32 0.0, %v353
        %v355 = vpop.f32.mrf.mxu0
        %v356 = vadd.f32 0.0, %v355
        %357 = vmatmul.bf16.gmra.mxu0 %v269
        %v358 = vpop.f32.mrf.mxu0
        %v359 = vadd.f32 0.0, %v358
        %v360 = vpop.f32.mrf.mxu0
        %v361 = vadd.f32 0.0, %v360
        %362 = vmatmul.bf16.gmra.mxu0 %v270
        %v363 = vpop.f32.mrf.mxu0
        %v364 = vadd.f32 0.0, %v363
        %v365 = vpop.f32.mrf.mxu0
        %v366 = vadd.f32 0.0, %v365
        %367 = vmatmul.bf16.gmra.mxu0 %v271
        %v368 = vpop.f32.mrf.mxu0
        %v369 = vadd.f32 0.0, %v368
        %v370 = vpop.f32.mrf.mxu0
        %v371 = vadd.f32 0.0, %v370
        %372 = vmatmul.bf16.gmra.mxu0 %v272
        %v373 = vpop.f32.mrf.mxu0
        %v374 = vadd.f32 0.0, %v373
        %v375 = vpop.f32.mrf.mxu0
        %v376 = vadd.f32 0.0, %v375
        %377 = vmatmul.bf16.gmra.mxu0 %v273
        %v378 = vpop.f32.mrf.mxu0
        %v379 = vadd.f32 0.0, %v378
        %v380 = vpop.f32.mrf.mxu0
        %v381 = vadd.f32 0.0, %v380
        %382 = vmatmul.bf16.gmra.mxu0 %v274
        %v383 = vpop.f32.mrf.mxu0
        %v384 = vadd.f32 0.0, %v383
        %v385 = vpop.f32.mrf.mxu0
        %v386 = vadd.f32 0.0, %v385
        %387 = vdwg.mxu0
        %v388 = vld [vmem:[%s2] sm:$0xf]
        %v389 = vld [vmem:[%s2 + $0x4] sm:$0xf]
        %v390 = vld [vmem:[%s2 + $0x8] sm:$0xf]
        %v391 = vld [vmem:[%s2 + $0xc] sm:$0xf]
        %v392 = vld [vmem:[%s2 + $0x10] sm:$0xf]
        %v393 = vld [vmem:[%s2 + $0x14] sm:$0xf]
        %v394 = vld [vmem:[%s2 + $0x18] sm:$0xf]
        %v395 = vld [vmem:[%s2 + $0x1c] sm:$0xf]
        %v396 = vld [vmem:[%s2 + $0x20] sm:$0xf]
        %v397 = vld [vmem:[%s2 + $0x24] sm:$0xf]
        %v398 = vld [vmem:[%s2 + $0x28] sm:$0xf]
        %v399 = vld [vmem:[%s2 + $0x2c] sm:$0xf]
        %v400 = vld [vmem:[%s2 + $0x30] sm:$0xf]
        %v401 = vld [vmem:[%s2 + $0x34] sm:$0xf]
        %v402 = vld [vmem:[%s2 + $0x38] sm:$0xf]
        %v403 = vld [vmem:[%s2 + $0x3c] sm:$0xf]
        %v420 = vunpack.c.l.b16 %v388
        %v421 = vunpack.c.l.b16 %v389
        %v422 = vunpack.c.l.b16 %v390
        %v423 = vunpack.c.l.b16 %v391
        %v424 = vunpack.c.l.b16 %v392
        %v425 = vunpack.c.l.b16 %v393
        %v426 = vunpack.c.l.b16 %v394
        %v427 = vunpack.c.l.b16 %v395
        %v428 = vunpack.c.l.b16 %v396
        %v429 = vunpack.c.l.b16 %v397
        %v430 = vunpack.c.l.b16 %v398
        %v431 = vunpack.c.l.b16 %v399
        %v432 = vunpack.c.l.b16 %v400
        %v433 = vunpack.c.l.b16 %v401
        %v434 = vunpack.c.l.b16 %v402
        %v435 = vunpack.c.l.b16 %v403
        %v436 = vpack.c.b16 %v421, %v420
        %v437 = vpack.c.b16 %v423, %v422
        %v438 = vpack.c.b16 %v425, %v424
        %v439 = vpack.c.b16 %v427, %v426
        %v440 = vpack.c.b16 %v429, %v428
        %v441 = vpack.c.b16 %v431, %v430
        %v442 = vpack.c.b16 %v433, %v432
        %v443 = vpack.c.b16 %v435, %v434
        %452 = vmatpush.bf16.msra.mxu0 %v443
        %453 = vmatpush.bf16.msra.mxu0 %v442
        %454 = vmatpush.bf16.msra.mxu0 %v441
        %455 = vmatpush.bf16.msra.mxu0 %v440
        %456 = vmatpush.bf16.msra.mxu0 %v439
        %457 = vmatpush.bf16.msra.mxu0 %v438
        %458 = vmatpush.bf16.msra.mxu0 %v437
        %459 = vmatpush.bf16.msra.mxu0 %v436
        %460 = vmatmul.bf16.gmra.mxu0 %v267
        %v461 = vpop.f32.mrf.mxu0
        %v462 = vadd.f32 0.0, %v461
        %v463 = vpop.f32.mrf.mxu0
        %v464 = vadd.f32 0.0, %v463
        %465 = vmatmul.bf16.gmra.mxu0 %v268
        %v466 = vpop.f32.mrf.mxu0
        %v467 = vadd.f32 0.0, %v466
        %v468 = vpop.f32.mrf.mxu0
        %v469 = vadd.f32 0.0, %v468
        %470 = vmatmul.bf16.gmra.mxu0 %v269
        %v471 = vpop.f32.mrf.mxu0
        %v472 = vadd.f32 0.0, %v471
        %v473 = vpop.f32.mrf.mxu0
        %v474 = vadd.f32 0.0, %v473
        %475 = vmatmul.bf16.gmra.mxu0 %v270
        %v476 = vpop.f32.mrf.mxu0
        %v477 = vadd.f32 0.0, %v476
        %v478 = vpop.f32.mrf.mxu0
        %v479 = vadd.f32 0.0, %v478
        %480 = vmatmul.bf16.gmra.mxu0 %v271
        %v481 = vpop.f32.mrf.mxu0
        %v482 = vadd.f32 0.0, %v481
        %v483 = vpop.f32.mrf.mxu0
        %v484 = vadd.f32 0.0, %v483
        %485 = vmatmul.bf16.gmra.mxu0 %v272
        %v486 = vpop.f32.mrf.mxu0
        %v487 = vadd.f32 0.0, %v486
        %v488 = vpop.f32.mrf.mxu0
        %v489 = vadd.f32 0.0, %v488
        %490 = vmatmul.bf16.gmra.mxu0 %v273
        %v491 = vpop.f32.mrf.mxu0
        %v492 = vadd.f32 0.0, %v491
        %v493 = vpop.f32.mrf.mxu0
        %v494 = vadd.f32 0.0, %v493
        %495 = vmatmul.bf16.gmra.mxu0 %v274
        %v496 = vpop.f32.mrf.mxu0
        %v497 = vadd.f32 0.0, %v496
        %v498 = vpop.f32.mrf.mxu0
        %v499 = vadd.f32 0.0, %v498
        %500 = vdwg.mxu0
        %v501 = vld [vmem:[%s3] sm:$0xf]
        %v502 = vld [vmem:[%s3 + $0x4] sm:$0xf]
        %v503 = vld [vmem:[%s3 + $0x8] sm:$0xf]
        %v504 = vld [vmem:[%s3 + $0xc] sm:$0xf]
        %v505 = vld [vmem:[%s3 + $0x10] sm:$0xf]
        %v506 = vld [vmem:[%s3 + $0x14] sm:$0xf]
        %v507 = vld [vmem:[%s3 + $0x18] sm:$0xf]
        %v508 = vld [vmem:[%s3 + $0x1c] sm:$0xf]
        %v509 = vld [vmem:[%s3 + $0x20] sm:$0xf]
        %v510 = vld [vmem:[%s3 + $0x24] sm:$0xf]
        %v511 = vld [vmem:[%s3 + $0x28] sm:$0xf]
        %v512 = vld [vmem:[%s3 + $0x2c] sm:$0xf]
        %v513 = vld [vmem:[%s3 + $0x30] sm:$0xf]
        %v514 = vld [vmem:[%s3 + $0x34] sm:$0xf]
        %v515 = vld [vmem:[%s3 + $0x38] sm:$0xf]
        %v516 = vld [vmem:[%s3 + $0x3c] sm:$0xf]
        %v533 = vunpack.c.l.b16 %v501
        %v534 = vunpack.c.l.b16 %v502
        %v535 = vunpack.c.l.b16 %v503
        %v536 = vunpack.c.l.b16 %v504
        %v537 = vunpack.c.l.b16 %v505
        %v538 = vunpack.c.l.b16 %v506
        %v539 = vunpack.c.l.b16 %v507
        %v540 = vunpack.c.l.b16 %v508
        %v541 = vunpack.c.l.b16 %v509
        %v542 = vunpack.c.l.b16 %v510
        %v543 = vunpack.c.l.b16 %v511
        %v544 = vunpack.c.l.b16 %v512
        %v545 = vunpack.c.l.b16 %v513
        %v546 = vunpack.c.l.b16 %v514
        %v547 = vunpack.c.l.b16 %v515
        %v548 = vunpack.c.l.b16 %v516
        %v549 = vpack.c.b16 %v534, %v533
        %v550 = vpack.c.b16 %v536, %v535
        %v551 = vpack.c.b16 %v538, %v537
        %v552 = vpack.c.b16 %v540, %v539
        %v553 = vpack.c.b16 %v542, %v541
        %v554 = vpack.c.b16 %v544, %v543
        %v555 = vpack.c.b16 %v546, %v545
        %v556 = vpack.c.b16 %v548, %v547
        %565 = vmatpush.bf16.msra.mxu0 %v556
        %566 = vmatpush.bf16.msra.mxu0 %v555
        %567 = vmatpush.bf16.msra.mxu0 %v554
        %568 = vmatpush.bf16.msra.mxu0 %v553
        %569 = vmatpush.bf16.msra.mxu0 %v552
        %570 = vmatpush.bf16.msra.mxu0 %v551
        %571 = vmatpush.bf16.msra.mxu0 %v550
        %572 = vmatpush.bf16.msra.mxu0 %v549
        %573 = vmatmul.bf16.gmra.mxu0 %v267
        %v574 = vpop.f32.mrf.mxu0
        %v575 = vadd.f32 0.0, %v574
        %v576 = vpop.f32.mrf.mxu0
        %v577 = vadd.f32 0.0, %v576
        %578 = vmatmul.bf16.gmra.mxu0 %v268
        %v579 = vpop.f32.mrf.mxu0
        %v580 = vadd.f32 0.0, %v579
        %v581 = vpop.f32.mrf.mxu0
        %v582 = vadd.f32 0.0, %v581
        %583 = vmatmul.bf16.gmra.mxu0 %v269
        %v584 = vpop.f32.mrf.mxu0
        %v585 = vadd.f32 0.0, %v584
        %v586 = vpop.f32.mrf.mxu0
        %v587 = vadd.f32 0.0, %v586
        %588 = vmatmul.bf16.gmra.mxu0 %v270
        %v589 = vpop.f32.mrf.mxu0
        %v590 = vadd.f32 0.0, %v589
        %v591 = vpop.f32.mrf.mxu0
        %v592 = vadd.f32 0.0, %v591
        %593 = vmatmul.bf16.gmra.mxu0 %v271
        %v594 = vpop.f32.mrf.mxu0
        %v595 = vadd.f32 0.0, %v594
        %v596 = vpop.f32.mrf.mxu0
        %v597 = vadd.f32 0.0, %v596
        %598 = vmatmul.bf16.gmra.mxu0 %v272
        %v599 = vpop.f32.mrf.mxu0
        %v600 = vadd.f32 0.0, %v599
        %v601 = vpop.f32.mrf.mxu0
        %v602 = vadd.f32 0.0, %v601
        %603 = vmatmul.bf16.gmra.mxu0 %v273
        %v604 = vpop.f32.mrf.mxu0
        %v605 = vadd.f32 0.0, %v604
        %v606 = vpop.f32.mrf.mxu0
        %v607 = vadd.f32 0.0, %v606
        %608 = vmatmul.bf16.gmra.mxu0 %v274
        %v609 = vpop.f32.mrf.mxu0
        %v610 = vadd.f32 0.0, %v609
        %v611 = vpop.f32.mrf.mxu0
        %v612 = vadd.f32 0.0, %v611
        %613 = vdwg.mxu0
        %v614 = vpack.c.bf16 %v351, %v349
        %v615 = vpack.c.bf16 %v356, %v354
        %v616 = vpack.c.bf16 %v361, %v359
        %v617 = vpack.c.bf16 %v366, %v364
        %v618 = vpack.c.bf16 %v371, %v369
        %v619 = vpack.c.bf16 %v376, %v374
        %v620 = vpack.c.bf16 %v381, %v379
        %v621 = vpack.c.bf16 %v386, %v384
        %v622 = vpack.c.bf16 %v464, %v462
        %v623 = vpack.c.bf16 %v469, %v467
        %v624 = vpack.c.bf16 %v474, %v472
        %v625 = vpack.c.bf16 %v479, %v477
        %v626 = vpack.c.bf16 %v484, %v482
        %v627 = vpack.c.bf16 %v489, %v487
        %v628 = vpack.c.bf16 %v494, %v492
        %v629 = vpack.c.bf16 %v499, %v497
        %vm630 = vcmask 261120
        %v632 = vsel %vm630, %v614, 0
        %v635 = vsel %vm630, %v615, 0
        %v638 = vsel %vm630, %v616, 0
        %v641 = vsel %vm630, %v617, 0
        %v644 = vsel %vm630, %v618, 0
        %v647 = vsel %vm630, %v619, 0
        %v650 = vsel %vm630, %v620, 0
        %v653 = vsel %vm630, %v621, 0
        %v656 = vsel %vm630, %v622, 0
        %v659 = vsel %vm630, %v623, 0
        %v662 = vsel %vm630, %v624, 0
        %v665 = vsel %vm630, %v625, 0
        %v668 = vsel %vm630, %v626, 0
        %v671 = vsel %vm630, %v627, 0
        %v674 = vsel %vm630, %v628, 0
        %v677 = vsel %vm630, %v629, 0
        %679 = vmatpush.bf16.xpose.msra.mxu0 %v677
        %680 = vmatpush.bf16.xpose.msra.mxu0 %v674
        %681 = vmatpush.bf16.xpose.msra.mxu0 %v671
        %682 = vmatpush.bf16.xpose.msra.mxu0 %v668
        %683 = vmatpush.bf16.xpose.msra.mxu0 %v665
        %684 = vmatpush.bf16.xpose.msra.mxu0 %v662
        %685 = vmatpush.bf16.xpose.msra.mxu0 %v659
        %686 = vmatpush.bf16.xpose.msra.mxu0 %v656
        %687 = vmatmul.bf16.gmra.mxu0 %v632
        %v688 = vpop.f32.mrf.mxu0
        %v689 = vadd.f32 0.0, %v688
        %v690 = vpop.f32.mrf.mxu0
        %v691 = vadd.f32 0.0, %v690
        %692 = vmatmul.bf16.gmra.mxu0 %v635
        %v693 = vpop.f32.mrf.mxu0
        %v694 = vadd.f32 0.0, %v693
        %v695 = vpop.f32.mrf.mxu0
        %v696 = vadd.f32 0.0, %v695
        %697 = vmatmul.bf16.gmra.mxu0 %v638
        %v698 = vpop.f32.mrf.mxu0
        %v699 = vadd.f32 0.0, %v698
        %v700 = vpop.f32.mrf.mxu0
        %v701 = vadd.f32 0.0, %v700
        %702 = vmatmul.bf16.gmra.mxu0 %v641
        %v703 = vpop.f32.mrf.mxu0
        %v704 = vadd.f32 0.0, %v703
        %v705 = vpop.f32.mrf.mxu0
        %v706 = vadd.f32 0.0, %v705
        %707 = vmatmul.bf16.gmra.mxu0 %v644
        %v708 = vpop.f32.mrf.mxu0
        %v709 = vadd.f32 0.0, %v708
        %v710 = vpop.f32.mrf.mxu0
        %v711 = vadd.f32 0.0, %v710
        %712 = vmatmul.bf16.gmra.mxu0 %v647
        %v713 = vpop.f32.mrf.mxu0
        %v714 = vadd.f32 0.0, %v713
        %v715 = vpop.f32.mrf.mxu0
        %v716 = vadd.f32 0.0, %v715
        %717 = vmatmul.bf16.gmra.mxu0 %v650
        %v718 = vpop.f32.mrf.mxu0
        %v719 = vadd.f32 0.0, %v718
        %v720 = vpop.f32.mrf.mxu0
        %v721 = vadd.f32 0.0, %v720
        %722 = vmatmul.bf16.gmra.mxu0 %v653
        %v723 = vpop.f32.mrf.mxu0
        %v724 = vadd.f32 0.0, %v723
        %v725 = vpop.f32.mrf.mxu0
        %v726 = vadd.f32 0.0, %v725
        %727 = vdwg.mxu0
        %v728 = vmul.f32 %v689, 0.17677669
        %v729 = vmul.f32 %v691, 0.17677669
        %v730 = vmul.f32 %v694, 0.17677669
        %v731 = vmul.f32 %v696, 0.17677669
        %v732 = vmul.f32 %v699, 0.17677669
        %v733 = vmul.f32 %v701, 0.17677669
        %v734 = vmul.f32 %v704, 0.17677669
        %v735 = vmul.f32 %v706, 0.17677669
        %v736 = vmul.f32 %v709, 0.17677669
        %v737 = vmul.f32 %v711, 0.17677669
        %v738 = vmul.f32 %v714, 0.17677669
        %v739 = vmul.f32 %v716, 0.17677669
        %v740 = vmul.f32 %v719, 0.17677669
        %v741 = vmul.f32 %v721, 0.17677669
        %v742 = vmul.f32 %v724, 0.17677669
        %v743 = vmul.f32 %v726, 0.17677669
        %744 = vmax.xlane.f32.xlu0 %v728
        %v745 = vpop.xlane.xlu0 %744
        %746 = vmax.xlane.f32.xlu0 %v729
        %v747 = vpop.xlane.xlu0 %746
        %748 = vmax.xlane.f32.xlu0 %v730
        %v749 = vpop.xlane.xlu0 %748
        %750 = vmax.xlane.f32.xlu0 %v731
        %v751 = vpop.xlane.xlu0 %750
        %752 = vmax.xlane.f32.xlu0 %v732
        %v753 = vpop.xlane.xlu0 %752
        %754 = vmax.xlane.f32.xlu0 %v733
        %v755 = vpop.xlane.xlu0 %754
        %756 = vmax.xlane.f32.xlu0 %v734
        %v757 = vpop.xlane.xlu0 %756
        %758 = vmax.xlane.f32.xlu0 %v735
        %v759 = vpop.xlane.xlu0 %758
        %760 = vmax.xlane.f32.xlu0 %v736
        %v761 = vpop.xlane.xlu0 %760
        %762 = vmax.xlane.f32.xlu0 %v737
        %v763 = vpop.xlane.xlu0 %762
        %764 = vmax.xlane.f32.xlu0 %v738
        %v765 = vpop.xlane.xlu0 %764
        %766 = vmax.xlane.f32.xlu0 %v739
        %v767 = vpop.xlane.xlu0 %766
        %768 = vmax.xlane.f32.xlu0 %v740
        %v769 = vpop.xlane.xlu0 %768
        %770 = vmax.xlane.f32.xlu0 %v741
        %v771 = vpop.xlane.xlu0 %770
        %772 = vmax.xlane.f32.xlu0 %v742
        %v773 = vpop.xlane.xlu0 %772
        %774 = vmax.xlane.f32.xlu0 %v743
        %v775 = vpop.xlane.xlu0 %774
        %v776 = vsub.f32 %v728, %v745
        %v777 = vsub.f32 %v729, %v747
        %v778 = vsub.f32 %v730, %v749
        %v779 = vsub.f32 %v731, %v751
        %v780 = vsub.f32 %v732, %v753
        %v781 = vsub.f32 %v733, %v755
        %v782 = vsub.f32 %v734, %v757
        %v783 = vsub.f32 %v735, %v759
        %v784 = vsub.f32 %v736, %v761
        %v785 = vsub.f32 %v737, %v763
        %v786 = vsub.f32 %v738, %v765
        %v787 = vsub.f32 %v739, %v767
        %v788 = vsub.f32 %v740, %v769
        %v789 = vsub.f32 %v741, %v771
        %v790 = vsub.f32 %v742, %v773
        %v791 = vsub.f32 %v743, %v775
        %v792 = vmul.f32 %v776, 1.442695
        %v793 = vpow.pop %v792
        %v794 = vmul.f32 %v777, 1.442695
        %v795 = vpow.pop %v794
        %v796 = vmul.f32 %v778, 1.442695
        %v797 = vpow.pop %v796
        %v798 = vmul.f32 %v779, 1.442695
        %v799 = vpow.pop %v798
        %v800 = vmul.f32 %v780, 1.442695
        %v801 = vpow.pop %v800
        %v802 = vmul.f32 %v781, 1.442695
        %v803 = vpow.pop %v802
        %v804 = vmul.f32 %v782, 1.442695
        %v805 = vpow.pop %v804
        %v806 = vmul.f32 %v783, 1.442695
        %v807 = vpow.pop %v806
        %v808 = vmul.f32 %v784, 1.442695
        %v809 = vpow.pop %v808
        %v810 = vmul.f32 %v785, 1.442695
        %v811 = vpow.pop %v810
        %v812 = vmul.f32 %v786, 1.442695
        %v813 = vpow.pop %v812
        %v814 = vmul.f32 %v787, 1.442695
        %v815 = vpow.pop %v814
        %v816 = vmul.f32 %v788, 1.442695
        %v817 = vpow.pop %v816
        %v818 = vmul.f32 %v789, 1.442695
        %v819 = vpow.pop %v818
        %v820 = vmul.f32 %v790, 1.442695
        %v821 = vpow.pop %v820
        %v822 = vmul.f32 %v791, 1.442695
        %v823 = vpow.pop %v822
        %824 = vadd.xlane.f32.xlu0 %v793
        %v825 = vpop.xlane.xlu0 %824
        %826 = vadd.xlane.f32.xlu0 %v795
        %v827 = vpop.xlane.xlu0 %826
        %828 = vadd.xlane.f32.xlu0 %v797
        %v829 = vpop.xlane.xlu0 %828
        %830 = vadd.xlane.f32.xlu0 %v799
        %v831 = vpop.xlane.xlu0 %830
        %832 = vadd.xlane.f32.xlu0 %v801
        %v833 = vpop.xlane.xlu0 %832
        %834 = vadd.xlane.f32.xlu0 %v803
        %v835 = vpop.xlane.xlu0 %834
        %836 = vadd.xlane.f32.xlu0 %v805
        %v837 = vpop.xlane.xlu0 %836
        %838 = vadd.xlane.f32.xlu0 %v807
        %v839 = vpop.xlane.xlu0 %838
        %840 = vadd.xlane.f32.xlu0 %v809
        %v841 = vpop.xlane.xlu0 %840
        %842 = vadd.xlane.f32.xlu0 %v811
        %v843 = vpop.xlane.xlu0 %842
        %844 = vadd.xlane.f32.xlu0 %v813
        %v845 = vpop.xlane.xlu0 %844
        %846 = vadd.xlane.f32.xlu0 %v815
        %v847 = vpop.xlane.xlu0 %846
        %848 = vadd.xlane.f32.xlu0 %v817
        %v849 = vpop.xlane.xlu0 %848
        %850 = vadd.xlane.f32.xlu0 %v819
        %v851 = vpop.xlane.xlu0 %850
        %852 = vadd.xlane.f32.xlu0 %v821
        %v853 = vpop.xlane.xlu0 %852
        %854 = vadd.xlane.f32.xlu0 %v823
        %v855 = vpop.xlane.xlu0 %854
        %v856 = vrcp.pop %v825
        %v857 = vrcp.pop %v827
        %v858 = vrcp.pop %v829
        %v859 = vrcp.pop %v831
        %v860 = vrcp.pop %v833
        %v861 = vrcp.pop %v835
        %v862 = vrcp.pop %v837
        %v863 = vrcp.pop %v839
        %v864 = vrcp.pop %v841
        %v865 = vrcp.pop %v843
        %v866 = vrcp.pop %v845
        %v867 = vrcp.pop %v847
        %v868 = vrcp.pop %v849
        %v869 = vrcp.pop %v851
        %v870 = vrcp.pop %v853
        %v871 = vrcp.pop %v855
        %v872 = vmul.f32 %v793, %v856
        %v873 = vmul.f32 %v795, %v857
        %v874 = vmul.f32 %v797, %v858
        %v875 = vmul.f32 %v799, %v859
        %v876 = vmul.f32 %v801, %v860
        %v877 = vmul.f32 %v803, %v861
        %v878 = vmul.f32 %v805, %v862
        %v879 = vmul.f32 %v807, %v863
        %v880 = vmul.f32 %v809, %v864
        %v881 = vmul.f32 %v811, %v865
        %v882 = vmul.f32 %v813, %v866
        %v883 = vmul.f32 %v815, %v867
        %v884 = vmul.f32 %v817, %v868
        %v885 = vmul.f32 %v819, %v869
        %v886 = vmul.f32 %v821, %v870
        %v887 = vmul.f32 %v823, %v871
        %v888 = vpack.c.bf16 %v873, %v872
        %v889 = vpack.c.bf16 %v875, %v874
        %v890 = vpack.c.bf16 %v877, %v876
        %v891 = vpack.c.bf16 %v879, %v878
        %v892 = vpack.c.bf16 %v881, %v880
        %v893 = vpack.c.bf16 %v883, %v882
        %v894 = vpack.c.bf16 %v885, %v884
        %v895 = vpack.c.bf16 %v887, %v886
        %v896 = vpack.c.bf16 %v577, %v575
        %v897 = vpack.c.bf16 %v582, %v580
        %v898 = vpack.c.bf16 %v587, %v585
        %v899 = vpack.c.bf16 %v592, %v590
        %v900 = vpack.c.bf16 %v597, %v595
        %v901 = vpack.c.bf16 %v602, %v600
        %v902 = vpack.c.bf16 %v607, %v605
        %v903 = vpack.c.bf16 %v612, %v610
        %904 = vmatpush.bf16.msra.mxu0 %v903
        %905 = vmatpush.bf16.msra.mxu0 %v902
        %906 = vmatpush.bf16.msra.mxu0 %v901
        %907 = vmatpush.bf16.msra.mxu0 %v900
        %908 = vmatpush.bf16.msra.mxu0 %v899
        %909 = vmatpush.bf16.msra.mxu0 %v898
        %910 = vmatpush.bf16.msra.mxu0 %v897
        %911 = vmatpush.bf16.msra.mxu0 %v896
        %912 = vmatmul.bf16.gmra.mxu0 %v888
        %v913 = vpop.f32.mrf.mxu0
        %v914 = vadd.f32 0.0, %v913
        %v915 = vpop.f32.mrf.mxu0
        %v916 = vadd.f32 0.0, %v915
        %917 = vmatmul.bf16.gmra.mxu0 %v889
        %v918 = vpop.f32.mrf.mxu0
        %v919 = vadd.f32 0.0, %v918
        %v920 = vpop.f32.mrf.mxu0
        %v921 = vadd.f32 0.0, %v920
        %922 = vmatmul.bf16.gmra.mxu0 %v890
        %v923 = vpop.f32.mrf.mxu0
        %v924 = vadd.f32 0.0, %v923
        %v925 = vpop.f32.mrf.mxu0
        %v926 = vadd.f32 0.0, %v925
        %927 = vmatmul.bf16.gmra.mxu0 %v891
        %v928 = vpop.f32.mrf.mxu0
        %v929 = vadd.f32 0.0, %v928
        %v930 = vpop.f32.mrf.mxu0
        %v931 = vadd.f32 0.0, %v930
        %932 = vmatmul.bf16.gmra.mxu0 %v892
        %v933 = vpop.f32.mrf.mxu0
        %v934 = vadd.f32 0.0, %v933
        %v935 = vpop.f32.mrf.mxu0
        %v936 = vadd.f32 0.0, %v935
        %937 = vmatmul.bf16.gmra.mxu0 %v893
        %v938 = vpop.f32.mrf.mxu0
        %v939 = vadd.f32 0.0, %v938
        %v940 = vpop.f32.mrf.mxu0
        %v941 = vadd.f32 0.0, %v940
        %942 = vmatmul.bf16.gmra.mxu0 %v894
        %v943 = vpop.f32.mrf.mxu0
        %v944 = vadd.f32 0.0, %v943
        %v945 = vpop.f32.mrf.mxu0
        %v946 = vadd.f32 0.0, %v945
        %947 = vmatmul.bf16.gmra.mxu0 %v895
        %v948 = vpop.f32.mrf.mxu0
        %v949 = vadd.f32 0.0, %v948
        %v950 = vpop.f32.mrf.mxu0
        %v951 = vadd.f32 0.0, %v950
        %952 = vdwg.mxu0
        %v953 = vpack.c.bf16 %v916, %v914
        %v954 = vpack.c.bf16 %v921, %v919
        %v955 = vpack.c.bf16 %v926, %v924
        %v956 = vpack.c.bf16 %v931, %v929
        %v957 = vpack.c.bf16 %v936, %v934
        %v958 = vpack.c.bf16 %v941, %v939
        %v959 = vpack.c.bf16 %v946, %v944
        %v960 = vpack.c.bf16 %v951, %v949
        %v961 = vld [vmem:[%s4] sm:$0xf]
        %v962 = vld [vmem:[%s4 + $0x4] sm:$0xf]
        %v963 = vld [vmem:[%s4 + $0x8] sm:$0xf]
        %v964 = vld [vmem:[%s4 + $0xc] sm:$0xf]
        %s965 = scalar_lea.vmem %s1, 64
        %v966 = vld [vmem:[%s965] sm:$0xf]
        %v967 = vld [vmem:[%s965 + $0x4] sm:$0xf]
        %v968 = vld [vmem:[%s965 + $0x8] sm:$0xf]
        %v969 = vld [vmem:[%s965 + $0xc] sm:$0xf]
        %v970 = vld [vmem:[%s965 + $0x10] sm:$0xf]
        %v971 = vld [vmem:[%s965 + $0x14] sm:$0xf]
        %v972 = vld [vmem:[%s965 + $0x18] sm:$0xf]
        %v973 = vld [vmem:[%s965 + $0x1c] sm:$0xf]
        %v974 = vld [vmem:[%s965 + $0x20] sm:$0xf]
        %v975 = vld [vmem:[%s965 + $0x24] sm:$0xf]
        %v976 = vld [vmem:[%s965 + $0x28] sm:$0xf]
        %v977 = vld [vmem:[%s965 + $0x2c] sm:$0xf]
        %v978 = vld [vmem:[%s965 + $0x30] sm:$0xf]
        %v979 = vld [vmem:[%s965 + $0x34] sm:$0xf]
        %v980 = vld [vmem:[%s965 + $0x38] sm:$0xf]
        %v981 = vld [vmem:[%s965 + $0x3c] sm:$0xf]
        %v998 = vunpack.c.l.b16 %v966
        %v999 = vunpack.c.l.b16 %v967
        %v1000 = vunpack.c.l.b16 %v968
        %v1001 = vunpack.c.l.b16 %v969
        %v1002 = vunpack.c.l.b16 %v970
        %v1003 = vunpack.c.l.b16 %v971
        %v1004 = vunpack.c.l.b16 %v972
        %v1005 = vunpack.c.l.b16 %v973
        %v1006 = vunpack.c.l.b16 %v974
        %v1007 = vunpack.c.l.b16 %v975
        %v1008 = vunpack.c.l.b16 %v976
        %v1009 = vunpack.c.l.b16 %v977
        %v1010 = vunpack.c.l.b16 %v978
        %v1011 = vunpack.c.l.b16 %v979
        %v1012 = vunpack.c.l.b16 %v980
        %v1013 = vunpack.c.l.b16 %v981
        %v1014 = vpack.c.b16 %v999, %v998
        %v1015 = vpack.c.b16 %v1001, %v1000
        %v1016 = vpack.c.b16 %v1003, %v1002
        %v1017 = vpack.c.b16 %v1005, %v1004
        %v1018 = vpack.c.b16 %v1007, %v1006
        %v1019 = vpack.c.b16 %v1009, %v1008
        %v1020 = vpack.c.b16 %v1011, %v1010
        %v1021 = vpack.c.b16 %v1013, %v1012
        %1030 = vmatpush.bf16.msra.mxu0 %v1021
        %1031 = vmatpush.bf16.msra.mxu0 %v1020
        %1032 = vmatpush.bf16.msra.mxu0 %v1019
        %1033 = vmatpush.bf16.msra.mxu0 %v1018
        %1034 = vmatpush.bf16.msra.mxu0 %v1017
        %1035 = vmatpush.bf16.msra.mxu0 %v1016
        %1036 = vmatpush.bf16.msra.mxu0 %v1015
        %1037 = vmatpush.bf16.msra.mxu0 %v1014
        %1038 = vmatmul.bf16.gmra.mxu0 %v267
        %v1039 = vpop.f32.mrf.mxu0
        %v1040 = vadd.f32 0.0, %v1039
        %v1041 = vpop.f32.mrf.mxu0
        %v1042 = vadd.f32 0.0, %v1041
        %1043 = vmatmul.bf16.gmra.mxu0 %v268
        %v1044 = vpop.f32.mrf.mxu0
        %v1045 = vadd.f32 0.0, %v1044
        %v1046 = vpop.f32.mrf.mxu0
        %v1047 = vadd.f32 0.0, %v1046
        %1048 = vmatmul.bf16.gmra.mxu0 %v269
        %v1049 = vpop.f32.mrf.mxu0
        %v1050 = vadd.f32 0.0, %v1049
        %v1051 = vpop.f32.mrf.mxu0
        %v1052 = vadd.f32 0.0, %v1051
        %1053 = vmatmul.bf16.gmra.mxu0 %v270
        %v1054 = vpop.f32.mrf.mxu0
        %v1055 = vadd.f32 0.0, %v1054
        %v1056 = vpop.f32.mrf.mxu0
        %v1057 = vadd.f32 0.0, %v1056
        %1058 = vmatmul.bf16.gmra.mxu0 %v271
        %v1059 = vpop.f32.mrf.mxu0
        %v1060 = vadd.f32 0.0, %v1059
        %v1061 = vpop.f32.mrf.mxu0
        %v1062 = vadd.f32 0.0, %v1061
        %1063 = vmatmul.bf16.gmra.mxu0 %v272
        %v1064 = vpop.f32.mrf.mxu0
        %v1065 = vadd.f32 0.0, %v1064
        %v1066 = vpop.f32.mrf.mxu0
        %v1067 = vadd.f32 0.0, %v1066
        %1068 = vmatmul.bf16.gmra.mxu0 %v273
        %v1069 = vpop.f32.mrf.mxu0
        %v1070 = vadd.f32 0.0, %v1069
        %v1071 = vpop.f32.mrf.mxu0
        %v1072 = vadd.f32 0.0, %v1071
        %1073 = vmatmul.bf16.gmra.mxu0 %v274
        %v1074 = vpop.f32.mrf.mxu0
        %v1075 = vadd.f32 0.0, %v1074
        %v1076 = vpop.f32.mrf.mxu0
        %v1077 = vadd.f32 0.0, %v1076
        %1078 = vdwg.mxu0
        %s1079 = scalar_lea.vmem %s2, 64
        %v1080 = vld [vmem:[%s1079] sm:$0xf]
        %v1081 = vld [vmem:[%s1079 + $0x4] sm:$0xf]
        %v1082 = vld [vmem:[%s1079 + $0x8] sm:$0xf]
        %v1083 = vld [vmem:[%s1079 + $0xc] sm:$0xf]
        %v1084 = vld [vmem:[%s1079 + $0x10] sm:$0xf]
        %v1085 = vld [vmem:[%s1079 + $0x14] sm:$0xf]
        %v1086 = vld [vmem:[%s1079 + $0x18] sm:$0xf]
        %v1087 = vld [vmem:[%s1079 + $0x1c] sm:$0xf]
        %v1088 = vld [vmem:[%s1079 + $0x20] sm:$0xf]
        %v1089 = vld [vmem:[%s1079 + $0x24] sm:$0xf]
        %v1090 = vld [vmem:[%s1079 + $0x28] sm:$0xf]
        %v1091 = vld [vmem:[%s1079 + $0x2c] sm:$0xf]
        %v1092 = vld [vmem:[%s1079 + $0x30] sm:$0xf]
        %v1093 = vld [vmem:[%s1079 + $0x34] sm:$0xf]
        %v1094 = vld [vmem:[%s1079 + $0x38] sm:$0xf]
        %v1095 = vld [vmem:[%s1079 + $0x3c] sm:$0xf]
        %v1112 = vunpack.c.l.b16 %v1080
        %v1113 = vunpack.c.l.b16 %v1081
        %v1114 = vunpack.c.l.b16 %v1082
        %v1115 = vunpack.c.l.b16 %v1083
        %v1116 = vunpack.c.l.b16 %v1084
        %v1117 = vunpack.c.l.b16 %v1085
        %v1118 = vunpack.c.l.b16 %v1086
        %v1119 = vunpack.c.l.b16 %v1087
        %v1120 = vunpack.c.l.b16 %v1088
        %v1121 = vunpack.c.l.b16 %v1089
        %v1122 = vunpack.c.l.b16 %v1090
        %v1123 = vunpack.c.l.b16 %v1091
        %v1124 = vunpack.c.l.b16 %v1092
        %v1125 = vunpack.c.l.b16 %v1093
        %v1126 = vunpack.c.l.b16 %v1094
        %v1127 = vunpack.c.l.b16 %v1095
        %v1128 = vpack.c.b16 %v1113, %v1112
        %v1129 = vpack.c.b16 %v1115, %v1114
        %v1130 = vpack.c.b16 %v1117, %v1116
        %v1131 = vpack.c.b16 %v1119, %v1118
        %v1132 = vpack.c.b16 %v1121, %v1120
        %v1133 = vpack.c.b16 %v1123, %v1122
        %v1134 = vpack.c.b16 %v1125, %v1124
        %v1135 = vpack.c.b16 %v1127, %v1126
        %1144 = vmatpush.bf16.msra.mxu0 %v1135
        %1145 = vmatpush.bf16.msra.mxu0 %v1134
        %1146 = vmatpush.bf16.msra.mxu0 %v1133
        %1147 = vmatpush.bf16.msra.mxu0 %v1132
        %1148 = vmatpush.bf16.msra.mxu0 %v1131
        %1149 = vmatpush.bf16.msra.mxu0 %v1130
        %1150 = vmatpush.bf16.msra.mxu0 %v1129
        %1151 = vmatpush.bf16.msra.mxu0 %v1128
        %1152 = vmatmul.bf16.gmra.mxu0 %v267
        %v1153 = vpop.f32.mrf.mxu0
        %v1154 = vadd.f32 0.0, %v1153
        %v1155 = vpop.f32.mrf.mxu0
        %v1156 = vadd.f32 0.0, %v1155
        %1157 = vmatmul.bf16.gmra.mxu0 %v268
        %v1158 = vpop.f32.mrf.mxu0
        %v1159 = vadd.f32 0.0, %v1158
        %v1160 = vpop.f32.mrf.mxu0
        %v1161 = vadd.f32 0.0, %v1160
        %1162 = vmatmul.bf16.gmra.mxu0 %v269
        %v1163 = vpop.f32.mrf.mxu0
        %v1164 = vadd.f32 0.0, %v1163
        %v1165 = vpop.f32.mrf.mxu0
        %v1166 = vadd.f32 0.0, %v1165
        %1167 = vmatmul.bf16.gmra.mxu0 %v270
        %v1168 = vpop.f32.mrf.mxu0
        %v1169 = vadd.f32 0.0, %v1168
        %v1170 = vpop.f32.mrf.mxu0
        %v1171 = vadd.f32 0.0, %v1170
        %1172 = vmatmul.bf16.gmra.mxu0 %v271
        %v1173 = vpop.f32.mrf.mxu0
        %v1174 = vadd.f32 0.0, %v1173
        %v1175 = vpop.f32.mrf.mxu0
        %v1176 = vadd.f32 0.0, %v1175
        %1177 = vmatmul.bf16.gmra.mxu0 %v272
        %v1178 = vpop.f32.mrf.mxu0
        %v1179 = vadd.f32 0.0, %v1178
        %v1180 = vpop.f32.mrf.mxu0
        %v1181 = vadd.f32 0.0, %v1180
        %1182 = vmatmul.bf16.gmra.mxu0 %v273
        %v1183 = vpop.f32.mrf.mxu0
        %v1184 = vadd.f32 0.0, %v1183
        %v1185 = vpop.f32.mrf.mxu0
        %v1186 = vadd.f32 0.0, %v1185
        %1187 = vmatmul.bf16.gmra.mxu0 %v274
        %v1188 = vpop.f32.mrf.mxu0
        %v1189 = vadd.f32 0.0, %v1188
        %v1190 = vpop.f32.mrf.mxu0
        %v1191 = vadd.f32 0.0, %v1190
        %1192 = vdwg.mxu0
        %s1193 = scalar_lea.vmem %s3, 64
        %v1194 = vld [vmem:[%s1193] sm:$0xf]
        %v1195 = vld [vmem:[%s1193 + $0x4] sm:$0xf]
        %v1196 = vld [vmem:[%s1193 + $0x8] sm:$0xf]
        %v1197 = vld [vmem:[%s1193 + $0xc] sm:$0xf]
        %v1198 = vld [vmem:[%s1193 + $0x10] sm:$0xf]
        %v1199 = vld [vmem:[%s1193 + $0x14] sm:$0xf]
        %v1200 = vld [vmem:[%s1193 + $0x18] sm:$0xf]
        %v1201 = vld [vmem:[%s1193 + $0x1c] sm:$0xf]
        %v1202 = vld [vmem:[%s1193 + $0x20] sm:$0xf]
        %v1203 = vld [vmem:[%s1193 + $0x24] sm:$0xf]
        %v1204 = vld [vmem:[%s1193 + $0x28] sm:$0xf]
        %v1205 = vld [vmem:[%s1193 + $0x2c] sm:$0xf]
        %v1206 = vld [vmem:[%s1193 + $0x30] sm:$0xf]
        %v1207 = vld [vmem:[%s1193 + $0x34] sm:$0xf]
        %v1208 = vld [vmem:[%s1193 + $0x38] sm:$0xf]
        %v1209 = vld [vmem:[%s1193 + $0x3c] sm:$0xf]
        %v1226 = vunpack.c.l.b16 %v1194
        %v1227 = vunpack.c.l.b16 %v1195
        %v1228 = vunpack.c.l.b16 %v1196
        %v1229 = vunpack.c.l.b16 %v1197
        %v1230 = vunpack.c.l.b16 %v1198
        %v1231 = vunpack.c.l.b16 %v1199
        %v1232 = vunpack.c.l.b16 %v1200
        %v1233 = vunpack.c.l.b16 %v1201
        %v1234 = vunpack.c.l.b16 %v1202
        %v1235 = vunpack.c.l.b16 %v1203
        %v1236 = vunpack.c.l.b16 %v1204
        %v1237 = vunpack.c.l.b16 %v1205
        %v1238 = vunpack.c.l.b16 %v1206
        %v1239 = vunpack.c.l.b16 %v1207
        %v1240 = vunpack.c.l.b16 %v1208
        %v1241 = vunpack.c.l.b16 %v1209
        %v1242 = vpack.c.b16 %v1227, %v1226
        %v1243 = vpack.c.b16 %v1229, %v1228
        %v1244 = vpack.c.b16 %v1231, %v1230
        %v1245 = vpack.c.b16 %v1233, %v1232
        %v1246 = vpack.c.b16 %v1235, %v1234
        %v1247 = vpack.c.b16 %v1237, %v1236
        %v1248 = vpack.c.b16 %v1239, %v1238
        %v1249 = vpack.c.b16 %v1241, %v1240
        %1258 = vmatpush.bf16.msra.mxu0 %v1249
        %1259 = vmatpush.bf16.msra.mxu0 %v1248
        %1260 = vmatpush.bf16.msra.mxu0 %v1247
        %1261 = vmatpush.bf16.msra.mxu0 %v1246
        %1262 = vmatpush.bf16.msra.mxu0 %v1245
        %1263 = vmatpush.bf16.msra.mxu0 %v1244
        %1264 = vmatpush.bf16.msra.mxu0 %v1243
        %1265 = vmatpush.bf16.msra.mxu0 %v1242
        %1266 = vmatmul.bf16.gmra.mxu0 %v267
        %v1267 = vpop.f32.mrf.mxu0
        %v1268 = vadd.f32 0.0, %v1267
        %v1269 = vpop.f32.mrf.mxu0
        %v1270 = vadd.f32 0.0, %v1269
        %1271 = vmatmul.bf16.gmra.mxu0 %v268
        %v1272 = vpop.f32.mrf.mxu0
        %v1273 = vadd.f32 0.0, %v1272
        %v1274 = vpop.f32.mrf.mxu0
        %v1275 = vadd.f32 0.0, %v1274
        %1276 = vmatmul.bf16.gmra.mxu0 %v269
        %v1277 = vpop.f32.mrf.mxu0
        %v1278 = vadd.f32 0.0, %v1277
        %v1279 = vpop.f32.mrf.mxu0
        %v1280 = vadd.f32 0.0, %v1279
        %1281 = vmatmul.bf16.gmra.mxu0 %v270
        %v1282 = vpop.f32.mrf.mxu0
        %v1283 = vadd.f32 0.0, %v1282
        %v1284 = vpop.f32.mrf.mxu0
        %v1285 = vadd.f32 0.0, %v1284
        %1286 = vmatmul.bf16.gmra.mxu0 %v271
        %v1287 = vpop.f32.mrf.mxu0
        %v1288 = vadd.f32 0.0, %v1287
        %v1289 = vpop.f32.mrf.mxu0
        %v1290 = vadd.f32 0.0, %v1289
        %1291 = vmatmul.bf16.gmra.mxu0 %v272
        %v1292 = vpop.f32.mrf.mxu0
        %v1293 = vadd.f32 0.0, %v1292
        %v1294 = vpop.f32.mrf.mxu0
        %v1295 = vadd.f32 0.0, %v1294
        %1296 = vmatmul.bf16.gmra.mxu0 %v273
        %v1297 = vpop.f32.mrf.mxu0
        %v1298 = vadd.f32 0.0, %v1297
        %v1299 = vpop.f32.mrf.mxu0
        %v1300 = vadd.f32 0.0, %v1299
        %1301 = vmatmul.bf16.gmra.mxu0 %v274
        %v1302 = vpop.f32.mrf.mxu0
        %v1303 = vadd.f32 0.0, %v1302
        %v1304 = vpop.f32.mrf.mxu0
        %v1305 = vadd.f32 0.0, %v1304
        %1306 = vdwg.mxu0
        %v1307 = vpack.c.bf16 %v1042, %v1040
        %v1308 = vpack.c.bf16 %v1047, %v1045
        %v1309 = vpack.c.bf16 %v1052, %v1050
        %v1310 = vpack.c.bf16 %v1057, %v1055
        %v1311 = vpack.c.bf16 %v1062, %v1060
        %v1312 = vpack.c.bf16 %v1067, %v1065
        %v1313 = vpack.c.bf16 %v1072, %v1070
        %v1314 = vpack.c.bf16 %v1077, %v1075
        %v1315 = vpack.c.bf16 %v1156, %v1154
        %v1316 = vpack.c.bf16 %v1161, %v1159
        %v1317 = vpack.c.bf16 %v1166, %v1164
        %v1318 = vpack.c.bf16 %v1171, %v1169
        %v1319 = vpack.c.bf16 %v1176, %v1174
        %v1320 = vpack.c.bf16 %v1181, %v1179
        %v1321 = vpack.c.bf16 %v1186, %v1184
        %v1322 = vpack.c.bf16 %v1191, %v1189
        %v1324 = vsel %vm630, %v1307, 0
        %v1327 = vsel %vm630, %v1308, 0
        %v1330 = vsel %vm630, %v1309, 0
        %v1333 = vsel %vm630, %v1310, 0
        %v1336 = vsel %vm630, %v1311, 0
        %v1339 = vsel %vm630, %v1312, 0
        %v1342 = vsel %vm630, %v1313, 0
        %v1345 = vsel %vm630, %v1314, 0
        %v1348 = vsel %vm630, %v1315, 0
        %v1351 = vsel %vm630, %v1316, 0
        %v1354 = vsel %vm630, %v1317, 0
        %v1357 = vsel %vm630, %v1318, 0
        %v1360 = vsel %vm630, %v1319, 0
        %v1363 = vsel %vm630, %v1320, 0
        %v1366 = vsel %vm630, %v1321, 0
        %v1369 = vsel %vm630, %v1322, 0
        %1371 = vmatpush.bf16.xpose.msra.mxu0 %v1369
        %1372 = vmatpush.bf16.xpose.msra.mxu0 %v1366
        %1373 = vmatpush.bf16.xpose.msra.mxu0 %v1363
        %1374 = vmatpush.bf16.xpose.msra.mxu0 %v1360
        %1375 = vmatpush.bf16.xpose.msra.mxu0 %v1357
        %1376 = vmatpush.bf16.xpose.msra.mxu0 %v1354
        %1377 = vmatpush.bf16.xpose.msra.mxu0 %v1351
        %1378 = vmatpush.bf16.xpose.msra.mxu0 %v1348
        %1379 = vmatmul.bf16.gmra.mxu0 %v1324
        %v1380 = vpop.f32.mrf.mxu0
        %v1381 = vadd.f32 0.0, %v1380
        %v1382 = vpop.f32.mrf.mxu0
        %v1383 = vadd.f32 0.0, %v1382
        %1384 = vmatmul.bf16.gmra.mxu0 %v1327
        %v1385 = vpop.f32.mrf.mxu0
        %v1386 = vadd.f32 0.0, %v1385
        %v1387 = vpop.f32.mrf.mxu0
        %v1388 = vadd.f32 0.0, %v1387
        %1389 = vmatmul.bf16.gmra.mxu0 %v1330
        %v1390 = vpop.f32.mrf.mxu0
        %v1391 = vadd.f32 0.0, %v1390
        %v1392 = vpop.f32.mrf.mxu0
        %v1393 = vadd.f32 0.0, %v1392
        %1394 = vmatmul.bf16.gmra.mxu0 %v1333
        %v1395 = vpop.f32.mrf.mxu0
        %v1396 = vadd.f32 0.0, %v1395
        %v1397 = vpop.f32.mrf.mxu0
        %v1398 = vadd.f32 0.0, %v1397
        %1399 = vmatmul.bf16.gmra.mxu0 %v1336
        %v1400 = vpop.f32.mrf.mxu0
        %v1401 = vadd.f32 0.0, %v1400
        %v1402 = vpop.f32.mrf.mxu0
        %v1403 = vadd.f32 0.0, %v1402
        %1404 = vmatmul.bf16.gmra.mxu0 %v1339
        %v1405 = vpop.f32.mrf.mxu0
        %v1406 = vadd.f32 0.0, %v1405
        %v1407 = vpop.f32.mrf.mxu0
        %v1408 = vadd.f32 0.0, %v1407
        %1409 = vmatmul.bf16.gmra.mxu0 %v1342
        %v1410 = vpop.f32.mrf.mxu0
        %v1411 = vadd.f32 0.0, %v1410
        %v1412 = vpop.f32.mrf.mxu0
        %v1413 = vadd.f32 0.0, %v1412
        %1414 = vmatmul.bf16.gmra.mxu0 %v1345
        %v1415 = vpop.f32.mrf.mxu0
        %v1416 = vadd.f32 0.0, %v1415
        %v1417 = vpop.f32.mrf.mxu0
        %v1418 = vadd.f32 0.0, %v1417
        %1419 = vdwg.mxu0
        %v1420 = vmul.f32 %v1381, 0.17677669
        %v1421 = vmul.f32 %v1383, 0.17677669
        %v1422 = vmul.f32 %v1386, 0.17677669
        %v1423 = vmul.f32 %v1388, 0.17677669
        %v1424 = vmul.f32 %v1391, 0.17677669
        %v1425 = vmul.f32 %v1393, 0.17677669
        %v1426 = vmul.f32 %v1396, 0.17677669
        %v1427 = vmul.f32 %v1398, 0.17677669
        %v1428 = vmul.f32 %v1401, 0.17677669
        %v1429 = vmul.f32 %v1403, 0.17677669
        %v1430 = vmul.f32 %v1406, 0.17677669
        %v1431 = vmul.f32 %v1408, 0.17677669
        %v1432 = vmul.f32 %v1411, 0.17677669
        %v1433 = vmul.f32 %v1413, 0.17677669
        %v1434 = vmul.f32 %v1416, 0.17677669
        %v1435 = vmul.f32 %v1418, 0.17677669
        %1436 = vmax.xlane.f32.xlu0 %v1420
        %v1437 = vpop.xlane.xlu0 %1436
        %1438 = vmax.xlane.f32.xlu0 %v1421
        %v1439 = vpop.xlane.xlu0 %1438
        %1440 = vmax.xlane.f32.xlu0 %v1422
        %v1441 = vpop.xlane.xlu0 %1440
        %1442 = vmax.xlane.f32.xlu0 %v1423
        %v1443 = vpop.xlane.xlu0 %1442
        %1444 = vmax.xlane.f32.xlu0 %v1424
        %v1445 = vpop.xlane.xlu0 %1444
        %1446 = vmax.xlane.f32.xlu0 %v1425
        %v1447 = vpop.xlane.xlu0 %1446
        %1448 = vmax.xlane.f32.xlu0 %v1426
        %v1449 = vpop.xlane.xlu0 %1448
        %1450 = vmax.xlane.f32.xlu0 %v1427
        %v1451 = vpop.xlane.xlu0 %1450
        %1452 = vmax.xlane.f32.xlu0 %v1428
        %v1453 = vpop.xlane.xlu0 %1452
        %1454 = vmax.xlane.f32.xlu0 %v1429
        %v1455 = vpop.xlane.xlu0 %1454
        %1456 = vmax.xlane.f32.xlu0 %v1430
        %v1457 = vpop.xlane.xlu0 %1456
        %1458 = vmax.xlane.f32.xlu0 %v1431
        %v1459 = vpop.xlane.xlu0 %1458
        %1460 = vmax.xlane.f32.xlu0 %v1432
        %v1461 = vpop.xlane.xlu0 %1460
        %1462 = vmax.xlane.f32.xlu0 %v1433
        %v1463 = vpop.xlane.xlu0 %1462
        %1464 = vmax.xlane.f32.xlu0 %v1434
        %v1465 = vpop.xlane.xlu0 %1464
        %1466 = vmax.xlane.f32.xlu0 %v1435
        %v1467 = vpop.xlane.xlu0 %1466
        %v1468 = vsub.f32 %v1420, %v1437
        %v1469 = vsub.f32 %v1421, %v1439
        %v1470 = vsub.f32 %v1422, %v1441
        %v1471 = vsub.f32 %v1423, %v1443
        %v1472 = vsub.f32 %v1424, %v1445
        %v1473 = vsub.f32 %v1425, %v1447
        %v1474 = vsub.f32 %v1426, %v1449
        %v1475 = vsub.f32 %v1427, %v1451
        %v1476 = vsub.f32 %v1428, %v1453
        %v1477 = vsub.f32 %v1429, %v1455
        %v1478 = vsub.f32 %v1430, %v1457
        %v1479 = vsub.f32 %v1431, %v1459
        %v1480 = vsub.f32 %v1432, %v1461
        %v1481 = vsub.f32 %v1433, %v1463
        %v1482 = vsub.f32 %v1434, %v1465
        %v1483 = vsub.f32 %v1435, %v1467
        %v1484 = vmul.f32 %v1468, 1.442695
        %v1485 = vpow.pop %v1484
        %v1486 = vmul.f32 %v1469, 1.442695
        %v1487 = vpow.pop %v1486
        %v1488 = vmul.f32 %v1470, 1.442695
        %v1489 = vpow.pop %v1488
        %v1490 = vmul.f32 %v1471, 1.442695
        %v1491 = vpow.pop %v1490
        %v1492 = vmul.f32 %v1472, 1.442695
        %v1493 = vpow.pop %v1492
        %v1494 = vmul.f32 %v1473, 1.442695
        %v1495 = vpow.pop %v1494
        %v1496 = vmul.f32 %v1474, 1.442695
        %v1497 = vpow.pop %v1496
        %v1498 = vmul.f32 %v1475, 1.442695
        %v1499 = vpow.pop %v1498
        %v1500 = vmul.f32 %v1476, 1.442695
        %v1501 = vpow.pop %v1500
        %v1502 = vmul.f32 %v1477, 1.442695
        %v1503 = vpow.pop %v1502
        %v1504 = vmul.f32 %v1478, 1.442695
        %v1505 = vpow.pop %v1504
        %v1506 = vmul.f32 %v1479, 1.442695
        %v1507 = vpow.pop %v1506
        %v1508 = vmul.f32 %v1480, 1.442695
        %v1509 = vpow.pop %v1508
        %v1510 = vmul.f32 %v1481, 1.442695
        %v1511 = vpow.pop %v1510
        %v1512 = vmul.f32 %v1482, 1.442695
        %v1513 = vpow.pop %v1512
        %v1514 = vmul.f32 %v1483, 1.442695
        %v1515 = vpow.pop %v1514
        %1516 = vadd.xlane.f32.xlu0 %v1485
        %v1517 = vpop.xlane.xlu0 %1516
        %1518 = vadd.xlane.f32.xlu0 %v1487
        %v1519 = vpop.xlane.xlu0 %1518
        %1520 = vadd.xlane.f32.xlu0 %v1489
        %v1521 = vpop.xlane.xlu0 %1520
        %1522 = vadd.xlane.f32.xlu0 %v1491
        %v1523 = vpop.xlane.xlu0 %1522
        %1524 = vadd.xlane.f32.xlu0 %v1493
        %v1525 = vpop.xlane.xlu0 %1524
        %1526 = vadd.xlane.f32.xlu0 %v1495
        %v1527 = vpop.xlane.xlu0 %1526
        %1528 = vadd.xlane.f32.xlu0 %v1497
        %v1529 = vpop.xlane.xlu0 %1528
        %1530 = vadd.xlane.f32.xlu0 %v1499
        %v1531 = vpop.xlane.xlu0 %1530
        %1532 = vadd.xlane.f32.xlu0 %v1501
        %v1533 = vpop.xlane.xlu0 %1532
        %1534 = vadd.xlane.f32.xlu0 %v1503
        %v1535 = vpop.xlane.xlu0 %1534
        %1536 = vadd.xlane.f32.xlu0 %v1505
        %v1537 = vpop.xlane.xlu0 %1536
        %1538 = vadd.xlane.f32.xlu0 %v1507
        %v1539 = vpop.xlane.xlu0 %1538
        %1540 = vadd.xlane.f32.xlu0 %v1509
        %v1541 = vpop.xlane.xlu0 %1540
        %1542 = vadd.xlane.f32.xlu0 %v1511
        %v1543 = vpop.xlane.xlu0 %1542
        %1544 = vadd.xlane.f32.xlu0 %v1513
        %v1545 = vpop.xlane.xlu0 %1544
        %1546 = vadd.xlane.f32.xlu0 %v1515
        %v1547 = vpop.xlane.xlu0 %1546
        %v1548 = vrcp.pop %v1517
        %v1549 = vrcp.pop %v1519
        %v1550 = vrcp.pop %v1521
        %v1551 = vrcp.pop %v1523
        %v1552 = vrcp.pop %v1525
        %v1553 = vrcp.pop %v1527
        %v1554 = vrcp.pop %v1529
        %v1555 = vrcp.pop %v1531
        %v1556 = vrcp.pop %v1533
        %v1557 = vrcp.pop %v1535
        %v1558 = vrcp.pop %v1537
        %v1559 = vrcp.pop %v1539
        %v1560 = vrcp.pop %v1541
        %v1561 = vrcp.pop %v1543
        %v1562 = vrcp.pop %v1545
        %v1563 = vrcp.pop %v1547
        %v1564 = vmul.f32 %v1485, %v1548
        %v1565 = vmul.f32 %v1487, %v1549
        %v1566 = vmul.f32 %v1489, %v1550
        %v1567 = vmul.f32 %v1491, %v1551
        %v1568 = vmul.f32 %v1493, %v1552
        %v1569 = vmul.f32 %v1495, %v1553
        %v1570 = vmul.f32 %v1497, %v1554
        %v1571 = vmul.f32 %v1499, %v1555
        %v1572 = vmul.f32 %v1501, %v1556
        %v1573 = vmul.f32 %v1503, %v1557
        %v1574 = vmul.f32 %v1505, %v1558
        %v1575 = vmul.f32 %v1507, %v1559
        %v1576 = vmul.f32 %v1509, %v1560
        %v1577 = vmul.f32 %v1511, %v1561
        %v1578 = vmul.f32 %v1513, %v1562
        %v1579 = vmul.f32 %v1515, %v1563
        %v1580 = vpack.c.bf16 %v1565, %v1564
        %v1581 = vpack.c.bf16 %v1567, %v1566
        %v1582 = vpack.c.bf16 %v1569, %v1568
        %v1583 = vpack.c.bf16 %v1571, %v1570
        %v1584 = vpack.c.bf16 %v1573, %v1572
        %v1585 = vpack.c.bf16 %v1575, %v1574
        %v1586 = vpack.c.bf16 %v1577, %v1576
        %v1587 = vpack.c.bf16 %v1579, %v1578
        %v1588 = vpack.c.bf16 %v1270, %v1268
        %v1589 = vpack.c.bf16 %v1275, %v1273
        %v1590 = vpack.c.bf16 %v1280, %v1278
        %v1591 = vpack.c.bf16 %v1285, %v1283
        %v1592 = vpack.c.bf16 %v1290, %v1288
        %v1593 = vpack.c.bf16 %v1295, %v1293
        %v1594 = vpack.c.bf16 %v1300, %v1298
        %v1595 = vpack.c.bf16 %v1305, %v1303
        %1596 = vmatpush.bf16.msra.mxu0 %v1595
        %1597 = vmatpush.bf16.msra.mxu0 %v1594
        %1598 = vmatpush.bf16.msra.mxu0 %v1593
        %1599 = vmatpush.bf16.msra.mxu0 %v1592
        %1600 = vmatpush.bf16.msra.mxu0 %v1591
        %1601 = vmatpush.bf16.msra.mxu0 %v1590
        %1602 = vmatpush.bf16.msra.mxu0 %v1589
        %1603 = vmatpush.bf16.msra.mxu0 %v1588
        %1604 = vmatmul.bf16.gmra.mxu0 %v1580
        %v1605 = vpop.f32.mrf.mxu0
        %v1606 = vadd.f32 0.0, %v1605
        %v1607 = vpop.f32.mrf.mxu0
        %v1608 = vadd.f32 0.0, %v1607
        %1609 = vmatmul.bf16.gmra.mxu0 %v1581
        %v1610 = vpop.f32.mrf.mxu0
        %v1611 = vadd.f32 0.0, %v1610
        %v1612 = vpop.f32.mrf.mxu0
        %v1613 = vadd.f32 0.0, %v1612
        %1614 = vmatmul.bf16.gmra.mxu0 %v1582
        %v1615 = vpop.f32.mrf.mxu0
        %v1616 = vadd.f32 0.0, %v1615
        %v1617 = vpop.f32.mrf.mxu0
        %v1618 = vadd.f32 0.0, %v1617
        %1619 = vmatmul.bf16.gmra.mxu0 %v1583
        %v1620 = vpop.f32.mrf.mxu0
        %v1621 = vadd.f32 0.0, %v1620
        %v1622 = vpop.f32.mrf.mxu0
        %v1623 = vadd.f32 0.0, %v1622
        %1624 = vmatmul.bf16.gmra.mxu0 %v1584
        %v1625 = vpop.f32.mrf.mxu0
        %v1626 = vadd.f32 0.0, %v1625
        %v1627 = vpop.f32.mrf.mxu0
        %v1628 = vadd.f32 0.0, %v1627
        %1629 = vmatmul.bf16.gmra.mxu0 %v1585
        %v1630 = vpop.f32.mrf.mxu0
        %v1631 = vadd.f32 0.0, %v1630
        %v1632 = vpop.f32.mrf.mxu0
        %v1633 = vadd.f32 0.0, %v1632
        %1634 = vmatmul.bf16.gmra.mxu0 %v1586
        %v1635 = vpop.f32.mrf.mxu0
        %v1636 = vadd.f32 0.0, %v1635
        %v1637 = vpop.f32.mrf.mxu0
        %v1638 = vadd.f32 0.0, %v1637
        %1639 = vmatmul.bf16.gmra.mxu0 %v1587
        %v1640 = vpop.f32.mrf.mxu0
        %v1641 = vadd.f32 0.0, %v1640
        %v1642 = vpop.f32.mrf.mxu0
        %v1643 = vadd.f32 0.0, %v1642
        %1644 = vdwg.mxu0
        %v1645 = vpack.c.bf16 %v1608, %v1606
        %v1646 = vpack.c.bf16 %v1613, %v1611
        %v1647 = vpack.c.bf16 %v1618, %v1616
        %v1648 = vpack.c.bf16 %v1623, %v1621
        %v1649 = vpack.c.bf16 %v1628, %v1626
        %v1650 = vpack.c.bf16 %v1633, %v1631
        %v1651 = vpack.c.bf16 %v1638, %v1636
        %v1652 = vpack.c.bf16 %v1643, %v1641
        %s1653 = scalar_lea.vmem %s4, 16
        %v1654 = vld [vmem:[%s1653] sm:$0xf]
        %v1655 = vld [vmem:[%s1653 + $0x4] sm:$0xf]
        %v1656 = vld [vmem:[%s1653 + $0x8] sm:$0xf]
        %v1657 = vld [vmem:[%s1653 + $0xc] sm:$0xf]
        %v1662 = vunpack.c.l.b16 %v1654
        %v1663 = vunpack.c.l.b16 %v1655
        %v1664 = vunpack.c.l.b16 %v1656
        %v1665 = vunpack.c.l.b16 %v1657
        %v1666 = vpack.c.b16 %v1663, %v1662
        %v1667 = vpack.c.b16 %v1665, %v1664
        %v1671 = vsel %vm630, %v1645, 0
        %v1674 = vsel %vm630, %v1646, 0
        %v1677 = vsel %vm630, %v1647, 0
        %v1680 = vsel %vm630, %v1648, 0
        %v1683 = vsel %vm630, %v1649, 0
        %v1686 = vsel %vm630, %v1650, 0
        %v1689 = vsel %vm630, %v1651, 0
        %v1692 = vsel %vm630, %v1652, 0
        %1694 = vmatpush.bf16.msra.mxu0 0
        %1695 = vmatpush.bf16.msra.mxu0 0
        %1696 = vmatpush.bf16.msra.mxu0 0
        %1697 = vmatpush.bf16.msra.mxu0 0
        %1698 = vmatpush.bf16.msra.mxu0 0
        %1699 = vmatpush.bf16.msra.mxu0 0
        %1700 = vmatpush.bf16.msra.mxu0 %v1667
        %1701 = vmatpush.bf16.msra.mxu0 %v1666
        %1702 = vmatmul.bf16.gmra.mxu0 %v1671
        %v1703 = vpop.f32.mrf.mxu0
        %v1704 = vadd.f32 0.0, %v1703
        %v1705 = vpop.f32.mrf.mxu0
        %v1706 = vadd.f32 0.0, %v1705
        %1707 = vmatmul.bf16.gmra.mxu0 %v1674
        %v1708 = vpop.f32.mrf.mxu0
        %v1709 = vadd.f32 0.0, %v1708
        %v1710 = vpop.f32.mrf.mxu0
        %v1711 = vadd.f32 0.0, %v1710
        %1712 = vmatmul.bf16.gmra.mxu0 %v1677
        %v1713 = vpop.f32.mrf.mxu0
        %v1714 = vadd.f32 0.0, %v1713
        %v1715 = vpop.f32.mrf.mxu0
        %v1716 = vadd.f32 0.0, %v1715
        %1717 = vmatmul.bf16.gmra.mxu0 %v1680
        %v1718 = vpop.f32.mrf.mxu0
        %v1719 = vadd.f32 0.0, %v1718
        %v1720 = vpop.f32.mrf.mxu0
        %v1721 = vadd.f32 0.0, %v1720
        %1722 = vmatmul.bf16.gmra.mxu0 %v1683
        %v1723 = vpop.f32.mrf.mxu0
        %v1724 = vadd.f32 0.0, %v1723
        %v1725 = vpop.f32.mrf.mxu0
        %v1726 = vadd.f32 0.0, %v1725
        %1727 = vmatmul.bf16.gmra.mxu0 %v1686
        %v1728 = vpop.f32.mrf.mxu0
        %v1729 = vadd.f32 0.0, %v1728
        %v1730 = vpop.f32.mrf.mxu0
        %v1731 = vadd.f32 0.0, %v1730
        %1732 = vmatmul.bf16.gmra.mxu0 %v1689
        %v1733 = vpop.f32.mrf.mxu0
        %v1734 = vadd.f32 0.0, %v1733
        %v1735 = vpop.f32.mrf.mxu0
        %v1736 = vadd.f32 0.0, %v1735
        %1737 = vmatmul.bf16.gmra.mxu0 %v1692
        %v1738 = vpop.f32.mrf.mxu0
        %v1739 = vadd.f32 0.0, %v1738
        %v1740 = vpop.f32.mrf.mxu0
        %v1741 = vadd.f32 0.0, %v1740
        %1742 = vdwg.mxu0
        %v1747 = vunpack.c.l.b16 %v961
        %v1748 = vunpack.c.l.b16 %v962
        %v1749 = vunpack.c.l.b16 %v963
        %v1750 = vunpack.c.l.b16 %v964
        %v1751 = vpack.c.b16 %v1748, %v1747
        %v1752 = vpack.c.b16 %v1750, %v1749
        %v1756 = vsel %vm630, %v953, 0
        %v1759 = vsel %vm630, %v954, 0
        %v1762 = vsel %vm630, %v955, 0
        %v1765 = vsel %vm630, %v956, 0
        %v1768 = vsel %vm630, %v957, 0
        %v1771 = vsel %vm630, %v958, 0
        %v1774 = vsel %vm630, %v959, 0
        %v1777 = vsel %vm630, %v960, 0
        %1779 = vmatpush.bf16.msra.mxu0 0
        %1780 = vmatpush.bf16.msra.mxu0 0
        %1781 = vmatpush.bf16.msra.mxu0 0
        %1782 = vmatpush.bf16.msra.mxu0 0
        %1783 = vmatpush.bf16.msra.mxu0 0
        %1784 = vmatpush.bf16.msra.mxu0 0
        %1785 = vmatpush.bf16.msra.mxu0 %v1752
        %1786 = vmatpush.bf16.msra.mxu0 %v1751
        %1787 = vmatmul.bf16.gmra.mxu0 %v1756
        %v1788 = vpop.f32.mrf.mxu0
        %v1789 = vadd.f32 %v1704, %v1788
        %v1790 = vpop.f32.mrf.mxu0
        %v1791 = vadd.f32 %v1706, %v1790
        %1792 = vmatmul.bf16.gmra.mxu0 %v1759
        %v1793 = vpop.f32.mrf.mxu0
        %v1794 = vadd.f32 %v1709, %v1793
        %v1795 = vpop.f32.mrf.mxu0
        %v1796 = vadd.f32 %v1711, %v1795
        %1797 = vmatmul.bf16.gmra.mxu0 %v1762
        %v1798 = vpop.f32.mrf.mxu0
        %v1799 = vadd.f32 %v1714, %v1798
        %v1800 = vpop.f32.mrf.mxu0
        %v1801 = vadd.f32 %v1716, %v1800
        %1802 = vmatmul.bf16.gmra.mxu0 %v1765
        %v1803 = vpop.f32.mrf.mxu0
        %v1804 = vadd.f32 %v1719, %v1803
        %v1805 = vpop.f32.mrf.mxu0
        %v1806 = vadd.f32 %v1721, %v1805
        %1807 = vmatmul.bf16.gmra.mxu0 %v1768
        %v1808 = vpop.f32.mrf.mxu0
        %v1809 = vadd.f32 %v1724, %v1808
        %v1810 = vpop.f32.mrf.mxu0
        %v1811 = vadd.f32 %v1726, %v1810
        %1812 = vmatmul.bf16.gmra.mxu0 %v1771
        %v1813 = vpop.f32.mrf.mxu0
        %v1814 = vadd.f32 %v1729, %v1813
        %v1815 = vpop.f32.mrf.mxu0
        %v1816 = vadd.f32 %v1731, %v1815
        %1817 = vmatmul.bf16.gmra.mxu0 %v1774
        %v1818 = vpop.f32.mrf.mxu0
        %v1819 = vadd.f32 %v1734, %v1818
        %v1820 = vpop.f32.mrf.mxu0
        %v1821 = vadd.f32 %v1736, %v1820
        %1822 = vmatmul.bf16.gmra.mxu0 %v1777
        %v1823 = vpop.f32.mrf.mxu0
        %v1824 = vadd.f32 %v1739, %v1823
        %v1825 = vpop.f32.mrf.mxu0
        %v1826 = vadd.f32 %v1741, %v1825
        %1827 = vdwg.mxu0
        %s1828 = scalar_lea.vmem %s1, 128
        %v1829 = vld [vmem:[%s1828] sm:$0xf]
        %v1830 = vld [vmem:[%s1828 + $0x4] sm:$0xf]
        %v1831 = vld [vmem:[%s1828 + $0x8] sm:$0xf]
        %v1832 = vld [vmem:[%s1828 + $0xc] sm:$0xf]
        %v1833 = vld [vmem:[%s1828 + $0x10] sm:$0xf]
        %v1834 = vld [vmem:[%s1828 + $0x14] sm:$0xf]
        %v1835 = vld [vmem:[%s1828 + $0x18] sm:$0xf]
        %v1836 = vld [vmem:[%s1828 + $0x1c] sm:$0xf]
        %v1837 = vld [vmem:[%s1828 + $0x20] sm:$0xf]
        %v1838 = vld [vmem:[%s1828 + $0x24] sm:$0xf]
        %v1839 = vld [vmem:[%s1828 + $0x28] sm:$0xf]
        %v1840 = vld [vmem:[%s1828 + $0x2c] sm:$0xf]
        %v1841 = vld [vmem:[%s1828 + $0x30] sm:$0xf]
        %v1842 = vld [vmem:[%s1828 + $0x34] sm:$0xf]
        %v1843 = vld [vmem:[%s1828 + $0x38] sm:$0xf]
        %v1844 = vld [vmem:[%s1828 + $0x3c] sm:$0xf]
        %v1861 = vunpack.c.l.b16 %v1829
        %v1862 = vunpack.c.l.b16 %v1830
        %v1863 = vunpack.c.l.b16 %v1831
        %v1864 = vunpack.c.l.b16 %v1832
        %v1865 = vunpack.c.l.b16 %v1833
        %v1866 = vunpack.c.l.b16 %v1834
        %v1867 = vunpack.c.l.b16 %v1835
        %v1868 = vunpack.c.l.b16 %v1836
        %v1869 = vunpack.c.l.b16 %v1837
        %v1870 = vunpack.c.l.b16 %v1838
        %v1871 = vunpack.c.l.b16 %v1839
        %v1872 = vunpack.c.l.b16 %v1840
        %v1873 = vunpack.c.l.b16 %v1841
        %v1874 = vunpack.c.l.b16 %v1842
        %v1875 = vunpack.c.l.b16 %v1843
        %v1876 = vunpack.c.l.b16 %v1844
        %v1877 = vpack.c.b16 %v1862, %v1861
        %v1878 = vpack.c.b16 %v1864, %v1863
        %v1879 = vpack.c.b16 %v1866, %v1865
        %v1880 = vpack.c.b16 %v1868, %v1867
        %v1881 = vpack.c.b16 %v1870, %v1869
        %v1882 = vpack.c.b16 %v1872, %v1871
        %v1883 = vpack.c.b16 %v1874, %v1873
        %v1884 = vpack.c.b16 %v1876, %v1875
        %1893 = vmatpush.bf16.msra.mxu0 %v1884
        %1894 = vmatpush.bf16.msra.mxu0 %v1883
        %1895 = vmatpush.bf16.msra.mxu0 %v1882
        %1896 = vmatpush.bf16.msra.mxu0 %v1881
        %1897 = vmatpush.bf16.msra.mxu0 %v1880
        %1898 = vmatpush.bf16.msra.mxu0 %v1879
        %1899 = vmatpush.bf16.msra.mxu0 %v1878
        %1900 = vmatpush.bf16.msra.mxu0 %v1877
        %1901 = vmatmul.bf16.gmra.mxu0 %v267
        %v1902 = vpop.f32.mrf.mxu0
        %v1903 = vadd.f32 0.0, %v1902
        %v1904 = vpop.f32.mrf.mxu0
        %v1905 = vadd.f32 0.0, %v1904
        %1906 = vmatmul.bf16.gmra.mxu0 %v268
        %v1907 = vpop.f32.mrf.mxu0
        %v1908 = vadd.f32 0.0, %v1907
        %v1909 = vpop.f32.mrf.mxu0
        %v1910 = vadd.f32 0.0, %v1909
        %1911 = vmatmul.bf16.gmra.mxu0 %v269
        %v1912 = vpop.f32.mrf.mxu0
        %v1913 = vadd.f32 0.0, %v1912
        %v1914 = vpop.f32.mrf.mxu0
        %v1915 = vadd.f32 0.0, %v1914
        %1916 = vmatmul.bf16.gmra.mxu0 %v270
        %v1917 = vpop.f32.mrf.mxu0
        %v1918 = vadd.f32 0.0, %v1917
        %v1919 = vpop.f32.mrf.mxu0
        %v1920 = vadd.f32 0.0, %v1919
        %1921 = vmatmul.bf16.gmra.mxu0 %v271
        %v1922 = vpop.f32.mrf.mxu0
        %v1923 = vadd.f32 0.0, %v1922
        %v1924 = vpop.f32.mrf.mxu0
        %v1925 = vadd.f32 0.0, %v1924
        %1926 = vmatmul.bf16.gmra.mxu0 %v272
        %v1927 = vpop.f32.mrf.mxu0
        %v1928 = vadd.f32 0.0, %v1927
        %v1929 = vpop.f32.mrf.mxu0
        %v1930 = vadd.f32 0.0, %v1929
        %1931 = vmatmul.bf16.gmra.mxu0 %v273
        %v1932 = vpop.f32.mrf.mxu0
        %v1933 = vadd.f32 0.0, %v1932
        %v1934 = vpop.f32.mrf.mxu0
        %v1935 = vadd.f32 0.0, %v1934
        %1936 = vmatmul.bf16.gmra.mxu0 %v274
        %v1937 = vpop.f32.mrf.mxu0
        %v1938 = vadd.f32 0.0, %v1937
        %v1939 = vpop.f32.mrf.mxu0
        %v1940 = vadd.f32 0.0, %v1939
        %1941 = vdwg.mxu0
        %s1942 = scalar_lea.vmem %s2, 128
        %v1943 = vld [vmem:[%s1942] sm:$0xf]
        %v1944 = vld [vmem:[%s1942 + $0x4] sm:$0xf]
        %v1945 = vld [vmem:[%s1942 + $0x8] sm:$0xf]
        %v1946 = vld [vmem:[%s1942 + $0xc] sm:$0xf]
        %v1947 = vld [vmem:[%s1942 + $0x10] sm:$0xf]
        %v1948 = vld [vmem:[%s1942 + $0x14] sm:$0xf]
        %v1949 = vld [vmem:[%s1942 + $0x18] sm:$0xf]
        %v1950 = vld [vmem:[%s1942 + $0x1c] sm:$0xf]
        %v1951 = vld [vmem:[%s1942 + $0x20] sm:$0xf]
        %v1952 = vld [vmem:[%s1942 + $0x24] sm:$0xf]
        %v1953 = vld [vmem:[%s1942 + $0x28] sm:$0xf]
        %v1954 = vld [vmem:[%s1942 + $0x2c] sm:$0xf]
        %v1955 = vld [vmem:[%s1942 + $0x30] sm:$0xf]
        %v1956 = vld [vmem:[%s1942 + $0x34] sm:$0xf]
        %v1957 = vld [vmem:[%s1942 + $0x38] sm:$0xf]
        %v1958 = vld [vmem:[%s1942 + $0x3c] sm:$0xf]
        %v1975 = vunpack.c.l.b16 %v1943
        %v1976 = vunpack.c.l.b16 %v1944
        %v1977 = vunpack.c.l.b16 %v1945
        %v1978 = vunpack.c.l.b16 %v1946
        %v1979 = vunpack.c.l.b16 %v1947
        %v1980 = vunpack.c.l.b16 %v1948
        %v1981 = vunpack.c.l.b16 %v1949
        %v1982 = vunpack.c.l.b16 %v1950
        %v1983 = vunpack.c.l.b16 %v1951
        %v1984 = vunpack.c.l.b16 %v1952
        %v1985 = vunpack.c.l.b16 %v1953
        %v1986 = vunpack.c.l.b16 %v1954
        %v1987 = vunpack.c.l.b16 %v1955
        %v1988 = vunpack.c.l.b16 %v1956
        %v1989 = vunpack.c.l.b16 %v1957
        %v1990 = vunpack.c.l.b16 %v1958
        %v1991 = vpack.c.b16 %v1976, %v1975
        %v1992 = vpack.c.b16 %v1978, %v1977
        %v1993 = vpack.c.b16 %v1980, %v1979
        %v1994 = vpack.c.b16 %v1982, %v1981
        %v1995 = vpack.c.b16 %v1984, %v1983
        %v1996 = vpack.c.b16 %v1986, %v1985
        %v1997 = vpack.c.b16 %v1988, %v1987
        %v1998 = vpack.c.b16 %v1990, %v1989
        %2007 = vmatpush.bf16.msra.mxu0 %v1998
        %2008 = vmatpush.bf16.msra.mxu0 %v1997
        %2009 = vmatpush.bf16.msra.mxu0 %v1996
        %2010 = vmatpush.bf16.msra.mxu0 %v1995
        %2011 = vmatpush.bf16.msra.mxu0 %v1994
        %2012 = vmatpush.bf16.msra.mxu0 %v1993
        %2013 = vmatpush.bf16.msra.mxu0 %v1992
        %2014 = vmatpush.bf16.msra.mxu0 %v1991
        %2015 = vmatmul.bf16.gmra.mxu0 %v267
        %v2016 = vpop.f32.mrf.mxu0
        %v2017 = vadd.f32 0.0, %v2016
        %v2018 = vpop.f32.mrf.mxu0
        %v2019 = vadd.f32 0.0, %v2018
        %2020 = vmatmul.bf16.gmra.mxu0 %v268
        %v2021 = vpop.f32.mrf.mxu0
        %v2022 = vadd.f32 0.0, %v2021
        %v2023 = vpop.f32.mrf.mxu0
        %v2024 = vadd.f32 0.0, %v2023
        %2025 = vmatmul.bf16.gmra.mxu0 %v269
        %v2026 = vpop.f32.mrf.mxu0
        %v2027 = vadd.f32 0.0, %v2026
        %v2028 = vpop.f32.mrf.mxu0
        %v2029 = vadd.f32 0.0, %v2028
        %2030 = vmatmul.bf16.gmra.mxu0 %v270
        %v2031 = vpop.f32.mrf.mxu0
        %v2032 = vadd.f32 0.0, %v2031
        %v2033 = vpop.f32.mrf.mxu0
        %v2034 = vadd.f32 0.0, %v2033
        %2035 = vmatmul.bf16.gmra.mxu0 %v271
        %v2036 = vpop.f32.mrf.mxu0
        %v2037 = vadd.f32 0.0, %v2036
        %v2038 = vpop.f32.mrf.mxu0
        %v2039 = vadd.f32 0.0, %v2038
        %2040 = vmatmul.bf16.gmra.mxu0 %v272
        %v2041 = vpop.f32.mrf.mxu0
        %v2042 = vadd.f32 0.0, %v2041
        %v2043 = vpop.f32.mrf.mxu0
        %v2044 = vadd.f32 0.0, %v2043
        %2045 = vmatmul.bf16.gmra.mxu0 %v273
        %v2046 = vpop.f32.mrf.mxu0
        %v2047 = vadd.f32 0.0, %v2046
        %v2048 = vpop.f32.mrf.mxu0
        %v2049 = vadd.f32 0.0, %v2048
        %2050 = vmatmul.bf16.gmra.mxu0 %v274
        %v2051 = vpop.f32.mrf.mxu0
        %v2052 = vadd.f32 0.0, %v2051
        %v2053 = vpop.f32.mrf.mxu0
        %v2054 = vadd.f32 0.0, %v2053
        %2055 = vdwg.mxu0
        %s2056 = scalar_lea.vmem %s3, 128
        %v2057 = vld [vmem:[%s2056] sm:$0xf]
        %v2058 = vld [vmem:[%s2056 + $0x4] sm:$0xf]
        %v2059 = vld [vmem:[%s2056 + $0x8] sm:$0xf]
        %v2060 = vld [vmem:[%s2056 + $0xc] sm:$0xf]
        %v2061 = vld [vmem:[%s2056 + $0x10] sm:$0xf]
        %v2062 = vld [vmem:[%s2056 + $0x14] sm:$0xf]
        %v2063 = vld [vmem:[%s2056 + $0x18] sm:$0xf]
        %v2064 = vld [vmem:[%s2056 + $0x1c] sm:$0xf]
        %v2065 = vld [vmem:[%s2056 + $0x20] sm:$0xf]
        %v2066 = vld [vmem:[%s2056 + $0x24] sm:$0xf]
        %v2067 = vld [vmem:[%s2056 + $0x28] sm:$0xf]
        %v2068 = vld [vmem:[%s2056 + $0x2c] sm:$0xf]
        %v2069 = vld [vmem:[%s2056 + $0x30] sm:$0xf]
        %v2070 = vld [vmem:[%s2056 + $0x34] sm:$0xf]
        %v2071 = vld [vmem:[%s2056 + $0x38] sm:$0xf]
        %v2072 = vld [vmem:[%s2056 + $0x3c] sm:$0xf]
        %v2089 = vunpack.c.l.b16 %v2057
        %v2090 = vunpack.c.l.b16 %v2058
        %v2091 = vunpack.c.l.b16 %v2059
        %v2092 = vunpack.c.l.b16 %v2060
        %v2093 = vunpack.c.l.b16 %v2061
        %v2094 = vunpack.c.l.b16 %v2062
        %v2095 = vunpack.c.l.b16 %v2063
        %v2096 = vunpack.c.l.b16 %v2064
        %v2097 = vunpack.c.l.b16 %v2065
        %v2098 = vunpack.c.l.b16 %v2066
        %v2099 = vunpack.c.l.b16 %v2067
        %v2100 = vunpack.c.l.b16 %v2068
        %v2101 = vunpack.c.l.b16 %v2069
        %v2102 = vunpack.c.l.b16 %v2070
        %v2103 = vunpack.c.l.b16 %v2071
        %v2104 = vunpack.c.l.b16 %v2072
        %v2105 = vpack.c.b16 %v2090, %v2089
        %v2106 = vpack.c.b16 %v2092, %v2091
        %v2107 = vpack.c.b16 %v2094, %v2093
        %v2108 = vpack.c.b16 %v2096, %v2095
        %v2109 = vpack.c.b16 %v2098, %v2097
        %v2110 = vpack.c.b16 %v2100, %v2099
        %v2111 = vpack.c.b16 %v2102, %v2101
        %v2112 = vpack.c.b16 %v2104, %v2103
        %2121 = vmatpush.bf16.msra.mxu0 %v2112
        %2122 = vmatpush.bf16.msra.mxu0 %v2111
        %2123 = vmatpush.bf16.msra.mxu0 %v2110
        %2124 = vmatpush.bf16.msra.mxu0 %v2109
        %2125 = vmatpush.bf16.msra.mxu0 %v2108
        %2126 = vmatpush.bf16.msra.mxu0 %v2107
        %2127 = vmatpush.bf16.msra.mxu0 %v2106
        %2128 = vmatpush.bf16.msra.mxu0 %v2105
        %2129 = vmatmul.bf16.gmra.mxu0 %v267
        %v2130 = vpop.f32.mrf.mxu0
        %v2131 = vadd.f32 0.0, %v2130
        %v2132 = vpop.f32.mrf.mxu0
        %v2133 = vadd.f32 0.0, %v2132
        %2134 = vmatmul.bf16.gmra.mxu0 %v268
        %v2135 = vpop.f32.mrf.mxu0
        %v2136 = vadd.f32 0.0, %v2135
        %v2137 = vpop.f32.mrf.mxu0
        %v2138 = vadd.f32 0.0, %v2137
        %2139 = vmatmul.bf16.gmra.mxu0 %v269
        %v2140 = vpop.f32.mrf.mxu0
        %v2141 = vadd.f32 0.0, %v2140
        %v2142 = vpop.f32.mrf.mxu0
        %v2143 = vadd.f32 0.0, %v2142
        %2144 = vmatmul.bf16.gmra.mxu0 %v270
        %v2145 = vpop.f32.mrf.mxu0
        %v2146 = vadd.f32 0.0, %v2145
        %v2147 = vpop.f32.mrf.mxu0
        %v2148 = vadd.f32 0.0, %v2147
        %2149 = vmatmul.bf16.gmra.mxu0 %v271
        %v2150 = vpop.f32.mrf.mxu0
        %v2151 = vadd.f32 0.0, %v2150
        %v2152 = vpop.f32.mrf.mxu0
        %v2153 = vadd.f32 0.0, %v2152
        %2154 = vmatmul.bf16.gmra.mxu0 %v272
        %v2155 = vpop.f32.mrf.mxu0
        %v2156 = vadd.f32 0.0, %v2155
        %v2157 = vpop.f32.mrf.mxu0
        %v2158 = vadd.f32 0.0, %v2157
        %2159 = vmatmul.bf16.gmra.mxu0 %v273
        %v2160 = vpop.f32.mrf.mxu0
        %v2161 = vadd.f32 0.0, %v2160
        %v2162 = vpop.f32.mrf.mxu0
        %v2163 = vadd.f32 0.0, %v2162
        %2164 = vmatmul.bf16.gmra.mxu0 %v274
        %v2165 = vpop.f32.mrf.mxu0
        %v2166 = vadd.f32 0.0, %v2165
        %v2167 = vpop.f32.mrf.mxu0
        %v2168 = vadd.f32 0.0, %v2167
        %2169 = vdwg.mxu0
        %v2170 = vpack.c.bf16 %v1905, %v1903
        %v2171 = vpack.c.bf16 %v1910, %v1908
        %v2172 = vpack.c.bf16 %v1915, %v1913
        %v2173 = vpack.c.bf16 %v1920, %v1918
        %v2174 = vpack.c.bf16 %v1925, %v1923
        %v2175 = vpack.c.bf16 %v1930, %v1928
        %v2176 = vpack.c.bf16 %v1935, %v1933
        %v2177 = vpack.c.bf16 %v1940, %v1938
        %v2178 = vpack.c.bf16 %v2019, %v2017
        %v2179 = vpack.c.bf16 %v2024, %v2022
        %v2180 = vpack.c.bf16 %v2029, %v2027
        %v2181 = vpack.c.bf16 %v2034, %v2032
        %v2182 = vpack.c.bf16 %v2039, %v2037
        %v2183 = vpack.c.bf16 %v2044, %v2042
        %v2184 = vpack.c.bf16 %v2049, %v2047
        %v2185 = vpack.c.bf16 %v2054, %v2052
        %v2187 = vsel %vm630, %v2170, 0
        %v2190 = vsel %vm630, %v2171, 0
        %v2193 = vsel %vm630, %v2172, 0
        %v2196 = vsel %vm630, %v2173, 0
        %v2199 = vsel %vm630, %v2174, 0
        %v2202 = vsel %vm630, %v2175, 0
        %v2205 = vsel %vm630, %v2176, 0
        %v2208 = vsel %vm630, %v2177, 0
        %v2211 = vsel %vm630, %v2178, 0
        %v2214 = vsel %vm630, %v2179, 0
        %v2217 = vsel %vm630, %v2180, 0
        %v2220 = vsel %vm630, %v2181, 0
        %v2223 = vsel %vm630, %v2182, 0
        %v2226 = vsel %vm630, %v2183, 0
        %v2229 = vsel %vm630, %v2184, 0
        %v2232 = vsel %vm630, %v2185, 0
        %2234 = vmatpush.bf16.xpose.msra.mxu0 %v2232
        %2235 = vmatpush.bf16.xpose.msra.mxu0 %v2229
        %2236 = vmatpush.bf16.xpose.msra.mxu0 %v2226
        %2237 = vmatpush.bf16.xpose.msra.mxu0 %v2223
        %2238 = vmatpush.bf16.xpose.msra.mxu0 %v2220
        %2239 = vmatpush.bf16.xpose.msra.mxu0 %v2217
        %2240 = vmatpush.bf16.xpose.msra.mxu0 %v2214
        %2241 = vmatpush.bf16.xpose.msra.mxu0 %v2211
        %2242 = vmatmul.bf16.gmra.mxu0 %v2187
        %v2243 = vpop.f32.mrf.mxu0
        %v2244 = vadd.f32 0.0, %v2243
        %v2245 = vpop.f32.mrf.mxu0
        %v2246 = vadd.f32 0.0, %v2245
        %2247 = vmatmul.bf16.gmra.mxu0 %v2190
        %v2248 = vpop.f32.mrf.mxu0
        %v2249 = vadd.f32 0.0, %v2248
        %v2250 = vpop.f32.mrf.mxu0
        %v2251 = vadd.f32 0.0, %v2250
        %2252 = vmatmul.bf16.gmra.mxu0 %v2193
        %v2253 = vpop.f32.mrf.mxu0
        %v2254 = vadd.f32 0.0, %v2253
        %v2255 = vpop.f32.mrf.mxu0
        %v2256 = vadd.f32 0.0, %v2255
        %2257 = vmatmul.bf16.gmra.mxu0 %v2196
        %v2258 = vpop.f32.mrf.mxu0
        %v2259 = vadd.f32 0.0, %v2258
        %v2260 = vpop.f32.mrf.mxu0
        %v2261 = vadd.f32 0.0, %v2260
        %2262 = vmatmul.bf16.gmra.mxu0 %v2199
        %v2263 = vpop.f32.mrf.mxu0
        %v2264 = vadd.f32 0.0, %v2263
        %v2265 = vpop.f32.mrf.mxu0
        %v2266 = vadd.f32 0.0, %v2265
        %2267 = vmatmul.bf16.gmra.mxu0 %v2202
        %v2268 = vpop.f32.mrf.mxu0
        %v2269 = vadd.f32 0.0, %v2268
        %v2270 = vpop.f32.mrf.mxu0
        %v2271 = vadd.f32 0.0, %v2270
        %2272 = vmatmul.bf16.gmra.mxu0 %v2205
        %v2273 = vpop.f32.mrf.mxu0
        %v2274 = vadd.f32 0.0, %v2273
        %v2275 = vpop.f32.mrf.mxu0
        %v2276 = vadd.f32 0.0, %v2275
        %2277 = vmatmul.bf16.gmra.mxu0 %v2208
        %v2278 = vpop.f32.mrf.mxu0
        %v2279 = vadd.f32 0.0, %v2278
        %v2280 = vpop.f32.mrf.mxu0
        %v2281 = vadd.f32 0.0, %v2280
        %2282 = vdwg.mxu0
        %v2283 = vmul.f32 %v2244, 0.17677669
        %v2284 = vmul.f32 %v2246, 0.17677669
        %v2285 = vmul.f32 %v2249, 0.17677669
        %v2286 = vmul.f32 %v2251, 0.17677669
        %v2287 = vmul.f32 %v2254, 0.17677669
        %v2288 = vmul.f32 %v2256, 0.17677669
        %v2289 = vmul.f32 %v2259, 0.17677669
        %v2290 = vmul.f32 %v2261, 0.17677669
        %v2291 = vmul.f32 %v2264, 0.17677669
        %v2292 = vmul.f32 %v2266, 0.17677669
        %v2293 = vmul.f32 %v2269, 0.17677669
        %v2294 = vmul.f32 %v2271, 0.17677669
        %v2295 = vmul.f32 %v2274, 0.17677669
        %v2296 = vmul.f32 %v2276, 0.17677669
        %v2297 = vmul.f32 %v2279, 0.17677669
        %v2298 = vmul.f32 %v2281, 0.17677669
        %2299 = vmax.xlane.f32.xlu0 %v2283
        %v2300 = vpop.xlane.xlu0 %2299
        %2301 = vmax.xlane.f32.xlu0 %v2284
        %v2302 = vpop.xlane.xlu0 %2301
        %2303 = vmax.xlane.f32.xlu0 %v2285
        %v2304 = vpop.xlane.xlu0 %2303
        %2305 = vmax.xlane.f32.xlu0 %v2286
        %v2306 = vpop.xlane.xlu0 %2305
        %2307 = vmax.xlane.f32.xlu0 %v2287
        %v2308 = vpop.xlane.xlu0 %2307
        %2309 = vmax.xlane.f32.xlu0 %v2288
        %v2310 = vpop.xlane.xlu0 %2309
        %2311 = vmax.xlane.f32.xlu0 %v2289
        %v2312 = vpop.xlane.xlu0 %2311
        %2313 = vmax.xlane.f32.xlu0 %v2290
        %v2314 = vpop.xlane.xlu0 %2313
        %2315 = vmax.xlane.f32.xlu0 %v2291
        %v2316 = vpop.xlane.xlu0 %2315
        %2317 = vmax.xlane.f32.xlu0 %v2292
        %v2318 = vpop.xlane.xlu0 %2317
        %2319 = vmax.xlane.f32.xlu0 %v2293
        %v2320 = vpop.xlane.xlu0 %2319
        %2321 = vmax.xlane.f32.xlu0 %v2294
        %v2322 = vpop.xlane.xlu0 %2321
        %2323 = vmax.xlane.f32.xlu0 %v2295
        %v2324 = vpop.xlane.xlu0 %2323
        %2325 = vmax.xlane.f32.xlu0 %v2296
        %v2326 = vpop.xlane.xlu0 %2325
        %2327 = vmax.xlane.f32.xlu0 %v2297
        %v2328 = vpop.xlane.xlu0 %2327
        %2329 = vmax.xlane.f32.xlu0 %v2298
        %v2330 = vpop.xlane.xlu0 %2329
        %v2331 = vsub.f32 %v2283, %v2300
        %v2332 = vsub.f32 %v2284, %v2302
        %v2333 = vsub.f32 %v2285, %v2304
        %v2334 = vsub.f32 %v2286, %v2306
        %v2335 = vsub.f32 %v2287, %v2308
        %v2336 = vsub.f32 %v2288, %v2310
        %v2337 = vsub.f32 %v2289, %v2312
        %v2338 = vsub.f32 %v2290, %v2314
        %v2339 = vsub.f32 %v2291, %v2316
        %v2340 = vsub.f32 %v2292, %v2318
        %v2341 = vsub.f32 %v2293, %v2320
        %v2342 = vsub.f32 %v2294, %v2322
        %v2343 = vsub.f32 %v2295, %v2324
        %v2344 = vsub.f32 %v2296, %v2326
        %v2345 = vsub.f32 %v2297, %v2328
        %v2346 = vsub.f32 %v2298, %v2330
        %v2347 = vmul.f32 %v2331, 1.442695
        %v2348 = vpow.pop %v2347
        %v2349 = vmul.f32 %v2332, 1.442695
        %v2350 = vpow.pop %v2349
        %v2351 = vmul.f32 %v2333, 1.442695
        %v2352 = vpow.pop %v2351
        %v2353 = vmul.f32 %v2334, 1.442695
        %v2354 = vpow.pop %v2353
        %v2355 = vmul.f32 %v2335, 1.442695
        %v2356 = vpow.pop %v2355
        %v2357 = vmul.f32 %v2336, 1.442695
        %v2358 = vpow.pop %v2357
        %v2359 = vmul.f32 %v2337, 1.442695
        %v2360 = vpow.pop %v2359
        %v2361 = vmul.f32 %v2338, 1.442695
        %v2362 = vpow.pop %v2361
        %v2363 = vmul.f32 %v2339, 1.442695
        %v2364 = vpow.pop %v2363
        %v2365 = vmul.f32 %v2340, 1.442695
        %v2366 = vpow.pop %v2365
        %v2367 = vmul.f32 %v2341, 1.442695
        %v2368 = vpow.pop %v2367
        %v2369 = vmul.f32 %v2342, 1.442695
        %v2370 = vpow.pop %v2369
        %v2371 = vmul.f32 %v2343, 1.442695
        %v2372 = vpow.pop %v2371
        %v2373 = vmul.f32 %v2344, 1.442695
        %v2374 = vpow.pop %v2373
        %v2375 = vmul.f32 %v2345, 1.442695
        %v2376 = vpow.pop %v2375
        %v2377 = vmul.f32 %v2346, 1.442695
        %v2378 = vpow.pop %v2377
        %2379 = vadd.xlane.f32.xlu0 %v2348
        %v2380 = vpop.xlane.xlu0 %2379
        %2381 = vadd.xlane.f32.xlu0 %v2350
        %v2382 = vpop.xlane.xlu0 %2381
        %2383 = vadd.xlane.f32.xlu0 %v2352
        %v2384 = vpop.xlane.xlu0 %2383
        %2385 = vadd.xlane.f32.xlu0 %v2354
        %v2386 = vpop.xlane.xlu0 %2385
        %2387 = vadd.xlane.f32.xlu0 %v2356
        %v2388 = vpop.xlane.xlu0 %2387
        %2389 = vadd.xlane.f32.xlu0 %v2358
        %v2390 = vpop.xlane.xlu0 %2389
        %2391 = vadd.xlane.f32.xlu0 %v2360
        %v2392 = vpop.xlane.xlu0 %2391
        %2393 = vadd.xlane.f32.xlu0 %v2362
        %v2394 = vpop.xlane.xlu0 %2393
        %2395 = vadd.xlane.f32.xlu0 %v2364
        %v2396 = vpop.xlane.xlu0 %2395
        %2397 = vadd.xlane.f32.xlu0 %v2366
        %v2398 = vpop.xlane.xlu0 %2397
        %2399 = vadd.xlane.f32.xlu0 %v2368
        %v2400 = vpop.xlane.xlu0 %2399
        %2401 = vadd.xlane.f32.xlu0 %v2370
        %v2402 = vpop.xlane.xlu0 %2401
        %2403 = vadd.xlane.f32.xlu0 %v2372
        %v2404 = vpop.xlane.xlu0 %2403
        %2405 = vadd.xlane.f32.xlu0 %v2374
        %v2406 = vpop.xlane.xlu0 %2405
        %2407 = vadd.xlane.f32.xlu0 %v2376
        %v2408 = vpop.xlane.xlu0 %2407
        %2409 = vadd.xlane.f32.xlu0 %v2378
        %v2410 = vpop.xlane.xlu0 %2409
        %v2411 = vrcp.pop %v2380
        %v2412 = vrcp.pop %v2382
        %v2413 = vrcp.pop %v2384
        %v2414 = vrcp.pop %v2386
        %v2415 = vrcp.pop %v2388
        %v2416 = vrcp.pop %v2390
        %v2417 = vrcp.pop %v2392
        %v2418 = vrcp.pop %v2394
        %v2419 = vrcp.pop %v2396
        %v2420 = vrcp.pop %v2398
        %v2421 = vrcp.pop %v2400
        %v2422 = vrcp.pop %v2402
        %v2423 = vrcp.pop %v2404
        %v2424 = vrcp.pop %v2406
        %v2425 = vrcp.pop %v2408
        %v2426 = vrcp.pop %v2410
        %v2427 = vmul.f32 %v2348, %v2411
        %v2428 = vmul.f32 %v2350, %v2412
        %v2429 = vmul.f32 %v2352, %v2413
        %v2430 = vmul.f32 %v2354, %v2414
        %v2431 = vmul.f32 %v2356, %v2415
        %v2432 = vmul.f32 %v2358, %v2416
        %v2433 = vmul.f32 %v2360, %v2417
        %v2434 = vmul.f32 %v2362, %v2418
        %v2435 = vmul.f32 %v2364, %v2419
        %v2436 = vmul.f32 %v2366, %v2420
        %v2437 = vmul.f32 %v2368, %v2421
        %v2438 = vmul.f32 %v2370, %v2422
        %v2439 = vmul.f32 %v2372, %v2423
        %v2440 = vmul.f32 %v2374, %v2424
        %v2441 = vmul.f32 %v2376, %v2425
        %v2442 = vmul.f32 %v2378, %v2426
        %v2443 = vpack.c.bf16 %v2428, %v2427
        %v2444 = vpack.c.bf16 %v2430, %v2429
        %v2445 = vpack.c.bf16 %v2432, %v2431
        %v2446 = vpack.c.bf16 %v2434, %v2433
        %v2447 = vpack.c.bf16 %v2436, %v2435
        %v2448 = vpack.c.bf16 %v2438, %v2437
        %v2449 = vpack.c.bf16 %v2440, %v2439
        %v2450 = vpack.c.bf16 %v2442, %v2441
        %v2451 = vpack.c.bf16 %v2133, %v2131
        %v2452 = vpack.c.bf16 %v2138, %v2136
        %v2453 = vpack.c.bf16 %v2143, %v2141
        %v2454 = vpack.c.bf16 %v2148, %v2146
        %v2455 = vpack.c.bf16 %v2153, %v2151
        %v2456 = vpack.c.bf16 %v2158, %v2156
        %v2457 = vpack.c.bf16 %v2163, %v2161
        %v2458 = vpack.c.bf16 %v2168, %v2166
        %2459 = vmatpush.bf16.msra.mxu0 %v2458
        %2460 = vmatpush.bf16.msra.mxu0 %v2457
        %2461 = vmatpush.bf16.msra.mxu0 %v2456
        %2462 = vmatpush.bf16.msra.mxu0 %v2455
        %2463 = vmatpush.bf16.msra.mxu0 %v2454
        %2464 = vmatpush.bf16.msra.mxu0 %v2453
        %2465 = vmatpush.bf16.msra.mxu0 %v2452
        %2466 = vmatpush.bf16.msra.mxu0 %v2451
        %2467 = vmatmul.bf16.gmra.mxu0 %v2443
        %v2468 = vpop.f32.mrf.mxu0
        %v2469 = vadd.f32 0.0, %v2468
        %v2470 = vpop.f32.mrf.mxu0
        %v2471 = vadd.f32 0.0, %v2470
        %2472 = vmatmul.bf16.gmra.mxu0 %v2444
        %v2473 = vpop.f32.mrf.mxu0
        %v2474 = vadd.f32 0.0, %v2473
        %v2475 = vpop.f32.mrf.mxu0
        %v2476 = vadd.f32 0.0, %v2475
        %2477 = vmatmul.bf16.gmra.mxu0 %v2445
        %v2478 = vpop.f32.mrf.mxu0
        %v2479 = vadd.f32 0.0, %v2478
        %v2480 = vpop.f32.mrf.mxu0
        %v2481 = vadd.f32 0.0, %v2480
        %2482 = vmatmul.bf16.gmra.mxu0 %v2446
        %v2483 = vpop.f32.mrf.mxu0
        %v2484 = vadd.f32 0.0, %v2483
        %v2485 = vpop.f32.mrf.mxu0
        %v2486 = vadd.f32 0.0, %v2485
        %2487 = vmatmul.bf16.gmra.mxu0 %v2447
        %v2488 = vpop.f32.mrf.mxu0
        %v2489 = vadd.f32 0.0, %v2488
        %v2490 = vpop.f32.mrf.mxu0
        %v2491 = vadd.f32 0.0, %v2490
        %2492 = vmatmul.bf16.gmra.mxu0 %v2448
        %v2493 = vpop.f32.mrf.mxu0
        %v2494 = vadd.f32 0.0, %v2493
        %v2495 = vpop.f32.mrf.mxu0
        %v2496 = vadd.f32 0.0, %v2495
        %2497 = vmatmul.bf16.gmra.mxu0 %v2449
        %v2498 = vpop.f32.mrf.mxu0
        %v2499 = vadd.f32 0.0, %v2498
        %v2500 = vpop.f32.mrf.mxu0
        %v2501 = vadd.f32 0.0, %v2500
        %2502 = vmatmul.bf16.gmra.mxu0 %v2450
        %v2503 = vpop.f32.mrf.mxu0
        %v2504 = vadd.f32 0.0, %v2503
        %v2505 = vpop.f32.mrf.mxu0
        %v2506 = vadd.f32 0.0, %v2505
        %2507 = vdwg.mxu0
        %v2508 = vpack.c.bf16 %v2471, %v2469
        %v2509 = vpack.c.bf16 %v2476, %v2474
        %v2510 = vpack.c.bf16 %v2481, %v2479
        %v2511 = vpack.c.bf16 %v2486, %v2484
        %v2512 = vpack.c.bf16 %v2491, %v2489
        %v2513 = vpack.c.bf16 %v2496, %v2494
        %v2514 = vpack.c.bf16 %v2501, %v2499
        %v2515 = vpack.c.bf16 %v2506, %v2504
        %s2516 = scalar_lea.vmem %s4, 32
        %v2517 = vld [vmem:[%s2516] sm:$0xf]
        %v2518 = vld [vmem:[%s2516 + $0x4] sm:$0xf]
        %v2519 = vld [vmem:[%s2516 + $0x8] sm:$0xf]
        %v2520 = vld [vmem:[%s2516 + $0xc] sm:$0xf]
        %v2525 = vunpack.c.l.b16 %v2517
        %v2526 = vunpack.c.l.b16 %v2518
        %v2527 = vunpack.c.l.b16 %v2519
        %v2528 = vunpack.c.l.b16 %v2520
        %v2529 = vpack.c.b16 %v2526, %v2525
        %v2530 = vpack.c.b16 %v2528, %v2527
        %v2534 = vsel %vm630, %v2508, 0
        %v2537 = vsel %vm630, %v2509, 0
        %v2540 = vsel %vm630, %v2510, 0
        %v2543 = vsel %vm630, %v2511, 0
        %v2546 = vsel %vm630, %v2512, 0
        %v2549 = vsel %vm630, %v2513, 0
        %v2552 = vsel %vm630, %v2514, 0
        %v2555 = vsel %vm630, %v2515, 0
        %2557 = vmatpush.bf16.msra.mxu0 0
        %2558 = vmatpush.bf16.msra.mxu0 0
        %2559 = vmatpush.bf16.msra.mxu0 0
        %2560 = vmatpush.bf16.msra.mxu0 0
        %2561 = vmatpush.bf16.msra.mxu0 0
        %2562 = vmatpush.bf16.msra.mxu0 0
        %2563 = vmatpush.bf16.msra.mxu0 %v2530
        %2564 = vmatpush.bf16.msra.mxu0 %v2529
        %2565 = vmatmul.bf16.gmra.mxu0 %v2534
        %v2566 = vpop.f32.mrf.mxu0
        %v2567 = vadd.f32 0.0, %v2566
        %v2568 = vpop.f32.mrf.mxu0
        %v2569 = vadd.f32 0.0, %v2568
        %2570 = vmatmul.bf16.gmra.mxu0 %v2537
        %v2571 = vpop.f32.mrf.mxu0
        %v2572 = vadd.f32 0.0, %v2571
        %v2573 = vpop.f32.mrf.mxu0
        %v2574 = vadd.f32 0.0, %v2573
        %2575 = vmatmul.bf16.gmra.mxu0 %v2540
        %v2576 = vpop.f32.mrf.mxu0
        %v2577 = vadd.f32 0.0, %v2576
        %v2578 = vpop.f32.mrf.mxu0
        %v2579 = vadd.f32 0.0, %v2578
        %2580 = vmatmul.bf16.gmra.mxu0 %v2543
        %v2581 = vpop.f32.mrf.mxu0
        %v2582 = vadd.f32 0.0, %v2581
        %v2583 = vpop.f32.mrf.mxu0
        %v2584 = vadd.f32 0.0, %v2583
        %2585 = vmatmul.bf16.gmra.mxu0 %v2546
        %v2586 = vpop.f32.mrf.mxu0
        %v2587 = vadd.f32 0.0, %v2586
        %v2588 = vpop.f32.mrf.mxu0
        %v2589 = vadd.f32 0.0, %v2588
        %2590 = vmatmul.bf16.gmra.mxu0 %v2549
        %v2591 = vpop.f32.mrf.mxu0
        %v2592 = vadd.f32 0.0, %v2591
        %v2593 = vpop.f32.mrf.mxu0
        %v2594 = vadd.f32 0.0, %v2593
        %2595 = vmatmul.bf16.gmra.mxu0 %v2552
        %v2596 = vpop.f32.mrf.mxu0
        %v2597 = vadd.f32 0.0, %v2596
        %v2598 = vpop.f32.mrf.mxu0
        %v2599 = vadd.f32 0.0, %v2598
        %2600 = vmatmul.bf16.gmra.mxu0 %v2555
        %v2601 = vpop.f32.mrf.mxu0
        %v2602 = vadd.f32 0.0, %v2601
        %v2603 = vpop.f32.mrf.mxu0
        %v2604 = vadd.f32 0.0, %v2603
        %2605 = vdwg.mxu0
        %v2606 = vadd.f32 %v1789, %v2567
        %v2607 = vadd.f32 %v1791, %v2569
        %v2608 = vadd.f32 %v1794, %v2572
        %v2609 = vadd.f32 %v1796, %v2574
        %v2610 = vadd.f32 %v1799, %v2577
        %v2611 = vadd.f32 %v1801, %v2579
        %v2612 = vadd.f32 %v1804, %v2582
        %v2613 = vadd.f32 %v1806, %v2584
        %v2614 = vadd.f32 %v1809, %v2587
        %v2615 = vadd.f32 %v1811, %v2589
        %v2616 = vadd.f32 %v1814, %v2592
        %v2617 = vadd.f32 %v1816, %v2594
        %v2618 = vadd.f32 %v1819, %v2597
        %v2619 = vadd.f32 %v1821, %v2599
        %v2620 = vadd.f32 %v1824, %v2602
        %v2621 = vadd.f32 %v1826, %v2604
        %s2622 = scalar_lea.vmem %s1, 192
        %v2623 = vld [vmem:[%s2622] sm:$0xf]
        %v2624 = vld [vmem:[%s2622 + $0x4] sm:$0xf]
        %v2625 = vld [vmem:[%s2622 + $0x8] sm:$0xf]
        %v2626 = vld [vmem:[%s2622 + $0xc] sm:$0xf]
        %v2627 = vld [vmem:[%s2622 + $0x10] sm:$0xf]
        %v2628 = vld [vmem:[%s2622 + $0x14] sm:$0xf]
        %v2629 = vld [vmem:[%s2622 + $0x18] sm:$0xf]
        %v2630 = vld [vmem:[%s2622 + $0x1c] sm:$0xf]
        %v2631 = vld [vmem:[%s2622 + $0x20] sm:$0xf]
        %v2632 = vld [vmem:[%s2622 + $0x24] sm:$0xf]
        %v2633 = vld [vmem:[%s2622 + $0x28] sm:$0xf]
        %v2634 = vld [vmem:[%s2622 + $0x2c] sm:$0xf]
        %v2635 = vld [vmem:[%s2622 + $0x30] sm:$0xf]
        %v2636 = vld [vmem:[%s2622 + $0x34] sm:$0xf]
        %v2637 = vld [vmem:[%s2622 + $0x38] sm:$0xf]
        %v2638 = vld [vmem:[%s2622 + $0x3c] sm:$0xf]
        %v2655 = vunpack.c.l.b16 %v2623
        %v2656 = vunpack.c.l.b16 %v2624
        %v2657 = vunpack.c.l.b16 %v2625
        %v2658 = vunpack.c.l.b16 %v2626
        %v2659 = vunpack.c.l.b16 %v2627
        %v2660 = vunpack.c.l.b16 %v2628
        %v2661 = vunpack.c.l.b16 %v2629
        %v2662 = vunpack.c.l.b16 %v2630
        %v2663 = vunpack.c.l.b16 %v2631
        %v2664 = vunpack.c.l.b16 %v2632
        %v2665 = vunpack.c.l.b16 %v2633
        %v2666 = vunpack.c.l.b16 %v2634
        %v2667 = vunpack.c.l.b16 %v2635
        %v2668 = vunpack.c.l.b16 %v2636
        %v2669 = vunpack.c.l.b16 %v2637
        %v2670 = vunpack.c.l.b16 %v2638
        %v2671 = vpack.c.b16 %v2656, %v2655
        %v2672 = vpack.c.b16 %v2658, %v2657
        %v2673 = vpack.c.b16 %v2660, %v2659
        %v2674 = vpack.c.b16 %v2662, %v2661
        %v2675 = vpack.c.b16 %v2664, %v2663
        %v2676 = vpack.c.b16 %v2666, %v2665
        %v2677 = vpack.c.b16 %v2668, %v2667
        %v2678 = vpack.c.b16 %v2670, %v2669
        %2687 = vmatpush.bf16.msra.mxu0 %v2678
        %2688 = vmatpush.bf16.msra.mxu0 %v2677
        %2689 = vmatpush.bf16.msra.mxu0 %v2676
        %2690 = vmatpush.bf16.msra.mxu0 %v2675
        %2691 = vmatpush.bf16.msra.mxu0 %v2674
        %2692 = vmatpush.bf16.msra.mxu0 %v2673
        %2693 = vmatpush.bf16.msra.mxu0 %v2672
        %2694 = vmatpush.bf16.msra.mxu0 %v2671
        %2695 = vmatmul.bf16.gmra.mxu0 %v267
        %v2696 = vpop.f32.mrf.mxu0
        %v2697 = vadd.f32 0.0, %v2696
        %v2698 = vpop.f32.mrf.mxu0
        %v2699 = vadd.f32 0.0, %v2698
        %2700 = vmatmul.bf16.gmra.mxu0 %v268
        %v2701 = vpop.f32.mrf.mxu0
        %v2702 = vadd.f32 0.0, %v2701
        %v2703 = vpop.f32.mrf.mxu0
        %v2704 = vadd.f32 0.0, %v2703
        %2705 = vmatmul.bf16.gmra.mxu0 %v269
        %v2706 = vpop.f32.mrf.mxu0
        %v2707 = vadd.f32 0.0, %v2706
        %v2708 = vpop.f32.mrf.mxu0
        %v2709 = vadd.f32 0.0, %v2708
        %2710 = vmatmul.bf16.gmra.mxu0 %v270
        %v2711 = vpop.f32.mrf.mxu0
        %v2712 = vadd.f32 0.0, %v2711
        %v2713 = vpop.f32.mrf.mxu0
        %v2714 = vadd.f32 0.0, %v2713
        %2715 = vmatmul.bf16.gmra.mxu0 %v271
        %v2716 = vpop.f32.mrf.mxu0
        %v2717 = vadd.f32 0.0, %v2716
        %v2718 = vpop.f32.mrf.mxu0
        %v2719 = vadd.f32 0.0, %v2718
        %2720 = vmatmul.bf16.gmra.mxu0 %v272
        %v2721 = vpop.f32.mrf.mxu0
        %v2722 = vadd.f32 0.0, %v2721
        %v2723 = vpop.f32.mrf.mxu0
        %v2724 = vadd.f32 0.0, %v2723
        %2725 = vmatmul.bf16.gmra.mxu0 %v273
        %v2726 = vpop.f32.mrf.mxu0
        %v2727 = vadd.f32 0.0, %v2726
        %v2728 = vpop.f32.mrf.mxu0
        %v2729 = vadd.f32 0.0, %v2728
        %2730 = vmatmul.bf16.gmra.mxu0 %v274
        %v2731 = vpop.f32.mrf.mxu0
        %v2732 = vadd.f32 0.0, %v2731
        %v2733 = vpop.f32.mrf.mxu0
        %v2734 = vadd.f32 0.0, %v2733
        %2735 = vdwg.mxu0
        %s2736 = scalar_lea.vmem %s2, 192
        %v2737 = vld [vmem:[%s2736] sm:$0xf]
        %v2738 = vld [vmem:[%s2736 + $0x4] sm:$0xf]
        %v2739 = vld [vmem:[%s2736 + $0x8] sm:$0xf]
        %v2740 = vld [vmem:[%s2736 + $0xc] sm:$0xf]
        %v2741 = vld [vmem:[%s2736 + $0x10] sm:$0xf]
        %v2742 = vld [vmem:[%s2736 + $0x14] sm:$0xf]
        %v2743 = vld [vmem:[%s2736 + $0x18] sm:$0xf]
        %v2744 = vld [vmem:[%s2736 + $0x1c] sm:$0xf]
        %v2745 = vld [vmem:[%s2736 + $0x20] sm:$0xf]
        %v2746 = vld [vmem:[%s2736 + $0x24] sm:$0xf]
        %v2747 = vld [vmem:[%s2736 + $0x28] sm:$0xf]
        %v2748 = vld [vmem:[%s2736 + $0x2c] sm:$0xf]
        %v2749 = vld [vmem:[%s2736 + $0x30] sm:$0xf]
        %v2750 = vld [vmem:[%s2736 + $0x34] sm:$0xf]
        %v2751 = vld [vmem:[%s2736 + $0x38] sm:$0xf]
        %v2752 = vld [vmem:[%s2736 + $0x3c] sm:$0xf]
        %v2769 = vunpack.c.l.b16 %v2737
        %v2770 = vunpack.c.l.b16 %v2738
        %v2771 = vunpack.c.l.b16 %v2739
        %v2772 = vunpack.c.l.b16 %v2740
        %v2773 = vunpack.c.l.b16 %v2741
        %v2774 = vunpack.c.l.b16 %v2742
        %v2775 = vunpack.c.l.b16 %v2743
        %v2776 = vunpack.c.l.b16 %v2744
        %v2777 = vunpack.c.l.b16 %v2745
        %v2778 = vunpack.c.l.b16 %v2746
        %v2779 = vunpack.c.l.b16 %v2747
        %v2780 = vunpack.c.l.b16 %v2748
        %v2781 = vunpack.c.l.b16 %v2749
        %v2782 = vunpack.c.l.b16 %v2750
        %v2783 = vunpack.c.l.b16 %v2751
        %v2784 = vunpack.c.l.b16 %v2752
        %v2785 = vpack.c.b16 %v2770, %v2769
        %v2786 = vpack.c.b16 %v2772, %v2771
        %v2787 = vpack.c.b16 %v2774, %v2773
        %v2788 = vpack.c.b16 %v2776, %v2775
        %v2789 = vpack.c.b16 %v2778, %v2777
        %v2790 = vpack.c.b16 %v2780, %v2779
        %v2791 = vpack.c.b16 %v2782, %v2781
        %v2792 = vpack.c.b16 %v2784, %v2783
        %2801 = vmatpush.bf16.msra.mxu0 %v2792
        %2802 = vmatpush.bf16.msra.mxu0 %v2791
        %2803 = vmatpush.bf16.msra.mxu0 %v2790
        %2804 = vmatpush.bf16.msra.mxu0 %v2789
        %2805 = vmatpush.bf16.msra.mxu0 %v2788
        %2806 = vmatpush.bf16.msra.mxu0 %v2787
        %2807 = vmatpush.bf16.msra.mxu0 %v2786
        %2808 = vmatpush.bf16.msra.mxu0 %v2785
        %2809 = vmatmul.bf16.gmra.mxu0 %v267
        %v2810 = vpop.f32.mrf.mxu0
        %v2811 = vadd.f32 0.0, %v2810
        %v2812 = vpop.f32.mrf.mxu0
        %v2813 = vadd.f32 0.0, %v2812
        %2814 = vmatmul.bf16.gmra.mxu0 %v268
        %v2815 = vpop.f32.mrf.mxu0
        %v2816 = vadd.f32 0.0, %v2815
        %v2817 = vpop.f32.mrf.mxu0
        %v2818 = vadd.f32 0.0, %v2817
        %2819 = vmatmul.bf16.gmra.mxu0 %v269
        %v2820 = vpop.f32.mrf.mxu0
        %v2821 = vadd.f32 0.0, %v2820
        %v2822 = vpop.f32.mrf.mxu0
        %v2823 = vadd.f32 0.0, %v2822
        %2824 = vmatmul.bf16.gmra.mxu0 %v270
        %v2825 = vpop.f32.mrf.mxu0
        %v2826 = vadd.f32 0.0, %v2825
        %v2827 = vpop.f32.mrf.mxu0
        %v2828 = vadd.f32 0.0, %v2827
        %2829 = vmatmul.bf16.gmra.mxu0 %v271
        %v2830 = vpop.f32.mrf.mxu0
        %v2831 = vadd.f32 0.0, %v2830
        %v2832 = vpop.f32.mrf.mxu0
        %v2833 = vadd.f32 0.0, %v2832
        %2834 = vmatmul.bf16.gmra.mxu0 %v272
        %v2835 = vpop.f32.mrf.mxu0
        %v2836 = vadd.f32 0.0, %v2835
        %v2837 = vpop.f32.mrf.mxu0
        %v2838 = vadd.f32 0.0, %v2837
        %2839 = vmatmul.bf16.gmra.mxu0 %v273
        %v2840 = vpop.f32.mrf.mxu0
        %v2841 = vadd.f32 0.0, %v2840
        %v2842 = vpop.f32.mrf.mxu0
        %v2843 = vadd.f32 0.0, %v2842
        %2844 = vmatmul.bf16.gmra.mxu0 %v274
        %v2845 = vpop.f32.mrf.mxu0
        %v2846 = vadd.f32 0.0, %v2845
        %v2847 = vpop.f32.mrf.mxu0
        %v2848 = vadd.f32 0.0, %v2847
        %2849 = vdwg.mxu0
        %s2850 = scalar_lea.vmem %s3, 192
        %v2851 = vld [vmem:[%s2850] sm:$0xf]
        %v2852 = vld [vmem:[%s2850 + $0x4] sm:$0xf]
        %v2853 = vld [vmem:[%s2850 + $0x8] sm:$0xf]
        %v2854 = vld [vmem:[%s2850 + $0xc] sm:$0xf]
        %v2855 = vld [vmem:[%s2850 + $0x10] sm:$0xf]
        %v2856 = vld [vmem:[%s2850 + $0x14] sm:$0xf]
        %v2857 = vld [vmem:[%s2850 + $0x18] sm:$0xf]
        %v2858 = vld [vmem:[%s2850 + $0x1c] sm:$0xf]
        %v2859 = vld [vmem:[%s2850 + $0x20] sm:$0xf]
        %v2860 = vld [vmem:[%s2850 + $0x24] sm:$0xf]
        %v2861 = vld [vmem:[%s2850 + $0x28] sm:$0xf]
        %v2862 = vld [vmem:[%s2850 + $0x2c] sm:$0xf]
        %v2863 = vld [vmem:[%s2850 + $0x30] sm:$0xf]
        %v2864 = vld [vmem:[%s2850 + $0x34] sm:$0xf]
        %v2865 = vld [vmem:[%s2850 + $0x38] sm:$0xf]
        %v2866 = vld [vmem:[%s2850 + $0x3c] sm:$0xf]
        %v2883 = vunpack.c.l.b16 %v2851
        %v2884 = vunpack.c.l.b16 %v2852
        %v2885 = vunpack.c.l.b16 %v2853
        %v2886 = vunpack.c.l.b16 %v2854
        %v2887 = vunpack.c.l.b16 %v2855
        %v2888 = vunpack.c.l.b16 %v2856
        %v2889 = vunpack.c.l.b16 %v2857
        %v2890 = vunpack.c.l.b16 %v2858
        %v2891 = vunpack.c.l.b16 %v2859
        %v2892 = vunpack.c.l.b16 %v2860
        %v2893 = vunpack.c.l.b16 %v2861
        %v2894 = vunpack.c.l.b16 %v2862
        %v2895 = vunpack.c.l.b16 %v2863
        %v2896 = vunpack.c.l.b16 %v2864
        %v2897 = vunpack.c.l.b16 %v2865
        %v2898 = vunpack.c.l.b16 %v2866
        %v2899 = vpack.c.b16 %v2884, %v2883
        %v2900 = vpack.c.b16 %v2886, %v2885
        %v2901 = vpack.c.b16 %v2888, %v2887
        %v2902 = vpack.c.b16 %v2890, %v2889
        %v2903 = vpack.c.b16 %v2892, %v2891
        %v2904 = vpack.c.b16 %v2894, %v2893
        %v2905 = vpack.c.b16 %v2896, %v2895
        %v2906 = vpack.c.b16 %v2898, %v2897
        %2915 = vmatpush.bf16.msra.mxu0 %v2906
        %2916 = vmatpush.bf16.msra.mxu0 %v2905
        %2917 = vmatpush.bf16.msra.mxu0 %v2904
        %2918 = vmatpush.bf16.msra.mxu0 %v2903
        %2919 = vmatpush.bf16.msra.mxu0 %v2902
        %2920 = vmatpush.bf16.msra.mxu0 %v2901
        %2921 = vmatpush.bf16.msra.mxu0 %v2900
        %2922 = vmatpush.bf16.msra.mxu0 %v2899
        %2923 = vmatmul.bf16.gmra.mxu0 %v267
        %v2924 = vpop.f32.mrf.mxu0
        %v2925 = vadd.f32 0.0, %v2924
        %v2926 = vpop.f32.mrf.mxu0
        %v2927 = vadd.f32 0.0, %v2926
        %2928 = vmatmul.bf16.gmra.mxu0 %v268
        %v2929 = vpop.f32.mrf.mxu0
        %v2930 = vadd.f32 0.0, %v2929
        %v2931 = vpop.f32.mrf.mxu0
        %v2932 = vadd.f32 0.0, %v2931
        %2933 = vmatmul.bf16.gmra.mxu0 %v269
        %v2934 = vpop.f32.mrf.mxu0
        %v2935 = vadd.f32 0.0, %v2934
        %v2936 = vpop.f32.mrf.mxu0
        %v2937 = vadd.f32 0.0, %v2936
        %2938 = vmatmul.bf16.gmra.mxu0 %v270
        %v2939 = vpop.f32.mrf.mxu0
        %v2940 = vadd.f32 0.0, %v2939
        %v2941 = vpop.f32.mrf.mxu0
        %v2942 = vadd.f32 0.0, %v2941
        %2943 = vmatmul.bf16.gmra.mxu0 %v271
        %v2944 = vpop.f32.mrf.mxu0
        %v2945 = vadd.f32 0.0, %v2944
        %v2946 = vpop.f32.mrf.mxu0
        %v2947 = vadd.f32 0.0, %v2946
        %2948 = vmatmul.bf16.gmra.mxu0 %v272
        %v2949 = vpop.f32.mrf.mxu0
        %v2950 = vadd.f32 0.0, %v2949
        %v2951 = vpop.f32.mrf.mxu0
        %v2952 = vadd.f32 0.0, %v2951
        %2953 = vmatmul.bf16.gmra.mxu0 %v273
        %v2954 = vpop.f32.mrf.mxu0
        %v2955 = vadd.f32 0.0, %v2954
        %v2956 = vpop.f32.mrf.mxu0
        %v2957 = vadd.f32 0.0, %v2956
        %2958 = vmatmul.bf16.gmra.mxu0 %v274
        %v2959 = vpop.f32.mrf.mxu0
        %v2960 = vadd.f32 0.0, %v2959
        %v2961 = vpop.f32.mrf.mxu0
        %v2962 = vadd.f32 0.0, %v2961
        %2963 = vdwg.mxu0
        %v2964 = vpack.c.bf16 %v2699, %v2697
        %v2965 = vpack.c.bf16 %v2704, %v2702
        %v2966 = vpack.c.bf16 %v2709, %v2707
        %v2967 = vpack.c.bf16 %v2714, %v2712
        %v2968 = vpack.c.bf16 %v2719, %v2717
        %v2969 = vpack.c.bf16 %v2724, %v2722
        %v2970 = vpack.c.bf16 %v2729, %v2727
        %v2971 = vpack.c.bf16 %v2734, %v2732
        %v2972 = vpack.c.bf16 %v2813, %v2811
        %v2973 = vpack.c.bf16 %v2818, %v2816
        %v2974 = vpack.c.bf16 %v2823, %v2821
        %v2975 = vpack.c.bf16 %v2828, %v2826
        %v2976 = vpack.c.bf16 %v2833, %v2831
        %v2977 = vpack.c.bf16 %v2838, %v2836
        %v2978 = vpack.c.bf16 %v2843, %v2841
        %v2979 = vpack.c.bf16 %v2848, %v2846
        %v2981 = vsel %vm630, %v2964, 0
        %v2984 = vsel %vm630, %v2965, 0
        %v2987 = vsel %vm630, %v2966, 0
        %v2990 = vsel %vm630, %v2967, 0
        %v2993 = vsel %vm630, %v2968, 0
        %v2996 = vsel %vm630, %v2969, 0
        %v2999 = vsel %vm630, %v2970, 0
        %v3002 = vsel %vm630, %v2971, 0
        %v3005 = vsel %vm630, %v2972, 0
        %v3008 = vsel %vm630, %v2973, 0
        %v3011 = vsel %vm630, %v2974, 0
        %v3014 = vsel %vm630, %v2975, 0
        %v3017 = vsel %vm630, %v2976, 0
        %v3020 = vsel %vm630, %v2977, 0
        %v3023 = vsel %vm630, %v2978, 0
        %v3026 = vsel %vm630, %v2979, 0
        %3028 = vmatpush.bf16.xpose.msra.mxu0 %v3026
        %3029 = vmatpush.bf16.xpose.msra.mxu0 %v3023
        %3030 = vmatpush.bf16.xpose.msra.mxu0 %v3020
        %3031 = vmatpush.bf16.xpose.msra.mxu0 %v3017
        %3032 = vmatpush.bf16.xpose.msra.mxu0 %v3014
        %3033 = vmatpush.bf16.xpose.msra.mxu0 %v3011
        %3034 = vmatpush.bf16.xpose.msra.mxu0 %v3008
        %3035 = vmatpush.bf16.xpose.msra.mxu0 %v3005
        %3036 = vmatmul.bf16.gmra.mxu0 %v2981
        %v3037 = vpop.f32.mrf.mxu0
        %v3038 = vadd.f32 0.0, %v3037
        %v3039 = vpop.f32.mrf.mxu0
        %v3040 = vadd.f32 0.0, %v3039
        %3041 = vmatmul.bf16.gmra.mxu0 %v2984
        %v3042 = vpop.f32.mrf.mxu0
        %v3043 = vadd.f32 0.0, %v3042
        %v3044 = vpop.f32.mrf.mxu0
        %v3045 = vadd.f32 0.0, %v3044
        %3046 = vmatmul.bf16.gmra.mxu0 %v2987
        %v3047 = vpop.f32.mrf.mxu0
        %v3048 = vadd.f32 0.0, %v3047
        %v3049 = vpop.f32.mrf.mxu0
        %v3050 = vadd.f32 0.0, %v3049
        %3051 = vmatmul.bf16.gmra.mxu0 %v2990
        %v3052 = vpop.f32.mrf.mxu0
        %v3053 = vadd.f32 0.0, %v3052
        %v3054 = vpop.f32.mrf.mxu0
        %v3055 = vadd.f32 0.0, %v3054
        %3056 = vmatmul.bf16.gmra.mxu0 %v2993
        %v3057 = vpop.f32.mrf.mxu0
        %v3058 = vadd.f32 0.0, %v3057
        %v3059 = vpop.f32.mrf.mxu0
        %v3060 = vadd.f32 0.0, %v3059
        %3061 = vmatmul.bf16.gmra.mxu0 %v2996
        %v3062 = vpop.f32.mrf.mxu0
        %v3063 = vadd.f32 0.0, %v3062
        %v3064 = vpop.f32.mrf.mxu0
        %v3065 = vadd.f32 0.0, %v3064
        %3066 = vmatmul.bf16.gmra.mxu0 %v2999
        %v3067 = vpop.f32.mrf.mxu0
        %v3068 = vadd.f32 0.0, %v3067
        %v3069 = vpop.f32.mrf.mxu0
        %v3070 = vadd.f32 0.0, %v3069
        %3071 = vmatmul.bf16.gmra.mxu0 %v3002
        %v3072 = vpop.f32.mrf.mxu0
        %v3073 = vadd.f32 0.0, %v3072
        %v3074 = vpop.f32.mrf.mxu0
        %v3075 = vadd.f32 0.0, %v3074
        %3076 = vdwg.mxu0
        %v3077 = vmul.f32 %v3038, 0.17677669
        %v3078 = vmul.f32 %v3040, 0.17677669
        %v3079 = vmul.f32 %v3043, 0.17677669
        %v3080 = vmul.f32 %v3045, 0.17677669
        %v3081 = vmul.f32 %v3048, 0.17677669
        %v3082 = vmul.f32 %v3050, 0.17677669
        %v3083 = vmul.f32 %v3053, 0.17677669
        %v3084 = vmul.f32 %v3055, 0.17677669
        %v3085 = vmul.f32 %v3058, 0.17677669
        %v3086 = vmul.f32 %v3060, 0.17677669
        %v3087 = vmul.f32 %v3063, 0.17677669
        %v3088 = vmul.f32 %v3065, 0.17677669
        %v3089 = vmul.f32 %v3068, 0.17677669
        %v3090 = vmul.f32 %v3070, 0.17677669
        %v3091 = vmul.f32 %v3073, 0.17677669
        %v3092 = vmul.f32 %v3075, 0.17677669
        %3093 = vmax.xlane.f32.xlu0 %v3077
        %v3094 = vpop.xlane.xlu0 %3093
        %3095 = vmax.xlane.f32.xlu0 %v3078
        %v3096 = vpop.xlane.xlu0 %3095
        %3097 = vmax.xlane.f32.xlu0 %v3079
        %v3098 = vpop.xlane.xlu0 %3097
        %3099 = vmax.xlane.f32.xlu0 %v3080
        %v3100 = vpop.xlane.xlu0 %3099
        %3101 = vmax.xlane.f32.xlu0 %v3081
        %v3102 = vpop.xlane.xlu0 %3101
        %3103 = vmax.xlane.f32.xlu0 %v3082
        %v3104 = vpop.xlane.xlu0 %3103
        %3105 = vmax.xlane.f32.xlu0 %v3083
        %v3106 = vpop.xlane.xlu0 %3105
        %3107 = vmax.xlane.f32.xlu0 %v3084
        %v3108 = vpop.xlane.xlu0 %3107
        %3109 = vmax.xlane.f32.xlu0 %v3085
        %v3110 = vpop.xlane.xlu0 %3109
        %3111 = vmax.xlane.f32.xlu0 %v3086
        %v3112 = vpop.xlane.xlu0 %3111
        %3113 = vmax.xlane.f32.xlu0 %v3087
        %v3114 = vpop.xlane.xlu0 %3113
        %3115 = vmax.xlane.f32.xlu0 %v3088
        %v3116 = vpop.xlane.xlu0 %3115
        %3117 = vmax.xlane.f32.xlu0 %v3089
        %v3118 = vpop.xlane.xlu0 %3117
        %3119 = vmax.xlane.f32.xlu0 %v3090
        %v3120 = vpop.xlane.xlu0 %3119
        %3121 = vmax.xlane.f32.xlu0 %v3091
        %v3122 = vpop.xlane.xlu0 %3121
        %3123 = vmax.xlane.f32.xlu0 %v3092
        %v3124 = vpop.xlane.xlu0 %3123
        %v3125 = vsub.f32 %v3077, %v3094
        %v3126 = vsub.f32 %v3078, %v3096
        %v3127 = vsub.f32 %v3079, %v3098
        %v3128 = vsub.f32 %v3080, %v3100
        %v3129 = vsub.f32 %v3081, %v3102
        %v3130 = vsub.f32 %v3082, %v3104
        %v3131 = vsub.f32 %v3083, %v3106
        %v3132 = vsub.f32 %v3084, %v3108
        %v3133 = vsub.f32 %v3085, %v3110
        %v3134 = vsub.f32 %v3086, %v3112
        %v3135 = vsub.f32 %v3087, %v3114
        %v3136 = vsub.f32 %v3088, %v3116
        %v3137 = vsub.f32 %v3089, %v3118
        %v3138 = vsub.f32 %v3090, %v3120
        %v3139 = vsub.f32 %v3091, %v3122
        %v3140 = vsub.f32 %v3092, %v3124
        %v3141 = vmul.f32 %v3125, 1.442695
        %v3142 = vpow.pop %v3141
        %v3143 = vmul.f32 %v3126, 1.442695
        %v3144 = vpow.pop %v3143
        %v3145 = vmul.f32 %v3127, 1.442695
        %v3146 = vpow.pop %v3145
        %v3147 = vmul.f32 %v3128, 1.442695
        %v3148 = vpow.pop %v3147
        %v3149 = vmul.f32 %v3129, 1.442695
        %v3150 = vpow.pop %v3149
        %v3151 = vmul.f32 %v3130, 1.442695
        %v3152 = vpow.pop %v3151
        %v3153 = vmul.f32 %v3131, 1.442695
        %v3154 = vpow.pop %v3153
        %v3155 = vmul.f32 %v3132, 1.442695
        %v3156 = vpow.pop %v3155
        %v3157 = vmul.f32 %v3133, 1.442695
        %v3158 = vpow.pop %v3157
        %v3159 = vmul.f32 %v3134, 1.442695
        %v3160 = vpow.pop %v3159
        %v3161 = vmul.f32 %v3135, 1.442695
        %v3162 = vpow.pop %v3161
        %v3163 = vmul.f32 %v3136, 1.442695
        %v3164 = vpow.pop %v3163
        %v3165 = vmul.f32 %v3137, 1.442695
        %v3166 = vpow.pop %v3165
        %v3167 = vmul.f32 %v3138, 1.442695
        %v3168 = vpow.pop %v3167
        %v3169 = vmul.f32 %v3139, 1.442695
        %v3170 = vpow.pop %v3169
        %v3171 = vmul.f32 %v3140, 1.442695
        %v3172 = vpow.pop %v3171
        %3173 = vadd.xlane.f32.xlu0 %v3142
        %v3174 = vpop.xlane.xlu0 %3173
        %3175 = vadd.xlane.f32.xlu0 %v3144
        %v3176 = vpop.xlane.xlu0 %3175
        %3177 = vadd.xlane.f32.xlu0 %v3146
        %v3178 = vpop.xlane.xlu0 %3177
        %3179 = vadd.xlane.f32.xlu0 %v3148
        %v3180 = vpop.xlane.xlu0 %3179
        %3181 = vadd.xlane.f32.xlu0 %v3150
        %v3182 = vpop.xlane.xlu0 %3181
        %3183 = vadd.xlane.f32.xlu0 %v3152
        %v3184 = vpop.xlane.xlu0 %3183
        %3185 = vadd.xlane.f32.xlu0 %v3154
        %v3186 = vpop.xlane.xlu0 %3185
        %3187 = vadd.xlane.f32.xlu0 %v3156
        %v3188 = vpop.xlane.xlu0 %3187
        %3189 = vadd.xlane.f32.xlu0 %v3158
        %v3190 = vpop.xlane.xlu0 %3189
        %3191 = vadd.xlane.f32.xlu0 %v3160
        %v3192 = vpop.xlane.xlu0 %3191
        %3193 = vadd.xlane.f32.xlu0 %v3162
        %v3194 = vpop.xlane.xlu0 %3193
        %3195 = vadd.xlane.f32.xlu0 %v3164
        %v3196 = vpop.xlane.xlu0 %3195
        %3197 = vadd.xlane.f32.xlu0 %v3166
        %v3198 = vpop.xlane.xlu0 %3197
        %3199 = vadd.xlane.f32.xlu0 %v3168
        %v3200 = vpop.xlane.xlu0 %3199
        %3201 = vadd.xlane.f32.xlu0 %v3170
        %v3202 = vpop.xlane.xlu0 %3201
        %3203 = vadd.xlane.f32.xlu0 %v3172
        %v3204 = vpop.xlane.xlu0 %3203
        %v3205 = vrcp.pop %v3174
        %v3206 = vrcp.pop %v3176
        %v3207 = vrcp.pop %v3178
        %v3208 = vrcp.pop %v3180
        %v3209 = vrcp.pop %v3182
        %v3210 = vrcp.pop %v3184
        %v3211 = vrcp.pop %v3186
        %v3212 = vrcp.pop %v3188
        %v3213 = vrcp.pop %v3190
        %v3214 = vrcp.pop %v3192
        %v3215 = vrcp.pop %v3194
        %v3216 = vrcp.pop %v3196
        %v3217 = vrcp.pop %v3198
        %v3218 = vrcp.pop %v3200
        %v3219 = vrcp.pop %v3202
        %v3220 = vrcp.pop %v3204
        %v3221 = vmul.f32 %v3142, %v3205
        %v3222 = vmul.f32 %v3144, %v3206
        %v3223 = vmul.f32 %v3146, %v3207
        %v3224 = vmul.f32 %v3148, %v3208
        %v3225 = vmul.f32 %v3150, %v3209
        %v3226 = vmul.f32 %v3152, %v3210
        %v3227 = vmul.f32 %v3154, %v3211
        %v3228 = vmul.f32 %v3156, %v3212
        %v3229 = vmul.f32 %v3158, %v3213
        %v3230 = vmul.f32 %v3160, %v3214
        %v3231 = vmul.f32 %v3162, %v3215
        %v3232 = vmul.f32 %v3164, %v3216
        %v3233 = vmul.f32 %v3166, %v3217
        %v3234 = vmul.f32 %v3168, %v3218
        %v3235 = vmul.f32 %v3170, %v3219
        %v3236 = vmul.f32 %v3172, %v3220
        %v3237 = vpack.c.bf16 %v3222, %v3221
        %v3238 = vpack.c.bf16 %v3224, %v3223
        %v3239 = vpack.c.bf16 %v3226, %v3225
        %v3240 = vpack.c.bf16 %v3228, %v3227
        %v3241 = vpack.c.bf16 %v3230, %v3229
        %v3242 = vpack.c.bf16 %v3232, %v3231
        %v3243 = vpack.c.bf16 %v3234, %v3233
        %v3244 = vpack.c.bf16 %v3236, %v3235
        %v3245 = vpack.c.bf16 %v2927, %v2925
        %v3246 = vpack.c.bf16 %v2932, %v2930
        %v3247 = vpack.c.bf16 %v2937, %v2935
        %v3248 = vpack.c.bf16 %v2942, %v2940
        %v3249 = vpack.c.bf16 %v2947, %v2945
        %v3250 = vpack.c.bf16 %v2952, %v2950
        %v3251 = vpack.c.bf16 %v2957, %v2955
        %v3252 = vpack.c.bf16 %v2962, %v2960
        %3253 = vmatpush.bf16.msra.mxu0 %v3252
        %3254 = vmatpush.bf16.msra.mxu0 %v3251
        %3255 = vmatpush.bf16.msra.mxu0 %v3250
        %3256 = vmatpush.bf16.msra.mxu0 %v3249
        %3257 = vmatpush.bf16.msra.mxu0 %v3248
        %3258 = vmatpush.bf16.msra.mxu0 %v3247
        %3259 = vmatpush.bf16.msra.mxu0 %v3246
        %3260 = vmatpush.bf16.msra.mxu0 %v3245
        %3261 = vmatmul.bf16.gmra.mxu0 %v3237
        %v3262 = vpop.f32.mrf.mxu0
        %v3263 = vadd.f32 0.0, %v3262
        %v3264 = vpop.f32.mrf.mxu0
        %v3265 = vadd.f32 0.0, %v3264
        %3266 = vmatmul.bf16.gmra.mxu0 %v3238
        %v3267 = vpop.f32.mrf.mxu0
        %v3268 = vadd.f32 0.0, %v3267
        %v3269 = vpop.f32.mrf.mxu0
        %v3270 = vadd.f32 0.0, %v3269
        %3271 = vmatmul.bf16.gmra.mxu0 %v3239
        %v3272 = vpop.f32.mrf.mxu0
        %v3273 = vadd.f32 0.0, %v3272
        %v3274 = vpop.f32.mrf.mxu0
        %v3275 = vadd.f32 0.0, %v3274
        %3276 = vmatmul.bf16.gmra.mxu0 %v3240
        %v3277 = vpop.f32.mrf.mxu0
        %v3278 = vadd.f32 0.0, %v3277
        %v3279 = vpop.f32.mrf.mxu0
        %v3280 = vadd.f32 0.0, %v3279
        %3281 = vmatmul.bf16.gmra.mxu0 %v3241
        %v3282 = vpop.f32.mrf.mxu0
        %v3283 = vadd.f32 0.0, %v3282
        %v3284 = vpop.f32.mrf.mxu0
        %v3285 = vadd.f32 0.0, %v3284
        %3286 = vmatmul.bf16.gmra.mxu0 %v3242
        %v3287 = vpop.f32.mrf.mxu0
        %v3288 = vadd.f32 0.0, %v3287
        %v3289 = vpop.f32.mrf.mxu0
        %v3290 = vadd.f32 0.0, %v3289
        %3291 = vmatmul.bf16.gmra.mxu0 %v3243
        %v3292 = vpop.f32.mrf.mxu0
        %v3293 = vadd.f32 0.0, %v3292
        %v3294 = vpop.f32.mrf.mxu0
        %v3295 = vadd.f32 0.0, %v3294
        %3296 = vmatmul.bf16.gmra.mxu0 %v3244
        %v3297 = vpop.f32.mrf.mxu0
        %v3298 = vadd.f32 0.0, %v3297
        %v3299 = vpop.f32.mrf.mxu0
        %v3300 = vadd.f32 0.0, %v3299
        %3301 = vdwg.mxu0
        %v3302 = vpack.c.bf16 %v3265, %v3263
        %v3303 = vpack.c.bf16 %v3270, %v3268
        %v3304 = vpack.c.bf16 %v3275, %v3273
        %v3305 = vpack.c.bf16 %v3280, %v3278
        %v3306 = vpack.c.bf16 %v3285, %v3283
        %v3307 = vpack.c.bf16 %v3290, %v3288
        %v3308 = vpack.c.bf16 %v3295, %v3293
        %v3309 = vpack.c.bf16 %v3300, %v3298
        %s3310 = scalar_lea.vmem %s4, 48
        %v3311 = vld [vmem:[%s3310] sm:$0xf]
        %v3312 = vld [vmem:[%s3310 + $0x4] sm:$0xf]
        %v3313 = vld [vmem:[%s3310 + $0x8] sm:$0xf]
        %v3314 = vld [vmem:[%s3310 + $0xc] sm:$0xf]
        %v3319 = vunpack.c.l.b16 %v3311
        %v3320 = vunpack.c.l.b16 %v3312
        %v3321 = vunpack.c.l.b16 %v3313
        %v3322 = vunpack.c.l.b16 %v3314
        %v3323 = vpack.c.b16 %v3320, %v3319
        %v3324 = vpack.c.b16 %v3322, %v3321
        %v3328 = vsel %vm630, %v3302, 0
        %v3331 = vsel %vm630, %v3303, 0
        %v3334 = vsel %vm630, %v3304, 0
        %v3337 = vsel %vm630, %v3305, 0
        %v3340 = vsel %vm630, %v3306, 0
        %v3343 = vsel %vm630, %v3307, 0
        %v3346 = vsel %vm630, %v3308, 0
        %v3349 = vsel %vm630, %v3309, 0
        %3351 = vmatpush.bf16.msra.mxu0 0
        %3352 = vmatpush.bf16.msra.mxu0 0
        %3353 = vmatpush.bf16.msra.mxu0 0
        %3354 = vmatpush.bf16.msra.mxu0 0
        %3355 = vmatpush.bf16.msra.mxu0 0
        %3356 = vmatpush.bf16.msra.mxu0 0
        %3357 = vmatpush.bf16.msra.mxu0 %v3324
        %3358 = vmatpush.bf16.msra.mxu0 %v3323
        %3359 = vmatmul.bf16.gmra.mxu0 %v3328
        %v3360 = vpop.f32.mrf.mxu0
        %v3361 = vadd.f32 0.0, %v3360
        %v3362 = vpop.f32.mrf.mxu0
        %v3363 = vadd.f32 0.0, %v3362
        %3364 = vmatmul.bf16.gmra.mxu0 %v3331
        %v3365 = vpop.f32.mrf.mxu0
        %v3366 = vadd.f32 0.0, %v3365
        %v3367 = vpop.f32.mrf.mxu0
        %v3368 = vadd.f32 0.0, %v3367
        %3369 = vmatmul.bf16.gmra.mxu0 %v3334
        %v3370 = vpop.f32.mrf.mxu0
        %v3371 = vadd.f32 0.0, %v3370
        %v3372 = vpop.f32.mrf.mxu0
        %v3373 = vadd.f32 0.0, %v3372
        %3374 = vmatmul.bf16.gmra.mxu0 %v3337
        %v3375 = vpop.f32.mrf.mxu0
        %v3376 = vadd.f32 0.0, %v3375
        %v3377 = vpop.f32.mrf.mxu0
        %v3378 = vadd.f32 0.0, %v3377
        %3379 = vmatmul.bf16.gmra.mxu0 %v3340
        %v3380 = vpop.f32.mrf.mxu0
        %v3381 = vadd.f32 0.0, %v3380
        %v3382 = vpop.f32.mrf.mxu0
        %v3383 = vadd.f32 0.0, %v3382
        %3384 = vmatmul.bf16.gmra.mxu0 %v3343
        %v3385 = vpop.f32.mrf.mxu0
        %v3386 = vadd.f32 0.0, %v3385
        %v3387 = vpop.f32.mrf.mxu0
        %v3388 = vadd.f32 0.0, %v3387
        %3389 = vmatmul.bf16.gmra.mxu0 %v3346
        %v3390 = vpop.f32.mrf.mxu0
        %v3391 = vadd.f32 0.0, %v3390
        %v3392 = vpop.f32.mrf.mxu0
        %v3393 = vadd.f32 0.0, %v3392
        %3394 = vmatmul.bf16.gmra.mxu0 %v3349
        %v3395 = vpop.f32.mrf.mxu0
        %v3396 = vadd.f32 0.0, %v3395
        %v3397 = vpop.f32.mrf.mxu0
        %v3398 = vadd.f32 0.0, %v3397
        %3399 = vdwg.mxu0
        %v3400 = vadd.f32 %v2606, %v3361
        %v3401 = vadd.f32 %v2607, %v3363
        %v3402 = vadd.f32 %v2608, %v3366
        %v3403 = vadd.f32 %v2609, %v3368
        %v3404 = vadd.f32 %v2610, %v3371
        %v3405 = vadd.f32 %v2611, %v3373
        %v3406 = vadd.f32 %v2612, %v3376
        %v3407 = vadd.f32 %v2613, %v3378
        %v3408 = vadd.f32 %v2614, %v3381
        %v3409 = vadd.f32 %v2615, %v3383
        %v3410 = vadd.f32 %v2616, %v3386
        %v3411 = vadd.f32 %v2617, %v3388
        %v3412 = vadd.f32 %v2618, %v3391
        %v3413 = vadd.f32 %v2619, %v3393
        %v3414 = vadd.f32 %v2620, %v3396
        %v3415 = vadd.f32 %v2621, %v3398
        %v3416 = vld [vmem:[%s5] sm:$0x1]
        %v3418 = vperm.slane %v3416, 0
        %v3420 = vadd.f32 %v3400, %v3418
        %v3421 = vadd.f32 %v3401, %v3418
        %v3422 = vadd.f32 %v3402, %v3418
        %v3423 = vadd.f32 %v3403, %v3418
        %v3424 = vadd.f32 %v3404, %v3418
        %v3425 = vadd.f32 %v3405, %v3418
        %v3426 = vadd.f32 %v3406, %v3418
        %v3427 = vadd.f32 %v3407, %v3418
        %v3428 = vadd.f32 %v3408, %v3418
        %v3429 = vadd.f32 %v3409, %v3418
        %v3430 = vadd.f32 %v3410, %v3418
        %v3431 = vadd.f32 %v3411, %v3418
        %v3432 = vadd.f32 %v3412, %v3418
        %v3433 = vadd.f32 %v3413, %v3418
        %v3434 = vadd.f32 %v3414, %v3418
        %v3435 = vadd.f32 %v3415, %v3418
        %3436 = vst [vmem:[%s244] sm:$0xff] %v3420
        %3437 = vst [vmem:[%s244 + $0x8] sm:$0xff] %v3421
        %3438 = vst [vmem:[%s244 + $0x10] sm:$0xff] %v3422
        %3439 = vst [vmem:[%s244 + $0x18] sm:$0xff] %v3423
        %3440 = vst [vmem:[%s244 + $0x20] sm:$0xff] %v3424
        %3441 = vst [vmem:[%s244 + $0x28] sm:$0xff] %v3425
        %3442 = vst [vmem:[%s244 + $0x30] sm:$0xff] %v3426
        %3443 = vst [vmem:[%s244 + $0x38] sm:$0xff] %v3427
        %3444 = vst [vmem:[%s244 + $0x40] sm:$0xff] %v3428
        %3445 = vst [vmem:[%s244 + $0x48] sm:$0xff] %v3429
        %3446 = vst [vmem:[%s244 + $0x50] sm:$0xff] %v3430
        %3447 = vst [vmem:[%s244 + $0x58] sm:$0xff] %v3431
        %3448 = vst [vmem:[%s244 + $0x60] sm:$0xff] %v3432
        %3449 = vst [vmem:[%s244 + $0x68] sm:$0xff] %v3433
        %3450 = vst [vmem:[%s244 + $0x70] sm:$0xff] %v3434
        %3451 = vst [vmem:[%s244 + $0x78] sm:$0xff] %v3435
        %s3452 = sand.u32 %s159, 1
        %s3453 = scalar_lea.sflag [#allocation3], %s3452
        %s3454 = sand.u32 %s159, 1
        %s3455 = smul.addr %s3454, 128
        %s3456 = scalar_lea.vmem [#allocation2], %s3455
        // Predicated region
        $region45: #{tpu_custom_call.1} parent=43 // pred_check
          %p3457 = pneg %p169
        $region46: #{tpu_custom_call.1} parent=43 // pred_check_branch
          %3459 = sbr.rel (%p3457) target = $region48
        $region47: #{tpu_custom_call.1} parent=43 // pred_region
          %3461 = vsyncadd %s3453, 0
          %s3462 = smul.addr %s20, 16
          %s3463 = smul.addr %s3462, 8
          %s3464 = scalar_lea.hbm %s6, %s3463
          %s3465 = sshll.u32 %s3456, 4
          %s3466 = int_to_ptr.vmem [resolvable:$true] %s3465
          %s3467 = sshll.u32 %s3464, 4
          %s3468 = int_to_ptr.hbm [resolvable:$true] %s3467
          %3473 = dma.vmem_to_hbm [thread:$0]  %s3466, 2048, %s3468, %s3453, 128, 128, 8
        $region48: #{tpu_custom_call.1} parent=43 // pred_fallthru
          _
      $region44: #{tpu_custom_call.1} parent=5 // pred_fallthru
        _
      %p3474 = scmp.le.s32.totalorder 2, %s15
      // Predicated region
      $region49: #{tpu_custom_call.1} parent=5 // pred_check
        %p3475 = pneg %p3474
      $region50: #{tpu_custom_call.1} parent=5 // pred_check_branch
        %3477 = sbr.rel (%p3475) target = $region52
      $region51: #{tpu_custom_call.1} parent=5 // pred_region
        %s3478 = ssub.s32 %s15, 2
        // Predicated region
        $region53: #{tpu_custom_call.1} parent=51 // pred_check
          %p3479 = pneg %p175
        $region54: #{tpu_custom_call.1} parent=51 // pred_check_branch
          %3481 = sbr.rel (%p3479) target = $region56
        $region55: #{tpu_custom_call.1} parent=51 // pred_region
          %s3482 = sand.u32 %s160, 1
          %s3483 = scalar_lea.sflag [#allocation3], %s3482
          %s3484 = sand.u32 %s160, 1
          %s3485 = smul.addr %s3484, 128
          %s3486 = scalar_lea.vmem [#allocation2], %s3485
          %3488 = dma.done %s3483, 2048
        $region56: #{tpu_custom_call.1} parent=51 // pred_fallthru
          _
      $region52: #{tpu_custom_call.1} parent=5 // pred_fallthru
        _
    $region6: #{tpu_custom_call.1} parent=1 // loop_footer
      %s19 = sadd.s32 1, %s15
    $region7: #{tpu_custom_call.1} parent=1 // loop_footer_branch
      %14 = sbr.rel target = $region3
    $region8: #{tpu_custom_call.1} parent=1 // loop_exit
      _
    %3489 = vsyncpa [#allocation3], 1
    %s3490 = scalar_lea.sflag [#allocation3], 1
    %3491 = vsyncpa %s3490, 1

</llo_original>
